<compile_context>
chip_gen: v7x
topology: tpu7x:2x2x1
jax: 0.10.0
libtpu: 0.0.40
codegen_flags: <defaults>
</compile_context>

<pallas_src>
import functools

import jax
import jax.numpy as jnp
from jax.experimental import pallas as pl
from jax.experimental.pallas import tpu as pltpu

# ----------------------------- model config ---------------------------------
DIM = 32
N_HEADS = 4
HEAD_DIM = DIM // N_HEADS
N_LAYERS = 2
MAX_SEQLEN = 8
ROPE_THETA = 10000.0
MULTIPLE_OF = 32
FFN_DIM_MULTIPLIER = None
EPS = 1e-6


def _ffn_hidden_dim(dim, multiple_of, ffn_dim_multiplier):
    hidden = 4 * dim
    hidden = int(2 * hidden / 3)
    if ffn_dim_multiplier is not None:
        hidden = int(ffn_dim_multiplier * hidden)
    return multiple_of * ((hidden + multiple_of - 1) // multiple_of)


HIDDEN_DIM = _ffn_hidden_dim(DIM, MULTIPLE_OF, FFN_DIM_MULTIPLIER)


# ----------------------------- fused whole-model kernel ----------------------
def _transformer_kernel(x_ref, an_ref, fn_ref, wqkv_ref, wo_ref, w13_ref,
                        w2_ref, cos_ref, sin_ref, swap_ref, o_ref, *,
                        eps, n_layers, n_heads, head_dim, dim, hidden_dim):
    x = x_ref[...].astype(jnp.float32)                        # (S, D)
    cos = cos_ref[...]                                        # (S, D)
    sin = sin_ref[...]                                        # (S, D) signed
    swap = swap_ref[...]                                      # (D, D) pair-swap perm
    scale = head_dim ** -0.5

    def rms(v, w):
        ms = jnp.mean(v * v, axis=-1, keepdims=True)
        return v * jax.lax.rsqrt(ms + eps) * w

    for l in range(n_layers):                                 # unrolled layer loop
        an = an_ref[l].astype(jnp.float32)                    # (1, D)
        fn = fn_ref[l].astype(jnp.float32)                    # (1, D)
        wqkv = wqkv_ref[l]                                    # (D, 3D)
        wo = wo_ref[l]                                        # (D, D)
        w13 = w13_ref[l]                                      # (D, 2H)
        w2 = w2_ref[l]                                        # (H, D)

        # ---------------- attention sub-block ----------------
        xn = rms(x, an)
        qkv = jnp.dot(xn, wqkv, preferred_element_type=jnp.float32)   # (S, 3D)
        q = qkv[:, :dim]
        k = qkv[:, dim:2 * dim]
        v = qkv[:, 2 * dim:]

        # RoPE, interleaved-pair convention (matches torch apply_rotary_embedding):
        #   out_even = x_even*cos - x_odd*sin ; out_odd = x_odd*cos + x_even*sin
        # implemented as x*cos + (x @ pair_swap) * signed_sin.
        q = q * cos + jnp.dot(q, swap, preferred_element_type=jnp.float32) * sin
        k = k * cos + jnp.dot(k, swap, preferred_element_type=jnp.float32) * sin

        # Non-causal SDPA; the per-head output projection is accumulated
        # directly so the attention result is produced lane-dense as (S, D)
        # without concatenation / transposes.
        attn_proj = jnp.zeros_like(x)
        for h in range(n_heads):                              # unrolled (4 heads)
            sl = slice(h * head_dim, (h + 1) * head_dim)
            qh, kh, vh = q[:, sl], k[:, sl], v[:, sl]
            s = jax.lax.dot_general(
                qh, kh, (((1,), (1,)), ((), ())),
                preferred_element_type=jnp.float32) * scale   # (S, S)
            m = jnp.max(s, axis=-1, keepdims=True)
            p = jnp.exp(s - m)
            p = p * pl.reciprocal(jnp.sum(p, axis=-1, keepdims=True))
            oh = jnp.dot(p, vh, preferred_element_type=jnp.float32)   # (S, Dh)
            attn_proj = attn_proj + jnp.dot(
                oh, wo[sl, :], preferred_element_type=jnp.float32)    # (S, D)

        h_res = x + attn_proj                                 # residual (in-kernel)

        # ---------------- feed-forward sub-block ----------------
        hn = rms(h_res, fn)
        g13 = jnp.dot(hn, w13, preferred_element_type=jnp.float32)    # (S, 2H)
        a = g13[:, :hidden_dim]
        b = g13[:, hidden_dim:]
        gated = a * jax.nn.sigmoid(a) * b                     # SiLU(w1 x) * (w3 x)
        x = h_res + jnp.dot(gated, w2, preferred_element_type=jnp.float32)

    o_ref[...] = x.astype(o_ref.dtype)


def base_transformer(h, stacked, cos_f, sin_f, swap):
    B, S, D = h.shape
    L = N_LAYERS

    def full(shape):
        n = len(shape)
        return pl.BlockSpec(shape, lambda b, _n=n: (0,) * _n)

    kernel = functools.partial(
        _transformer_kernel, eps=EPS, n_layers=L, n_heads=N_HEADS,
        head_dim=HEAD_DIM, dim=D, hidden_dim=HIDDEN_DIM)

    return pl.pallas_call(
        kernel,
        out_shape=jax.ShapeDtypeStruct((B, S, D), h.dtype),
        grid=(B,),
        in_specs=[
            pl.BlockSpec((None, S, D), lambda b: (b, 0, 0)),   # x (per-batch tile)
            full((L, 1, D)),                                   # attn_norm weights
            full((L, 1, D)),                                   # ffn_norm weights
            full((L, D, 3 * D)),                               # wq||wk||wv
            full((L, D, D)),                                   # wo
            full((L, D, 2 * HIDDEN_DIM)),                      # w1||w3
            full((L, HIDDEN_DIM, D)),                          # w2
            full((S, D)),                                      # rope cos (full width)
            full((S, D)),                                      # rope signed sin
            full((D, D)),                                      # pair-swap permutation
        ],
        out_specs=pl.BlockSpec((None, S, D), lambda b: (b, 0, 0)),
        compiler_params=pltpu.CompilerParams(
            dimension_semantics=("parallel",)),                # batch across TCs (v7x)
    )(h, stacked["attn_norm"], stacked["ffn_norm"], stacked["wqkv"],
      stacked["wo"], stacked["w13"], stacked["w2"], cos_f, sin_f, swap)


# ----------------------------- RoPE tables (host-side, tiny) -----------------
def precompute_freq_cis(dim, end, theta):
    # Original torch formulation: (end, dim//2, 2, 2) rotation matrices.
    freqs = 1.0 / theta ** (
        jnp.arange(0, dim, 2)[: dim // 2].astype(jnp.float32) / dim)
    t = jnp.arange(end, dtype=jnp.float32)
    freqs = jnp.outer(t, freqs)
    cos, sin = jnp.cos(freqs), jnp.sin(freqs)
    return jnp.stack([cos, -sin, sin, cos], axis=-1).reshape(
        freqs.shape[0], freqs.shape[1], 2, 2)


def build_rope_tables(head_dim, n_heads, seqlen, theta):
    # Full-width (S, H*Dh) cos / signed-sin tables for the in-kernel formulation.
    freqs = 1.0 / theta ** (
        jnp.arange(0, head_dim, 2)[: head_dim // 2].astype(jnp.float32) / head_dim)
    ang = jnp.outer(jnp.arange(seqlen, dtype=jnp.float32), freqs)     # (S, Dh/2)
    cos = jnp.repeat(jnp.cos(ang), 2, axis=-1)                        # c0 c0 c1 c1 ...
    sin = jnp.stack([-jnp.sin(ang), jnp.sin(ang)], axis=-1).reshape(
        seqlen, head_dim)                                             # -s0 s0 -s1 s1 ...
    return jnp.tile(cos, (1, n_heads)), jnp.tile(sin, (1, n_heads))


def build_swap_matrix(d):
    # Permutation swapping lanes (2i, 2i+1); x @ P gives the pair-swapped vector.
    idx = jnp.arange(d)
    src = idx + 1 - 2 * (idx % 2)
    return jnp.eye(d, dtype=jnp.float32)[src]


# ----------------------------- params ----------------------------------------
def init_params(key):
    params = []
    in_std = DIM ** -0.5
    out_std = HIDDEN_DIM ** -0.5
    for _ in range(N_LAYERS):
        key, *ks = jax.random.split(key, 8)
        wq = jax.random.normal(ks[0], (DIM, N_HEADS * HEAD_DIM), jnp.float32) * in_std
        wk = jax.random.normal(ks[1], (DIM, N_HEADS * HEAD_DIM), jnp.float32) * in_std
        wv = jax.random.normal(ks[2], (DIM, N_HEADS * HEAD_DIM), jnp.float32) * in_std
        wo = jax.random.normal(ks[3], (N_HEADS * HEAD_DIM, DIM), jnp.float32) * in_std
        w1 = jax.random.normal(ks[4], (DIM, HIDDEN_DIM), jnp.float32) * in_std
        w3 = jax.random.normal(ks[5], (DIM, HIDDEN_DIM), jnp.float32) * in_std
        w2 = jax.random.normal(ks[6], (HIDDEN_DIM, DIM), jnp.float32) * out_std
        params.append({
            "wqkv": jnp.concatenate([wq, wk, wv], axis=1),    # (D, 3D)
            "wo": wo,                                         # (D, D)
            "w13": jnp.concatenate([w1, w3], axis=1),         # (D, 2H)
            "w2": w2,                                         # (H, D)
            "attn_norm": jnp.ones((DIM,), jnp.float32),
            "ffn_norm": jnp.ones((DIM,), jnp.float32),
        })
    return params


def stack_params(params):
    return {
        "wqkv": jnp.stack([p["wqkv"] for p in params]),               # (L, D, 3D)
        "wo": jnp.stack([p["wo"] for p in params]),                   # (L, D, D)
        "w13": jnp.stack([p["w13"] for p in params]),                 # (L, D, 2H)
        "w2": jnp.stack([p["w2"] for p in params]),                   # (L, H, D)
        "attn_norm": jnp.stack([p["attn_norm"].reshape(1, DIM) for p in params]),
        "ffn_norm": jnp.stack([p["ffn_norm"].reshape(1, DIM) for p in params]),
    }


# ----------------------------- pure-JAX reference ----------------------------
def _ref_rmsnorm(x, w, eps=EPS):
    xf = x.astype(jnp.float32)
    y = xf * jax.lax.rsqrt(jnp.mean(xf * xf, axis=-1, keepdims=True) + eps)
    return (y * w).astype(x.dtype)


def _ref_apply_rope(x, freq_cis):
    # Original torch convention: interleaved pairs, (S, Dh//2, 2, 2) matrices.
    B, S, H, Dh = x.shape
    x_ = x.reshape(B, S, H, Dh // 2, 1, 2)
    fc = freq_cis.reshape(1, S, 1, Dh // 2, 2, 2)
    return (x_ * fc).sum(axis=5).reshape(B, S, H, Dh).astype(x.dtype)


def _ref_block(x, freq_cis, p):
    B, S, D = x.shape
    wq, wk, wv = p["wqkv"][:, :D], p["wqkv"][:, D:2 * D], p["wqkv"][:, 2 * D:]
    w1, w3 = p["w13"][:, :HIDDEN_DIM], p["w13"][:, HIDDEN_DIM:]
    xn = _ref_rmsnorm(x, p["attn_norm"])
    xq = (xn @ wq).reshape(B, S, N_HEADS, HEAD_DIM)
    xk = (xn @ wk).reshape(B, S, N_HEADS, HEAD_DIM)
    xv = (xn @ wv).reshape(B, S, N_HEADS, HEAD_DIM)
    xq = _ref_apply_rope(xq, freq_cis[:S])
    xk = _ref_apply_rope(xk, freq_cis[:S])
    q, k, v = (jnp.transpose(t, (0, 2, 1, 3)) for t in (xq, xk, xv))
    s = jnp.einsum("bhqd,bhkd->bhqk", q, k) * HEAD_DIM ** -0.5
    pm = jax.nn.softmax(s, axis=-1)
    o = jnp.einsum("bhqk,bhkd->bhqd", pm, v)
    o = jnp.transpose(o, (0, 2, 1, 3)).reshape(B, S, D)
    h = x + o @ p["wo"]
    hn = _ref_rmsnorm(h, p["ffn_norm"])
    a = hn @ w1
    g = a * jax.nn.sigmoid(a) * (hn @ w3)
    return h + g @ p["w2"]


def _ref_transformer(h, params, freq_cis):
    for p in params:
        h = _ref_block(h, freq_cis, p)
    return h


# ----------------------------- main ------------------------------------------
if __name__ == "__main__":
    key = jax.random.PRNGKey(0)
    k_h, k_p = jax.random.split(key)

    B, S = 2, MAX_SEQLEN
    h = jax.random.normal(k_h, (B, S, DIM), dtype=jnp.float32)
    params = init_params(k_p)
    stacked = stack_params(params)

    cos_f, sin_f = build_rope_tables(HEAD_DIM, N_HEADS, MAX_SEQLEN, ROPE_THETA)
    swap = build_swap_matrix(DIM)

    out = jax.jit(base_transformer)(h, stacked, cos_f, sin_f, swap)
    out = jax.block_until_ready(out)

    freq_cis = precompute_freq_cis(HEAD_DIM, MAX_SEQLEN, ROPE_THETA)
    ref = _ref_transformer(h, params, freq_cis)

    assert out.shape == (B, S, DIM)
    max_err = float(jnp.max(jnp.abs(out - ref)))
    assert jnp.allclose(out, ref, atol=1e-3, rtol=1e-3), max_err
    print("KERNEL_OK")
</pallas_src>

<mosaic_0001>
module attributes {stable_mosaic.version = 11 : i64} {
  func.func @_transformer_kernel(%arg0: i32, %arg1: memref<1x8x32xf32, #tpu.memory_space<vmem>>, %arg2: memref<2x1x32xf32, #tpu.memory_space<vmem>>, %arg3: memref<2x1x32xf32, #tpu.memory_space<vmem>>, %arg4: memref<2x32x96xf32, #tpu.memory_space<vmem>>, %arg5: memref<2x32x32xf32, #tpu.memory_space<vmem>>, %arg6: memref<2x32x192xf32, #tpu.memory_space<vmem>>, %arg7: memref<2x96x32xf32, #tpu.memory_space<vmem>>, %arg8: memref<8x32xf32, #tpu.memory_space<vmem>>, %arg9: memref<8x32xf32, #tpu.memory_space<vmem>>, %arg10: memref<32x32xf32, #tpu.memory_space<vmem>>, %arg11: memref<1x8x32xf32, #tpu.memory_space<vmem>>) attributes {dimension_semantics = [#tpu.dimension_semantics<parallel>], iteration_bounds = array<i64: 2>, scalar_prefetch = 0 : i64, scratch_operands = 0 : i64, tpu.core_type = #tpu.core_type<tc>, window_params = [{transform_indices = @transform_0, window_bounds = array<i64: 1, 8, 32>}, {pipeline_mode = #tpu.pipeline_mode<synchronous>, transform_indices = @transform_1, window_bounds = array<i64: 2, 1, 32>}, {pipeline_mode = #tpu.pipeline_mode<synchronous>, transform_indices = @transform_2, window_bounds = array<i64: 2, 1, 32>}, {pipeline_mode = #tpu.pipeline_mode<synchronous>, transform_indices = @transform_3, window_bounds = array<i64: 2, 32, 96>}, {pipeline_mode = #tpu.pipeline_mode<synchronous>, transform_indices = @transform_4, window_bounds = array<i64: 2, 32, 32>}, {pipeline_mode = #tpu.pipeline_mode<synchronous>, transform_indices = @transform_5, window_bounds = array<i64: 2, 32, 192>}, {pipeline_mode = #tpu.pipeline_mode<synchronous>, transform_indices = @transform_6, window_bounds = array<i64: 2, 96, 32>}, {pipeline_mode = #tpu.pipeline_mode<synchronous>, transform_indices = @transform_7, window_bounds = array<i64: 8, 32>}, {pipeline_mode = #tpu.pipeline_mode<synchronous>, transform_indices = @transform_8, window_bounds = array<i64: 8, 32>}, {pipeline_mode = #tpu.pipeline_mode<synchronous>, transform_indices = @transform_9, window_bounds = array<i64: 32, 32>}, {transform_indices = @transform_10, window_bounds = array<i64: 1, 8, 32>}]} {
    %c0 = arith.constant 0 : index
    %c0_0 = arith.constant 0 : index
    %c0_1 = arith.constant 0 : index
    %0 = vector.load %arg1[%c0, %c0_0, %c0_1] : memref<1x8x32xf32, #tpu.memory_space<vmem>>, vector<1x8x32xf32>
    %1 = vector.shape_cast %0 : vector<1x8x32xf32> to vector<8x32xf32>
    %c0_2 = arith.constant 0 : index
    %c0_3 = arith.constant 0 : index
    %2 = vector.load %arg8[%c0_2, %c0_3] : memref<8x32xf32, #tpu.memory_space<vmem>>, vector<8x32xf32>
    %c0_4 = arith.constant 0 : index
    %c0_5 = arith.constant 0 : index
    %3 = vector.load %arg9[%c0_4, %c0_5] : memref<8x32xf32, #tpu.memory_space<vmem>>, vector<8x32xf32>
    %c0_6 = arith.constant 0 : index
    %c0_7 = arith.constant 0 : index
    %4 = vector.load %arg10[%c0_6, %c0_7] : memref<32x32xf32, #tpu.memory_space<vmem>>, vector<32x32xf32>
    %c0_8 = arith.constant 0 : index
    %c0_9 = arith.constant 0 : index
    %c0_10 = arith.constant 0 : index
    %5 = vector.load %arg2[%c0_8, %c0_9, %c0_10] : memref<2x1x32xf32, #tpu.memory_space<vmem>>, vector<1x1x32xf32>
    %6 = vector.shape_cast %5 : vector<1x1x32xf32> to vector<1x32xf32>
    %c0_11 = arith.constant 0 : index
    %c0_12 = arith.constant 0 : index
    %c0_13 = arith.constant 0 : index
    %7 = vector.load %arg3[%c0_11, %c0_12, %c0_13] : memref<2x1x32xf32, #tpu.memory_space<vmem>>, vector<1x1x32xf32>
    %8 = vector.shape_cast %7 : vector<1x1x32xf32> to vector<1x32xf32>
    %c0_14 = arith.constant 0 : index
    %c0_15 = arith.constant 0 : index
    %c0_16 = arith.constant 0 : index
    %9 = vector.load %arg4[%c0_14, %c0_15, %c0_16] : memref<2x32x96xf32, #tpu.memory_space<vmem>>, vector<1x32x96xf32>
    %10 = vector.shape_cast %9 : vector<1x32x96xf32> to vector<32x96xf32>
    %c0_17 = arith.constant 0 : index
    %c0_18 = arith.constant 0 : index
    %c0_19 = arith.constant 0 : index
    %11 = vector.load %arg5[%c0_17, %c0_18, %c0_19] : memref<2x32x32xf32, #tpu.memory_space<vmem>>, vector<1x32x32xf32>
    %12 = vector.shape_cast %11 : vector<1x32x32xf32> to vector<32x32xf32>
    %c0_20 = arith.constant 0 : index
    %c0_21 = arith.constant 0 : index
    %c0_22 = arith.constant 0 : index
    %13 = vector.load %arg6[%c0_20, %c0_21, %c0_22] : memref<2x32x192xf32, #tpu.memory_space<vmem>>, vector<1x32x192xf32>
    %14 = vector.shape_cast %13 : vector<1x32x192xf32> to vector<32x192xf32>
    %c0_23 = arith.constant 0 : index
    %c0_24 = arith.constant 0 : index
    %c0_25 = arith.constant 0 : index
    %15 = vector.load %arg7[%c0_23, %c0_24, %c0_25] : memref<2x96x32xf32, #tpu.memory_space<vmem>>, vector<1x96x32xf32>
    %16 = vector.shape_cast %15 : vector<1x96x32xf32> to vector<96x32xf32>
    %17 = arith.mulf %1, %1 : vector<8x32xf32>
    %cst = arith.constant dense<0.000000e+00> : vector<8xf32>
    %18 = vector.multi_reduction <add>, %17, %cst [1] : vector<8x32xf32> to vector<8xf32>
    %19 = vector.shape_cast %18 : vector<8xf32> to vector<8x1xf32>
    %cst_26 = arith.constant 3.200000e+01 : f32
    %20 = vector.broadcast %cst_26 : f32 to vector<8x1xf32>
    %21 = arith.divf %19, %20 : vector<8x1xf32>
    %cst_27 = arith.constant 9.99999997E-7 : f32
    %22 = vector.broadcast %cst_27 : f32 to vector<8x1xf32>
    %23 = arith.addf %21, %22 : vector<8x1xf32>
    %24 = math.rsqrt %23 : vector<8x1xf32>
    %25 = vector.broadcast %24 : vector<8x1xf32> to vector<8x32xf32>
    %26 = arith.mulf %1, %25 : vector<8x32xf32>
    %27 = vector.broadcast %6 : vector<1x32xf32> to vector<8x32xf32>
    %28 = arith.mulf %26, %27 : vector<8x32xf32>
    %cst_28 = arith.constant dense<0.000000e+00> : vector<8x96xf32>
    %29 = tpu.matmul %28, %10, %cst_28 {dimension_numbers = #tpu.dot_dimension_numbers<[1], [0], [0], [1], [0, 0, 1, 1], [], []>} : vector<8x32xf32>, vector<32x96xf32>, vector<8x96xf32> -> vector<8x96xf32>
    %30 = vector.extract_strided_slice %29 {offsets = [0, 0], sizes = [8, 32], strides = [1, 1]} : vector<8x96xf32> to vector<8x32xf32>
    %31 = vector.extract_strided_slice %29 {offsets = [0, 32], sizes = [8, 32], strides = [1, 1]} : vector<8x96xf32> to vector<8x32xf32>
    %32 = vector.extract_strided_slice %29 {offsets = [0, 64], sizes = [8, 32], strides = [1, 1]} : vector<8x96xf32> to vector<8x32xf32>
    %33 = arith.mulf %30, %2 : vector<8x32xf32>
    %cst_29 = arith.constant dense<0.000000e+00> : vector<8x32xf32>
    %34 = tpu.matmul %30, %4, %cst_29 {dimension_numbers = #tpu.dot_dimension_numbers<[1], [0], [0], [1], [0, 0, 1, 1], [], []>} : vector<8x32xf32>, vector<32x32xf32>, vector<8x32xf32> -> vector<8x32xf32>
    %35 = arith.mulf %34, %3 : vector<8x32xf32>
    %36 = arith.addf %33, %35 : vector<8x32xf32>
    %37 = arith.mulf %31, %2 : vector<8x32xf32>
    %cst_30 = arith.constant dense<0.000000e+00> : vector<8x32xf32>
    %38 = tpu.matmul %31, %4, %cst_30 {dimension_numbers = #tpu.dot_dimension_numbers<[1], [0], [0], [1], [0, 0, 1, 1], [], []>} : vector<8x32xf32>, vector<32x32xf32>, vector<8x32xf32> -> vector<8x32xf32>
    %39 = arith.mulf %38, %3 : vector<8x32xf32>
    %40 = arith.addf %37, %39 : vector<8x32xf32>
    %cst_31 = arith.constant 0.000000e+00 : f32
    %41 = vector.broadcast %cst_31 : f32 to vector<8x32xf32>
    %42 = vector.extract_strided_slice %36 {offsets = [0, 0], sizes = [8, 8], strides = [1, 1]} : vector<8x32xf32> to vector<8x8xf32>
    %43 = vector.extract_strided_slice %40 {offsets = [0, 0], sizes = [8, 8], strides = [1, 1]} : vector<8x32xf32> to vector<8x8xf32>
    %44 = vector.extract_strided_slice %32 {offsets = [0, 0], sizes = [8, 8], strides = [1, 1]} : vector<8x32xf32> to vector<8x8xf32>
    %cst_32 = arith.constant dense<0.000000e+00> : vector<8x8xf32>
    %45 = tpu.matmul %42, %43, %cst_32 {dimension_numbers = #tpu.dot_dimension_numbers<[1], [1], [0], [0], [0, 0, 1, 0], [], []>} : vector<8x8xf32>, vector<8x8xf32>, vector<8x8xf32> -> vector<8x8xf32>
    %cst_33 = arith.constant 0.353553385 : f32
    %46 = vector.broadcast %cst_33 : f32 to vector<8x8xf32>
    %47 = arith.mulf %45, %46 : vector<8x8xf32>
    %cst_34 = arith.constant dense<0xFF800000> : vector<8xf32>
    %48 = vector.multi_reduction <maximumf>, %47, %cst_34 [1] : vector<8x8xf32> to vector<8xf32>
    %49 = vector.shape_cast %48 : vector<8xf32> to vector<8x1xf32>
    %50 = vector.broadcast %49 : vector<8x1xf32> to vector<8x8xf32>
    %51 = arith.subf %47, %50 : vector<8x8xf32>
    %52 = math.exp %51 : vector<8x8xf32>
    %cst_35 = arith.constant dense<0.000000e+00> : vector<8xf32>
    %53 = vector.multi_reduction <add>, %52, %cst_35 [1] : vector<8x8xf32> to vector<8xf32>
    %54 = vector.shape_cast %53 : vector<8xf32> to vector<8x1xf32>
    %55 = tpu.reciprocal %54 : vector<8x1xf32> -> vector<8x1xf32>
    %56 = vector.broadcast %55 : vector<8x1xf32> to vector<8x8xf32>
    %57 = arith.mulf %52, %56 : vector<8x8xf32>
    %cst_36 = arith.constant dense<0.000000e+00> : vector<8x8xf32>
    %58 = tpu.matmul %57, %44, %cst_36 {dimension_numbers = #tpu.dot_dimension_numbers<[1], [0], [0], [1], [0, 0, 1, 1], [], []>} : vector<8x8xf32>, vector<8x8xf32>, vector<8x8xf32> -> vector<8x8xf32>
    %59 = vector.extract_strided_slice %12 {offsets = [0, 0], sizes = [8, 32], strides = [1, 1]} : vector<32x32xf32> to vector<8x32xf32>
    %cst_37 = arith.constant dense<0.000000e+00> : vector<8x32xf32>
    %60 = tpu.matmul %58, %59, %cst_37 {dimension_numbers = #tpu.dot_dimension_numbers<[1], [0], [0], [1], [0, 0, 1, 1], [], []>} : vector<8x8xf32>, vector<8x32xf32>, vector<8x32xf32> -> vector<8x32xf32>
    %61 = arith.addf %41, %60 : vector<8x32xf32>
    %62 = vector.extract_strided_slice %36 {offsets = [0, 8], sizes = [8, 8], strides = [1, 1]} : vector<8x32xf32> to vector<8x8xf32>
    %63 = vector.extract_strided_slice %40 {offsets = [0, 8], sizes = [8, 8], strides = [1, 1]} : vector<8x32xf32> to vector<8x8xf32>
    %64 = vector.extract_strided_slice %32 {offsets = [0, 8], sizes = [8, 8], strides = [1, 1]} : vector<8x32xf32> to vector<8x8xf32>
    %cst_38 = arith.constant dense<0.000000e+00> : vector<8x8xf32>
    %65 = tpu.matmul %62, %63, %cst_38 {dimension_numbers = #tpu.dot_dimension_numbers<[1], [1], [0], [0], [0, 0, 1, 0], [], []>} : vector<8x8xf32>, vector<8x8xf32>, vector<8x8xf32> -> vector<8x8xf32>
    %cst_39 = arith.constant 0.353553385 : f32
    %66 = vector.broadcast %cst_39 : f32 to vector<8x8xf32>
    %67 = arith.mulf %65, %66 : vector<8x8xf32>
    %cst_40 = arith.constant dense<0xFF800000> : vector<8xf32>
    %68 = vector.multi_reduction <maximumf>, %67, %cst_40 [1] : vector<8x8xf32> to vector<8xf32>
    %69 = vector.shape_cast %68 : vector<8xf32> to vector<8x1xf32>
    %70 = vector.broadcast %69 : vector<8x1xf32> to vector<8x8xf32>
    %71 = arith.subf %67, %70 : vector<8x8xf32>
    %72 = math.exp %71 : vector<8x8xf32>
    %cst_41 = arith.constant dense<0.000000e+00> : vector<8xf32>
    %73 = vector.multi_reduction <add>, %72, %cst_41 [1] : vector<8x8xf32> to vector<8xf32>
    %74 = vector.shape_cast %73 : vector<8xf32> to vector<8x1xf32>
    %75 = tpu.reciprocal %74 : vector<8x1xf32> -> vector<8x1xf32>
    %76 = vector.broadcast %75 : vector<8x1xf32> to vector<8x8xf32>
    %77 = arith.mulf %72, %76 : vector<8x8xf32>
    %cst_42 = arith.constant dense<0.000000e+00> : vector<8x8xf32>
    %78 = tpu.matmul %77, %64, %cst_42 {dimension_numbers = #tpu.dot_dimension_numbers<[1], [0], [0], [1], [0, 0, 1, 1], [], []>} : vector<8x8xf32>, vector<8x8xf32>, vector<8x8xf32> -> vector<8x8xf32>
    %79 = vector.extract_strided_slice %12 {offsets = [8, 0], sizes = [8, 32], strides = [1, 1]} : vector<32x32xf32> to vector<8x32xf32>
    %cst_43 = arith.constant dense<0.000000e+00> : vector<8x32xf32>
    %80 = tpu.matmul %78, %79, %cst_43 {dimension_numbers = #tpu.dot_dimension_numbers<[1], [0], [0], [1], [0, 0, 1, 1], [], []>} : vector<8x8xf32>, vector<8x32xf32>, vector<8x32xf32> -> vector<8x32xf32>
    %81 = arith.addf %61, %80 : vector<8x32xf32>
    %82 = vector.extract_strided_slice %36 {offsets = [0, 16], sizes = [8, 8], strides = [1, 1]} : vector<8x32xf32> to vector<8x8xf32>
    %83 = vector.extract_strided_slice %40 {offsets = [0, 16], sizes = [8, 8], strides = [1, 1]} : vector<8x32xf32> to vector<8x8xf32>
    %84 = vector.extract_strided_slice %32 {offsets = [0, 16], sizes = [8, 8], strides = [1, 1]} : vector<8x32xf32> to vector<8x8xf32>
    %cst_44 = arith.constant dense<0.000000e+00> : vector<8x8xf32>
    %85 = tpu.matmul %82, %83, %cst_44 {dimension_numbers = #tpu.dot_dimension_numbers<[1], [1], [0], [0], [0, 0, 1, 0], [], []>} : vector<8x8xf32>, vector<8x8xf32>, vector<8x8xf32> -> vector<8x8xf32>
    %cst_45 = arith.constant 0.353553385 : f32
    %86 = vector.broadcast %cst_45 : f32 to vector<8x8xf32>
    %87 = arith.mulf %85, %86 : vector<8x8xf32>
    %cst_46 = arith.constant dense<0xFF800000> : vector<8xf32>
    %88 = vector.multi_reduction <maximumf>, %87, %cst_46 [1] : vector<8x8xf32> to vector<8xf32>
    %89 = vector.shape_cast %88 : vector<8xf32> to vector<8x1xf32>
    %90 = vector.broadcast %89 : vector<8x1xf32> to vector<8x8xf32>
    %91 = arith.subf %87, %90 : vector<8x8xf32>
    %92 = math.exp %91 : vector<8x8xf32>
    %cst_47 = arith.constant dense<0.000000e+00> : vector<8xf32>
    %93 = vector.multi_reduction <add>, %92, %cst_47 [1] : vector<8x8xf32> to vector<8xf32>
    %94 = vector.shape_cast %93 : vector<8xf32> to vector<8x1xf32>
    %95 = tpu.reciprocal %94 : vector<8x1xf32> -> vector<8x1xf32>
    %96 = vector.broadcast %95 : vector<8x1xf32> to vector<8x8xf32>
    %97 = arith.mulf %92, %96 : vector<8x8xf32>
    %cst_48 = arith.constant dense<0.000000e+00> : vector<8x8xf32>
    %98 = tpu.matmul %97, %84, %cst_48 {dimension_numbers = #tpu.dot_dimension_numbers<[1], [0], [0], [1], [0, 0, 1, 1], [], []>} : vector<8x8xf32>, vector<8x8xf32>, vector<8x8xf32> -> vector<8x8xf32>
    %99 = vector.extract_strided_slice %12 {offsets = [16, 0], sizes = [8, 32], strides = [1, 1]} : vector<32x32xf32> to vector<8x32xf32>
    %cst_49 = arith.constant dense<0.000000e+00> : vector<8x32xf32>
    %100 = tpu.matmul %98, %99, %cst_49 {dimension_numbers = #tpu.dot_dimension_numbers<[1], [0], [0], [1], [0, 0, 1, 1], [], []>} : vector<8x8xf32>, vector<8x32xf32>, vector<8x32xf32> -> vector<8x32xf32>
    %101 = arith.addf %81, %100 : vector<8x32xf32>
    %102 = vector.extract_strided_slice %36 {offsets = [0, 24], sizes = [8, 8], strides = [1, 1]} : vector<8x32xf32> to vector<8x8xf32>
    %103 = vector.extract_strided_slice %40 {offsets = [0, 24], sizes = [8, 8], strides = [1, 1]} : vector<8x32xf32> to vector<8x8xf32>
    %104 = vector.extract_strided_slice %32 {offsets = [0, 24], sizes = [8, 8], strides = [1, 1]} : vector<8x32xf32> to vector<8x8xf32>
    %cst_50 = arith.constant dense<0.000000e+00> : vector<8x8xf32>
    %105 = tpu.matmul %102, %103, %cst_50 {dimension_numbers = #tpu.dot_dimension_numbers<[1], [1], [0], [0], [0, 0, 1, 0], [], []>} : vector<8x8xf32>, vector<8x8xf32>, vector<8x8xf32> -> vector<8x8xf32>
    %cst_51 = arith.constant 0.353553385 : f32
    %106 = vector.broadcast %cst_51 : f32 to vector<8x8xf32>
    %107 = arith.mulf %105, %106 : vector<8x8xf32>
    %cst_52 = arith.constant dense<0xFF800000> : vector<8xf32>
    %108 = vector.multi_reduction <maximumf>, %107, %cst_52 [1] : vector<8x8xf32> to vector<8xf32>
    %109 = vector.shape_cast %108 : vector<8xf32> to vector<8x1xf32>
    %110 = vector.broadcast %109 : vector<8x1xf32> to vector<8x8xf32>
    %111 = arith.subf %107, %110 : vector<8x8xf32>
    %112 = math.exp %111 : vector<8x8xf32>
    %cst_53 = arith.constant dense<0.000000e+00> : vector<8xf32>
    %113 = vector.multi_reduction <add>, %112, %cst_53 [1] : vector<8x8xf32> to vector<8xf32>
    %114 = vector.shape_cast %113 : vector<8xf32> to vector<8x1xf32>
    %115 = tpu.reciprocal %114 : vector<8x1xf32> -> vector<8x1xf32>
    %116 = vector.broadcast %115 : vector<8x1xf32> to vector<8x8xf32>
    %117 = arith.mulf %112, %116 : vector<8x8xf32>
    %cst_54 = arith.constant dense<0.000000e+00> : vector<8x8xf32>
    %118 = tpu.matmul %117, %104, %cst_54 {dimension_numbers = #tpu.dot_dimension_numbers<[1], [0], [0], [1], [0, 0, 1, 1], [], []>} : vector<8x8xf32>, vector<8x8xf32>, vector<8x8xf32> -> vector<8x8xf32>
    %119 = vector.extract_strided_slice %12 {offsets = [24, 0], sizes = [8, 32], strides = [1, 1]} : vector<32x32xf32> to vector<8x32xf32>
    %cst_55 = arith.constant dense<0.000000e+00> : vector<8x32xf32>
    %120 = tpu.matmul %118, %119, %cst_55 {dimension_numbers = #tpu.dot_dimension_numbers<[1], [0], [0], [1], [0, 0, 1, 1], [], []>} : vector<8x8xf32>, vector<8x32xf32>, vector<8x32xf32> -> vector<8x32xf32>
    %121 = arith.addf %101, %120 : vector<8x32xf32>
    %122 = arith.addf %1, %121 : vector<8x32xf32>
    %123 = arith.mulf %122, %122 : vector<8x32xf32>
    %cst_56 = arith.constant dense<0.000000e+00> : vector<8xf32>
    %124 = vector.multi_reduction <add>, %123, %cst_56 [1] : vector<8x32xf32> to vector<8xf32>
    %125 = vector.shape_cast %124 : vector<8xf32> to vector<8x1xf32>
    %cst_57 = arith.constant 3.200000e+01 : f32
    %126 = vector.broadcast %cst_57 : f32 to vector<8x1xf32>
    %127 = arith.divf %125, %126 : vector<8x1xf32>
    %cst_58 = arith.constant 9.99999997E-7 : f32
    %128 = vector.broadcast %cst_58 : f32 to vector<8x1xf32>
    %129 = arith.addf %127, %128 : vector<8x1xf32>
    %130 = math.rsqrt %129 : vector<8x1xf32>
    %131 = vector.broadcast %130 : vector<8x1xf32> to vector<8x32xf32>
    %132 = arith.mulf %122, %131 : vector<8x32xf32>
    %133 = vector.broadcast %8 : vector<1x32xf32> to vector<8x32xf32>
    %134 = arith.mulf %132, %133 : vector<8x32xf32>
    %cst_59 = arith.constant dense<0.000000e+00> : vector<8x192xf32>
    %135 = tpu.matmul %134, %14, %cst_59 {dimension_numbers = #tpu.dot_dimension_numbers<[1], [0], [0], [1], [0, 0, 1, 1], [], []>} : vector<8x32xf32>, vector<32x192xf32>, vector<8x192xf32> -> vector<8x192xf32>
    %136 = vector.extract_strided_slice %135 {offsets = [0, 0], sizes = [8, 96], strides = [1, 1]} : vector<8x192xf32> to vector<8x96xf32>
    %137 = vector.extract_strided_slice %135 {offsets = [0, 96], sizes = [8, 96], strides = [1, 1]} : vector<8x192xf32> to vector<8x96xf32>
    %138 = arith.negf %136 : vector<8x96xf32>
    %139 = math.exp %138 : vector<8x96xf32>
    %cst_60 = arith.constant 1.000000e+00 : f32
    %140 = vector.broadcast %cst_60 : f32 to vector<8x96xf32>
    %141 = arith.addf %140, %139 : vector<8x96xf32>
    %142 = arith.divf %140, %141 : vector<8x96xf32>
    %143 = arith.mulf %136, %142 : vector<8x96xf32>
    %144 = arith.mulf %143, %137 : vector<8x96xf32>
    %cst_61 = arith.constant dense<0.000000e+00> : vector<8x32xf32>
    %145 = tpu.matmul %144, %16, %cst_61 {dimension_numbers = #tpu.dot_dimension_numbers<[1], [0], [0], [1], [0, 0, 1, 1], [], []>} : vector<8x96xf32>, vector<96x32xf32>, vector<8x32xf32> -> vector<8x32xf32>
    %146 = arith.addf %122, %145 : vector<8x32xf32>
    %c1 = arith.constant 1 : index
    %c0_62 = arith.constant 0 : index
    %c0_63 = arith.constant 0 : index
    %147 = vector.load %arg2[%c1, %c0_62, %c0_63] : memref<2x1x32xf32, #tpu.memory_space<vmem>>, vector<1x1x32xf32>
    %148 = vector.shape_cast %147 : vector<1x1x32xf32> to vector<1x32xf32>
    %c1_64 = arith.constant 1 : index
    %c0_65 = arith.constant 0 : index
    %c0_66 = arith.constant 0 : index
    %149 = vector.load %arg3[%c1_64, %c0_65, %c0_66] : memref<2x1x32xf32, #tpu.memory_space<vmem>>, vector<1x1x32xf32>
    %150 = vector.shape_cast %149 : vector<1x1x32xf32> to vector<1x32xf32>
    %c1_67 = arith.constant 1 : index
    %c0_68 = arith.constant 0 : index
    %c0_69 = arith.constant 0 : index
    %151 = vector.load %arg4[%c1_67, %c0_68, %c0_69] : memref<2x32x96xf32, #tpu.memory_space<vmem>>, vector<1x32x96xf32>
    %152 = vector.shape_cast %151 : vector<1x32x96xf32> to vector<32x96xf32>
    %c1_70 = arith.constant 1 : index
    %c0_71 = arith.constant 0 : index
    %c0_72 = arith.constant 0 : index
    %153 = vector.load %arg5[%c1_70, %c0_71, %c0_72] : memref<2x32x32xf32, #tpu.memory_space<vmem>>, vector<1x32x32xf32>
    %154 = vector.shape_cast %153 : vector<1x32x32xf32> to vector<32x32xf32>
    %c1_73 = arith.constant 1 : index
    %c0_74 = arith.constant 0 : index
    %c0_75 = arith.constant 0 : index
    %155 = vector.load %arg6[%c1_73, %c0_74, %c0_75] : memref<2x32x192xf32, #tpu.memory_space<vmem>>, vector<1x32x192xf32>
    %156 = vector.shape_cast %155 : vector<1x32x192xf32> to vector<32x192xf32>
    %c1_76 = arith.constant 1 : index
    %c0_77 = arith.constant 0 : index
    %c0_78 = arith.constant 0 : index
    %157 = vector.load %arg7[%c1_76, %c0_77, %c0_78] : memref<2x96x32xf32, #tpu.memory_space<vmem>>, vector<1x96x32xf32>
    %158 = vector.shape_cast %157 : vector<1x96x32xf32> to vector<96x32xf32>
    %159 = arith.mulf %146, %146 : vector<8x32xf32>
    %cst_79 = arith.constant dense<0.000000e+00> : vector<8xf32>
    %160 = vector.multi_reduction <add>, %159, %cst_79 [1] : vector<8x32xf32> to vector<8xf32>
    %161 = vector.shape_cast %160 : vector<8xf32> to vector<8x1xf32>
    %cst_80 = arith.constant 3.200000e+01 : f32
    %162 = vector.broadcast %cst_80 : f32 to vector<8x1xf32>
    %163 = arith.divf %161, %162 : vector<8x1xf32>
    %cst_81 = arith.constant 9.99999997E-7 : f32
    %164 = vector.broadcast %cst_81 : f32 to vector<8x1xf32>
    %165 = arith.addf %163, %164 : vector<8x1xf32>
    %166 = math.rsqrt %165 : vector<8x1xf32>
    %167 = vector.broadcast %166 : vector<8x1xf32> to vector<8x32xf32>
    %168 = arith.mulf %146, %167 : vector<8x32xf32>
    %169 = vector.broadcast %148 : vector<1x32xf32> to vector<8x32xf32>
    %170 = arith.mulf %168, %169 : vector<8x32xf32>
    %cst_82 = arith.constant dense<0.000000e+00> : vector<8x96xf32>
    %171 = tpu.matmul %170, %152, %cst_82 {dimension_numbers = #tpu.dot_dimension_numbers<[1], [0], [0], [1], [0, 0, 1, 1], [], []>} : vector<8x32xf32>, vector<32x96xf32>, vector<8x96xf32> -> vector<8x96xf32>
    %172 = vector.extract_strided_slice %171 {offsets = [0, 0], sizes = [8, 32], strides = [1, 1]} : vector<8x96xf32> to vector<8x32xf32>
    %173 = vector.extract_strided_slice %171 {offsets = [0, 32], sizes = [8, 32], strides = [1, 1]} : vector<8x96xf32> to vector<8x32xf32>
    %174 = vector.extract_strided_slice %171 {offsets = [0, 64], sizes = [8, 32], strides = [1, 1]} : vector<8x96xf32> to vector<8x32xf32>
    %175 = arith.mulf %172, %2 : vector<8x32xf32>
    %cst_83 = arith.constant dense<0.000000e+00> : vector<8x32xf32>
    %176 = tpu.matmul %172, %4, %cst_83 {dimension_numbers = #tpu.dot_dimension_numbers<[1], [0], [0], [1], [0, 0, 1, 1], [], []>} : vector<8x32xf32>, vector<32x32xf32>, vector<8x32xf32> -> vector<8x32xf32>
    %177 = arith.mulf %176, %3 : vector<8x32xf32>
    %178 = arith.addf %175, %177 : vector<8x32xf32>
    %179 = arith.mulf %173, %2 : vector<8x32xf32>
    %cst_84 = arith.constant dense<0.000000e+00> : vector<8x32xf32>
    %180 = tpu.matmul %173, %4, %cst_84 {dimension_numbers = #tpu.dot_dimension_numbers<[1], [0], [0], [1], [0, 0, 1, 1], [], []>} : vector<8x32xf32>, vector<32x32xf32>, vector<8x32xf32> -> vector<8x32xf32>
    %181 = arith.mulf %180, %3 : vector<8x32xf32>
    %182 = arith.addf %179, %181 : vector<8x32xf32>
    %cst_85 = arith.constant 0.000000e+00 : f32
    %183 = vector.broadcast %cst_85 : f32 to vector<8x32xf32>
    %184 = vector.extract_strided_slice %178 {offsets = [0, 0], sizes = [8, 8], strides = [1, 1]} : vector<8x32xf32> to vector<8x8xf32>
    %185 = vector.extract_strided_slice %182 {offsets = [0, 0], sizes = [8, 8], strides = [1, 1]} : vector<8x32xf32> to vector<8x8xf32>
    %186 = vector.extract_strided_slice %174 {offsets = [0, 0], sizes = [8, 8], strides = [1, 1]} : vector<8x32xf32> to vector<8x8xf32>
    %cst_86 = arith.constant dense<0.000000e+00> : vector<8x8xf32>
    %187 = tpu.matmul %184, %185, %cst_86 {dimension_numbers = #tpu.dot_dimension_numbers<[1], [1], [0], [0], [0, 0, 1, 0], [], []>} : vector<8x8xf32>, vector<8x8xf32>, vector<8x8xf32> -> vector<8x8xf32>
    %cst_87 = arith.constant 0.353553385 : f32
    %188 = vector.broadcast %cst_87 : f32 to vector<8x8xf32>
    %189 = arith.mulf %187, %188 : vector<8x8xf32>
    %cst_88 = arith.constant dense<0xFF800000> : vector<8xf32>
    %190 = vector.multi_reduction <maximumf>, %189, %cst_88 [1] : vector<8x8xf32> to vector<8xf32>
    %191 = vector.shape_cast %190 : vector<8xf32> to vector<8x1xf32>
    %192 = vector.broadcast %191 : vector<8x1xf32> to vector<8x8xf32>
    %193 = arith.subf %189, %192 : vector<8x8xf32>
    %194 = math.exp %193 : vector<8x8xf32>
    %cst_89 = arith.constant dense<0.000000e+00> : vector<8xf32>
    %195 = vector.multi_reduction <add>, %194, %cst_89 [1] : vector<8x8xf32> to vector<8xf32>
    %196 = vector.shape_cast %195 : vector<8xf32> to vector<8x1xf32>
    %197 = tpu.reciprocal %196 : vector<8x1xf32> -> vector<8x1xf32>
    %198 = vector.broadcast %197 : vector<8x1xf32> to vector<8x8xf32>
    %199 = arith.mulf %194, %198 : vector<8x8xf32>
    %cst_90 = arith.constant dense<0.000000e+00> : vector<8x8xf32>
    %200 = tpu.matmul %199, %186, %cst_90 {dimension_numbers = #tpu.dot_dimension_numbers<[1], [0], [0], [1], [0, 0, 1, 1], [], []>} : vector<8x8xf32>, vector<8x8xf32>, vector<8x8xf32> -> vector<8x8xf32>
    %201 = vector.extract_strided_slice %154 {offsets = [0, 0], sizes = [8, 32], strides = [1, 1]} : vector<32x32xf32> to vector<8x32xf32>
    %cst_91 = arith.constant dense<0.000000e+00> : vector<8x32xf32>
    %202 = tpu.matmul %200, %201, %cst_91 {dimension_numbers = #tpu.dot_dimension_numbers<[1], [0], [0], [1], [0, 0, 1, 1], [], []>} : vector<8x8xf32>, vector<8x32xf32>, vector<8x32xf32> -> vector<8x32xf32>
    %203 = arith.addf %183, %202 : vector<8x32xf32>
    %204 = vector.extract_strided_slice %178 {offsets = [0, 8], sizes = [8, 8], strides = [1, 1]} : vector<8x32xf32> to vector<8x8xf32>
    %205 = vector.extract_strided_slice %182 {offsets = [0, 8], sizes = [8, 8], strides = [1, 1]} : vector<8x32xf32> to vector<8x8xf32>
    %206 = vector.extract_strided_slice %174 {offsets = [0, 8], sizes = [8, 8], strides = [1, 1]} : vector<8x32xf32> to vector<8x8xf32>
    %cst_92 = arith.constant dense<0.000000e+00> : vector<8x8xf32>
    %207 = tpu.matmul %204, %205, %cst_92 {dimension_numbers = #tpu.dot_dimension_numbers<[1], [1], [0], [0], [0, 0, 1, 0], [], []>} : vector<8x8xf32>, vector<8x8xf32>, vector<8x8xf32> -> vector<8x8xf32>
    %cst_93 = arith.constant 0.353553385 : f32
    %208 = vector.broadcast %cst_93 : f32 to vector<8x8xf32>
    %209 = arith.mulf %207, %208 : vector<8x8xf32>
    %cst_94 = arith.constant dense<0xFF800000> : vector<8xf32>
    %210 = vector.multi_reduction <maximumf>, %209, %cst_94 [1] : vector<8x8xf32> to vector<8xf32>
    %211 = vector.shape_cast %210 : vector<8xf32> to vector<8x1xf32>
    %212 = vector.broadcast %211 : vector<8x1xf32> to vector<8x8xf32>
    %213 = arith.subf %209, %212 : vector<8x8xf32>
    %214 = math.exp %213 : vector<8x8xf32>
    %cst_95 = arith.constant dense<0.000000e+00> : vector<8xf32>
    %215 = vector.multi_reduction <add>, %214, %cst_95 [1] : vector<8x8xf32> to vector<8xf32>
    %216 = vector.shape_cast %215 : vector<8xf32> to vector<8x1xf32>
    %217 = tpu.reciprocal %216 : vector<8x1xf32> -> vector<8x1xf32>
    %218 = vector.broadcast %217 : vector<8x1xf32> to vector<8x8xf32>
    %219 = arith.mulf %214, %218 : vector<8x8xf32>
    %cst_96 = arith.constant dense<0.000000e+00> : vector<8x8xf32>
    %220 = tpu.matmul %219, %206, %cst_96 {dimension_numbers = #tpu.dot_dimension_numbers<[1], [0], [0], [1], [0, 0, 1, 1], [], []>} : vector<8x8xf32>, vector<8x8xf32>, vector<8x8xf32> -> vector<8x8xf32>
    %221 = vector.extract_strided_slice %154 {offsets = [8, 0], sizes = [8, 32], strides = [1, 1]} : vector<32x32xf32> to vector<8x32xf32>
    %cst_97 = arith.constant dense<0.000000e+00> : vector<8x32xf32>
    %222 = tpu.matmul %220, %221, %cst_97 {dimension_numbers = #tpu.dot_dimension_numbers<[1], [0], [0], [1], [0, 0, 1, 1], [], []>} : vector<8x8xf32>, vector<8x32xf32>, vector<8x32xf32> -> vector<8x32xf32>
    %223 = arith.addf %203, %222 : vector<8x32xf32>
    %224 = vector.extract_strided_slice %178 {offsets = [0, 16], sizes = [8, 8], strides = [1, 1]} : vector<8x32xf32> to vector<8x8xf32>
    %225 = vector.extract_strided_slice %182 {offsets = [0, 16], sizes = [8, 8], strides = [1, 1]} : vector<8x32xf32> to vector<8x8xf32>
    %226 = vector.extract_strided_slice %174 {offsets = [0, 16], sizes = [8, 8], strides = [1, 1]} : vector<8x32xf32> to vector<8x8xf32>
    %cst_98 = arith.constant dense<0.000000e+00> : vector<8x8xf32>
    %227 = tpu.matmul %224, %225, %cst_98 {dimension_numbers = #tpu.dot_dimension_numbers<[1], [1], [0], [0], [0, 0, 1, 0], [], []>} : vector<8x8xf32>, vector<8x8xf32>, vector<8x8xf32> -> vector<8x8xf32>
    %cst_99 = arith.constant 0.353553385 : f32
    %228 = vector.broadcast %cst_99 : f32 to vector<8x8xf32>
    %229 = arith.mulf %227, %228 : vector<8x8xf32>
    %cst_100 = arith.constant dense<0xFF800000> : vector<8xf32>
    %230 = vector.multi_reduction <maximumf>, %229, %cst_100 [1] : vector<8x8xf32> to vector<8xf32>
    %231 = vector.shape_cast %230 : vector<8xf32> to vector<8x1xf32>
    %232 = vector.broadcast %231 : vector<8x1xf32> to vector<8x8xf32>
    %233 = arith.subf %229, %232 : vector<8x8xf32>
    %234 = math.exp %233 : vector<8x8xf32>
    %cst_101 = arith.constant dense<0.000000e+00> : vector<8xf32>
    %235 = vector.multi_reduction <add>, %234, %cst_101 [1] : vector<8x8xf32> to vector<8xf32>
    %236 = vector.shape_cast %235 : vector<8xf32> to vector<8x1xf32>
    %237 = tpu.reciprocal %236 : vector<8x1xf32> -> vector<8x1xf32>
    %238 = vector.broadcast %237 : vector<8x1xf32> to vector<8x8xf32>
    %239 = arith.mulf %234, %238 : vector<8x8xf32>
    %cst_102 = arith.constant dense<0.000000e+00> : vector<8x8xf32>
    %240 = tpu.matmul %239, %226, %cst_102 {dimension_numbers = #tpu.dot_dimension_numbers<[1], [0], [0], [1], [0, 0, 1, 1], [], []>} : vector<8x8xf32>, vector<8x8xf32>, vector<8x8xf32> -> vector<8x8xf32>
    %241 = vector.extract_strided_slice %154 {offsets = [16, 0], sizes = [8, 32], strides = [1, 1]} : vector<32x32xf32> to vector<8x32xf32>
    %cst_103 = arith.constant dense<0.000000e+00> : vector<8x32xf32>
    %242 = tpu.matmul %240, %241, %cst_103 {dimension_numbers = #tpu.dot_dimension_numbers<[1], [0], [0], [1], [0, 0, 1, 1], [], []>} : vector<8x8xf32>, vector<8x32xf32>, vector<8x32xf32> -> vector<8x32xf32>
    %243 = arith.addf %223, %242 : vector<8x32xf32>
    %244 = vector.extract_strided_slice %178 {offsets = [0, 24], sizes = [8, 8], strides = [1, 1]} : vector<8x32xf32> to vector<8x8xf32>
    %245 = vector.extract_strided_slice %182 {offsets = [0, 24], sizes = [8, 8], strides = [1, 1]} : vector<8x32xf32> to vector<8x8xf32>
    %246 = vector.extract_strided_slice %174 {offsets = [0, 24], sizes = [8, 8], strides = [1, 1]} : vector<8x32xf32> to vector<8x8xf32>
    %cst_104 = arith.constant dense<0.000000e+00> : vector<8x8xf32>
    %247 = tpu.matmul %244, %245, %cst_104 {dimension_numbers = #tpu.dot_dimension_numbers<[1], [1], [0], [0], [0, 0, 1, 0], [], []>} : vector<8x8xf32>, vector<8x8xf32>, vector<8x8xf32> -> vector<8x8xf32>
    %cst_105 = arith.constant 0.353553385 : f32
    %248 = vector.broadcast %cst_105 : f32 to vector<8x8xf32>
    %249 = arith.mulf %247, %248 : vector<8x8xf32>
    %cst_106 = arith.constant dense<0xFF800000> : vector<8xf32>
    %250 = vector.multi_reduction <maximumf>, %249, %cst_106 [1] : vector<8x8xf32> to vector<8xf32>
    %251 = vector.shape_cast %250 : vector<8xf32> to vector<8x1xf32>
    %252 = vector.broadcast %251 : vector<8x1xf32> to vector<8x8xf32>
    %253 = arith.subf %249, %252 : vector<8x8xf32>
    %254 = math.exp %253 : vector<8x8xf32>
    %cst_107 = arith.constant dense<0.000000e+00> : vector<8xf32>
    %255 = vector.multi_reduction <add>, %254, %cst_107 [1] : vector<8x8xf32> to vector<8xf32>
    %256 = vector.shape_cast %255 : vector<8xf32> to vector<8x1xf32>
    %257 = tpu.reciprocal %256 : vector<8x1xf32> -> vector<8x1xf32>
    %258 = vector.broadcast %257 : vector<8x1xf32> to vector<8x8xf32>
    %259 = arith.mulf %254, %258 : vector<8x8xf32>
    %cst_108 = arith.constant dense<0.000000e+00> : vector<8x8xf32>
    %260 = tpu.matmul %259, %246, %cst_108 {dimension_numbers = #tpu.dot_dimension_numbers<[1], [0], [0], [1], [0, 0, 1, 1], [], []>} : vector<8x8xf32>, vector<8x8xf32>, vector<8x8xf32> -> vector<8x8xf32>
    %261 = vector.extract_strided_slice %154 {offsets = [24, 0], sizes = [8, 32], strides = [1, 1]} : vector<32x32xf32> to vector<8x32xf32>
    %cst_109 = arith.constant dense<0.000000e+00> : vector<8x32xf32>
    %262 = tpu.matmul %260, %261, %cst_109 {dimension_numbers = #tpu.dot_dimension_numbers<[1], [0], [0], [1], [0, 0, 1, 1], [], []>} : vector<8x8xf32>, vector<8x32xf32>, vector<8x32xf32> -> vector<8x32xf32>
    %263 = arith.addf %243, %262 : vector<8x32xf32>
    %264 = arith.addf %146, %263 : vector<8x32xf32>
    %265 = arith.mulf %264, %264 : vector<8x32xf32>
    %cst_110 = arith.constant dense<0.000000e+00> : vector<8xf32>
    %266 = vector.multi_reduction <add>, %265, %cst_110 [1] : vector<8x32xf32> to vector<8xf32>
    %267 = vector.shape_cast %266 : vector<8xf32> to vector<8x1xf32>
    %cst_111 = arith.constant 3.200000e+01 : f32
    %268 = vector.broadcast %cst_111 : f32 to vector<8x1xf32>
    %269 = arith.divf %267, %268 : vector<8x1xf32>
    %cst_112 = arith.constant 9.99999997E-7 : f32
    %270 = vector.broadcast %cst_112 : f32 to vector<8x1xf32>
    %271 = arith.addf %269, %270 : vector<8x1xf32>
    %272 = math.rsqrt %271 : vector<8x1xf32>
    %273 = vector.broadcast %272 : vector<8x1xf32> to vector<8x32xf32>
    %274 = arith.mulf %264, %273 : vector<8x32xf32>
    %275 = vector.broadcast %150 : vector<1x32xf32> to vector<8x32xf32>
    %276 = arith.mulf %274, %275 : vector<8x32xf32>
    %cst_113 = arith.constant dense<0.000000e+00> : vector<8x192xf32>
    %277 = tpu.matmul %276, %156, %cst_113 {dimension_numbers = #tpu.dot_dimension_numbers<[1], [0], [0], [1], [0, 0, 1, 1], [], []>} : vector<8x32xf32>, vector<32x192xf32>, vector<8x192xf32> -> vector<8x192xf32>
    %278 = vector.extract_strided_slice %277 {offsets = [0, 0], sizes = [8, 96], strides = [1, 1]} : vector<8x192xf32> to vector<8x96xf32>
    %279 = vector.extract_strided_slice %277 {offsets = [0, 96], sizes = [8, 96], strides = [1, 1]} : vector<8x192xf32> to vector<8x96xf32>
    %280 = arith.negf %278 : vector<8x96xf32>
    %281 = math.exp %280 : vector<8x96xf32>
    %cst_114 = arith.constant 1.000000e+00 : f32
    %282 = vector.broadcast %cst_114 : f32 to vector<8x96xf32>
    %283 = arith.addf %282, %281 : vector<8x96xf32>
    %284 = arith.divf %282, %283 : vector<8x96xf32>
    %285 = arith.mulf %278, %284 : vector<8x96xf32>
    %286 = arith.mulf %285, %279 : vector<8x96xf32>
    %cst_115 = arith.constant dense<0.000000e+00> : vector<8x32xf32>
    %287 = tpu.matmul %286, %158, %cst_115 {dimension_numbers = #tpu.dot_dimension_numbers<[1], [0], [0], [1], [0, 0, 1, 1], [], []>} : vector<8x96xf32>, vector<96x32xf32>, vector<8x32xf32> -> vector<8x32xf32>
    %288 = arith.addf %264, %287 : vector<8x32xf32>
    %c0_116 = arith.constant 0 : index
    %c0_117 = arith.constant 0 : index
    %c0_118 = arith.constant 0 : index
    %289 = vector.load %arg11[%c0_116, %c0_117, %c0_118] : memref<1x8x32xf32, #tpu.memory_space<vmem>>, vector<1x8x32xf32>
    %290 = vector.shape_cast %289 : vector<1x8x32xf32> to vector<8x32xf32>
    %291 = vector.shape_cast %288 : vector<8x32xf32> to vector<1x8x32xf32>
    tpu.vector_store %arg11[%c0_116, %c0_117, %c0_118], %291 {strides = array<i32>} : memref<1x8x32xf32, #tpu.memory_space<vmem>>, vector<1x8x32xf32>,
    return
  }
  func.func @transform_0(%arg0: i32) -> (i32, i32, i32) {
    %c0_i32 = arith.constant 0 : i32
    %c0_i32_0 = arith.constant 0 : i32
    %c0_i32_1 = arith.constant 0 : i32
    return %arg0, %c0_i32, %c0_i32_0 : i32, i32, i32
  }
  func.func @transform_1(%arg0: i32) -> (i32, i32, i32) {
    %c0_i32 = arith.constant 0 : i32
    %c0_i32_0 = arith.constant 0 : i32
    %c0_i32_1 = arith.constant 0 : i32
    %c0_i32_2 = arith.constant 0 : i32
    return %c0_i32, %c0_i32_0, %c0_i32_1 : i32, i32, i32
  }
  func.func @transform_2(%arg0: i32) -> (i32, i32, i32) {
    %c0_i32 = arith.constant 0 : i32
    %c0_i32_0 = arith.constant 0 : i32
    %c0_i32_1 = arith.constant 0 : i32
    %c0_i32_2 = arith.constant 0 : i32
    return %c0_i32, %c0_i32_0, %c0_i32_1 : i32, i32, i32
  }
  func.func @transform_3(%arg0: i32) -> (i32, i32, i32) {
    %c0_i32 = arith.constant 0 : i32
    %c0_i32_0 = arith.constant 0 : i32
    %c0_i32_1 = arith.constant 0 : i32
    %c0_i32_2 = arith.constant 0 : i32
    return %c0_i32, %c0_i32_0, %c0_i32_1 : i32, i32, i32
  }
  func.func @transform_4(%arg0: i32) -> (i32, i32, i32) {
    %c0_i32 = arith.constant 0 : i32
    %c0_i32_0 = arith.constant 0 : i32
    %c0_i32_1 = arith.constant 0 : i32
    %c0_i32_2 = arith.constant 0 : i32
    return %c0_i32, %c0_i32_0, %c0_i32_1 : i32, i32, i32
  }
  func.func @transform_5(%arg0: i32) -> (i32, i32, i32) {
    %c0_i32 = arith.constant 0 : i32
    %c0_i32_0 = arith.constant 0 : i32
    %c0_i32_1 = arith.constant 0 : i32
    %c0_i32_2 = arith.constant 0 : i32
    return %c0_i32, %c0_i32_0, %c0_i32_1 : i32, i32, i32
  }
  func.func @transform_6(%arg0: i32) -> (i32, i32, i32) {
    %c0_i32 = arith.constant 0 : i32
    %c0_i32_0 = arith.constant 0 : i32
    %c0_i32_1 = arith.constant 0 : i32
    %c0_i32_2 = arith.constant 0 : i32
    return %c0_i32, %c0_i32_0, %c0_i32_1 : i32, i32, i32
  }
  func.func @transform_7(%arg0: i32) -> (i32, i32) {
    %c0_i32 = arith.constant 0 : i32
    %c0_i32_0 = arith.constant 0 : i32
    %c0_i32_1 = arith.constant 0 : i32
    return %c0_i32, %c0_i32_0 : i32, i32
  }
  func.func @transform_8(%arg0: i32) -> (i32, i32) {
    %c0_i32 = arith.constant 0 : i32
    %c0_i32_0 = arith.constant 0 : i32
    %c0_i32_1 = arith.constant 0 : i32
    return %c0_i32, %c0_i32_0 : i32, i32
  }
  func.func @transform_9(%arg0: i32) -> (i32, i32) {
    %c0_i32 = arith.constant 0 : i32
    %c0_i32_0 = arith.constant 0 : i32
    %c0_i32_1 = arith.constant 0 : i32
    return %c0_i32, %c0_i32_0 : i32, i32
  }
  func.func @transform_10(%arg0: i32) -> (i32, i32, i32) {
    %c0_i32 = arith.constant 0 : i32
    %c0_i32_0 = arith.constant 0 : i32
    %c0_i32_1 = arith.constant 0 : i32
    return %arg0, %c0_i32, %c0_i32_0 : i32, i32, i32
  }
}

</mosaic_0001>

<llo_original>
// kernel: base_transformer.1
$region0: #{base_transformer.1}
  #allocation0 [shape = 'u32[]', space=smem, size = 0x4, offset = 0x4, fixed_abs, tag = 'smem constant byte address 0x4 - core index']
  #allocation1 [shape = 'u32[144,128]{1,0:T(1,128)}', space=vmem, size = 0x12000, scoped, tag = 'internal scratch']
  %s0 = inlined_call_operand.hbm [shape: f32[2,8,32], index: 0, kind: input, shape index: {}]
  %s1 = inlined_call_operand.vmem [shape: f32[2,1,32], index: 1, kind: input, shape index: {}]
  %s2 = inlined_call_operand.hbm [shape: f32[2,1,32], index: 2, kind: input, shape index: {}]
  %s3 = inlined_call_operand.vmem [shape: f32[2,32,96], index: 3, kind: input, shape index: {}]
  %s4 = inlined_call_operand.vmem [shape: f32[2,32,32], index: 4, kind: input, shape index: {}]
  %s5 = inlined_call_operand.vmem [shape: f32[2,32,192], index: 5, kind: input, shape index: {}]
  %s6 = inlined_call_operand.vmem [shape: f32[2,96,32], index: 6, kind: input, shape index: {}]
  %s7 = inlined_call_operand.hbm [shape: f32[8,32], index: 7, kind: input, shape index: {}]
  %s8 = inlined_call_operand.hbm [shape: f32[8,32], index: 8, kind: input, shape index: {}]
  %s9 = inlined_call_operand.vmem [shape: f32[32,32], index: 9, kind: input, shape index: {}]
  %s10 = inlined_call_operand.hbm [shape: f32[2,8,32], index: 10, kind: output, shape index: {}]
  %s11 = sld [smem:[#allocation0]]
  $region89: #{base_transformer.1} parent=0
    _
  %s13 = ssub.s32 1, %s11
  %s14 = scalar_select 0, %s13, %s11
  $region1: #{base_transformer.1} parent=0
    #allocation2 [shape = 'u8[8192]{0}', space=vmem, size = 0x2000, scoped, tag = 'input window, operand 0']
    #allocation3 [shape = 's32[2]{0}', space=sflag, size = 0x8, scoped, tag = 'scoped memory for base_transformer.1']
    #allocation4 [shape = 's32[2]{0}', space=sflag, size = 0x8, scoped, tag = 'scoped memory for base_transformer.1']
    #allocation5 [shape = 'u8[1024]{0}', space=vmem, size = 0x400, scoped, tag = 'input window, operand 2, single buffered']
    #allocation6 [shape = 's32[1]{0}', space=sflag, size = 0x4, scoped, tag = 'scoped memory for base_transformer.1']
    #allocation7 [shape = 'u8[4096]{0}', space=vmem, size = 0x1000, scoped, tag = 'input window, operand 7, single buffered']
    #allocation8 [shape = 'u8[4096]{0}', space=vmem, size = 0x1000, scoped, tag = 'input window, operand 8, single buffered']
    #allocation9 [shape = 's32[1]{0}', space=sflag, size = 0x4, scoped, tag = 'scoped memory for base_transformer.1']
    #allocation10 [shape = 'u8[8192]{0}', space=vmem, size = 0x2000, scoped, tag = 'output window, operand 0']
    %15 = vsyncpa [#allocation3], 0
    %s16 = scalar_lea.sflag [#allocation3], 1
    %17 = vsyncpa %s16, 0
    %18 = vsyncpa [#allocation6], 0
    %19 = vsyncpa [#allocation9], 0
    %20 = vsyncpa [#allocation4], 0
    %s21 = scalar_lea.sflag [#allocation4], 1
    %22 = vsyncpa %s21, 0
    loop: start=0, step=1, limit=4
    $region2: #{base_transformer.1} parent=1 // loop_pre_header
      _
    $region3: #{base_transformer.1} parent=1 // loop_header
      %s24 = sphi 0, %s28
      %p25 = scmp.ge.s32.totalorder %s24, 4
      %s34 = sphi 0, %s36
      %s37 = sphi 0, %s34
      %s38 = sphi 0, %s37
      %s54 = sphi 0, %s38
      %s58 = sphi 0, %s58
      %s60 = sphi 0, %s58
      %s61 = sphi 0, %s60
      %s75 = sphi 0, %s61
      %s79 = sphi 0, %s79
      %s81 = sphi 0, %s79
      %s82 = sphi 0, %s81
      %s96 = sphi 0, %s82
      %s100 = sphi 0, %s100
      %s102 = sphi 0, %s100
      %s103 = sphi 0, %s102
      %s117 = sphi 0, %s103
      %s121 = sphi 0, %s121
      %s123 = sphi 0, %s121
      %s124 = sphi 0, %s123
      %s138 = sphi 0, %s124
      %s142 = sphi 0, %s142
      %s144 = sphi 0, %s142
      %s145 = sphi 0, %s144
      %s159 = sphi 0, %s145
      %s163 = sphi 0, %s163
      %s165 = sphi 0, %s163
      %s166 = sphi 0, %s165
      %s180 = sphi 0, %s166
      %s184 = sphi 0, %s184
      %s186 = sphi 0, %s184
      %s187 = sphi 0, %s186
      %s201 = sphi 0, %s187
      %s205 = sphi 0, %s205
      %s207 = sphi 0, %s205
      %s208 = sphi 0, %s207
      %s222 = sphi 0, %s208
      %s226 = sphi 0, %s226
      %s228 = sphi 0, %s226
      %s229 = sphi 0, %s228
      %s243 = sphi 0, %s229
      %s249 = sphi 0, %s251
      %s252 = sphi 0, %s249
      %s253 = sphi 0, %s252
      %s269 = sphi 0, %s253
    $region4: #{base_transformer.1} parent=1 // loop_header_branch
      %27 = sbr.rel (%p25) target = $region8
    $region5: #{base_transformer.1} parent=1 // loop_body
      %s29 = ssub.s32 %s24, 1
      %s30 = ssub.s32 %s24, 2
      %s31 = sadd.s32 %s24, 1
      %s32 = ssub.s32 %s24, %s31
      %p33 = scmp.eq.s32.totalorder %s32, 0
      %s35 = sadd.s32 %s34, 1
      %s36 = scalar_select %p33, %s34, %s35
      %p39 = pneg %p33
      %p40 = scmp.eq.s32.totalorder %s24, 1
      %p41 = por %p39, %p40
      %p42 = scmp.ne.s32.totalorder %s34, %s37
      %p43 = scmp.eq.s32.totalorder %s24, 0
      %p44 = por %p42, %p43
      %p45 = scmp.ne.s32.totalorder %s34, %s37
      %p46 = scmp.eq.s32.totalorder %s29, 1
      %p47 = por %p45, %p46
      %p48 = scmp.ne.s32.totalorder %s37, %s38
      %p49 = scmp.eq.s32.totalorder %s29, 0
      %p50 = por %p48, %p49
      %p51 = scmp.ne.s32.totalorder %s37, %s38
      %p52 = scmp.eq.s32.totalorder %s30, 1
      %p53 = por %p51, %p52
      %p55 = scmp.ne.s32.totalorder %s38, %s54
      %p56 = scmp.eq.s32.totalorder %s30, 0
      %p57 = por %p55, %p56
      %s59 = sadd.s32 %s58, 1
      %p62 = scmp.eq.s32.totalorder %s24, 1
      %p63 = scmp.ne.s32.totalorder %s58, %s60
      %p64 = scmp.eq.s32.totalorder %s24, 0
      %p65 = por %p63, %p64
      %p66 = scmp.ne.s32.totalorder %s58, %s60
      %p67 = scmp.eq.s32.totalorder %s29, 1
      %p68 = por %p66, %p67
      %p69 = scmp.ne.s32.totalorder %s60, %s61
      %p70 = scmp.eq.s32.totalorder %s29, 0
      %p71 = por %p69, %p70
      %p72 = scmp.ne.s32.totalorder %s60, %s61
      %p73 = scmp.eq.s32.totalorder %s30, 1
      %p74 = por %p72, %p73
      %p76 = scmp.ne.s32.totalorder %s61, %s75
      %p77 = scmp.eq.s32.totalorder %s30, 0
      %p78 = por %p76, %p77
      %s80 = sadd.s32 %s79, 1
      %p83 = scmp.eq.s32.totalorder %s24, 1
      %p84 = scmp.ne.s32.totalorder %s79, %s81
      %p85 = scmp.eq.s32.totalorder %s24, 0
      %p86 = por %p84, %p85
      %p87 = scmp.ne.s32.totalorder %s79, %s81
      %p88 = scmp.eq.s32.totalorder %s29, 1
      %p89 = por %p87, %p88
      %p90 = scmp.ne.s32.totalorder %s81, %s82
      %p91 = scmp.eq.s32.totalorder %s29, 0
      %p92 = por %p90, %p91
      %p93 = scmp.ne.s32.totalorder %s81, %s82
      %p94 = scmp.eq.s32.totalorder %s30, 1
      %p95 = por %p93, %p94
      %p97 = scmp.ne.s32.totalorder %s82, %s96
      %p98 = scmp.eq.s32.totalorder %s30, 0
      %p99 = por %p97, %p98
      %s101 = sadd.s32 %s100, 1
      %p104 = scmp.eq.s32.totalorder %s24, 1
      %p105 = scmp.ne.s32.totalorder %s100, %s102
      %p106 = scmp.eq.s32.totalorder %s24, 0
      %p107 = por %p105, %p106
      %p108 = scmp.ne.s32.totalorder %s100, %s102
      %p109 = scmp.eq.s32.totalorder %s29, 1
      %p110 = por %p108, %p109
      %p111 = scmp.ne.s32.totalorder %s102, %s103
      %p112 = scmp.eq.s32.totalorder %s29, 0
      %p113 = por %p111, %p112
      %p114 = scmp.ne.s32.totalorder %s102, %s103
      %p115 = scmp.eq.s32.totalorder %s30, 1
      %p116 = por %p114, %p115
      %p118 = scmp.ne.s32.totalorder %s103, %s117
      %p119 = scmp.eq.s32.totalorder %s30, 0
      %p120 = por %p118, %p119
      %s122 = sadd.s32 %s121, 1
      %p125 = scmp.eq.s32.totalorder %s24, 1
      %p126 = scmp.ne.s32.totalorder %s121, %s123
      %p127 = scmp.eq.s32.totalorder %s24, 0
      %p128 = por %p126, %p127
      %p129 = scmp.ne.s32.totalorder %s121, %s123
      %p130 = scmp.eq.s32.totalorder %s29, 1
      %p131 = por %p129, %p130
      %p132 = scmp.ne.s32.totalorder %s123, %s124
      %p133 = scmp.eq.s32.totalorder %s29, 0
      %p134 = por %p132, %p133
      %p135 = scmp.ne.s32.totalorder %s123, %s124
      %p136 = scmp.eq.s32.totalorder %s30, 1
      %p137 = por %p135, %p136
      %p139 = scmp.ne.s32.totalorder %s124, %s138
      %p140 = scmp.eq.s32.totalorder %s30, 0
      %p141 = por %p139, %p140
      %s143 = sadd.s32 %s142, 1
      %p146 = scmp.eq.s32.totalorder %s24, 1
      %p147 = scmp.ne.s32.totalorder %s142, %s144
      %p148 = scmp.eq.s32.totalorder %s24, 0
      %p149 = por %p147, %p148
      %p150 = scmp.ne.s32.totalorder %s142, %s144
      %p151 = scmp.eq.s32.totalorder %s29, 1
      %p152 = por %p150, %p151
      %p153 = scmp.ne.s32.totalorder %s144, %s145
      %p154 = scmp.eq.s32.totalorder %s29, 0
      %p155 = por %p153, %p154
      %p156 = scmp.ne.s32.totalorder %s144, %s145
      %p157 = scmp.eq.s32.totalorder %s30, 1
      %p158 = por %p156, %p157
      %p160 = scmp.ne.s32.totalorder %s145, %s159
      %p161 = scmp.eq.s32.totalorder %s30, 0
      %p162 = por %p160, %p161
      %s164 = sadd.s32 %s163, 1
      %p167 = scmp.eq.s32.totalorder %s24, 1
      %p168 = scmp.ne.s32.totalorder %s163, %s165
      %p169 = scmp.eq.s32.totalorder %s24, 0
      %p170 = por %p168, %p169
      %p171 = scmp.ne.s32.totalorder %s163, %s165
      %p172 = scmp.eq.s32.totalorder %s29, 1
      %p173 = por %p171, %p172
      %p174 = scmp.ne.s32.totalorder %s165, %s166
      %p175 = scmp.eq.s32.totalorder %s29, 0
      %p176 = por %p174, %p175
      %p177 = scmp.ne.s32.totalorder %s165, %s166
      %p178 = scmp.eq.s32.totalorder %s30, 1
      %p179 = por %p177, %p178
      %p181 = scmp.ne.s32.totalorder %s166, %s180
      %p182 = scmp.eq.s32.totalorder %s30, 0
      %p183 = por %p181, %p182
      %s185 = sadd.s32 %s184, 1
      %p188 = scmp.eq.s32.totalorder %s24, 1
      %p189 = scmp.ne.s32.totalorder %s184, %s186
      %p190 = scmp.eq.s32.totalorder %s24, 0
      %p191 = por %p189, %p190
      %p192 = scmp.ne.s32.totalorder %s184, %s186
      %p193 = scmp.eq.s32.totalorder %s29, 1
      %p194 = por %p192, %p193
      %p195 = scmp.ne.s32.totalorder %s186, %s187
      %p196 = scmp.eq.s32.totalorder %s29, 0
      %p197 = por %p195, %p196
      %p198 = scmp.ne.s32.totalorder %s186, %s187
      %p199 = scmp.eq.s32.totalorder %s30, 1
      %p200 = por %p198, %p199
      %p202 = scmp.ne.s32.totalorder %s187, %s201
      %p203 = scmp.eq.s32.totalorder %s30, 0
      %p204 = por %p202, %p203
      %s206 = sadd.s32 %s205, 1
      %p209 = scmp.eq.s32.totalorder %s24, 1
      %p210 = scmp.ne.s32.totalorder %s205, %s207
      %p211 = scmp.eq.s32.totalorder %s24, 0
      %p212 = por %p210, %p211
      %p213 = scmp.ne.s32.totalorder %s205, %s207
      %p214 = scmp.eq.s32.totalorder %s29, 1
      %p215 = por %p213, %p214
      %p216 = scmp.ne.s32.totalorder %s207, %s208
      %p217 = scmp.eq.s32.totalorder %s29, 0
      %p218 = por %p216, %p217
      %p219 = scmp.ne.s32.totalorder %s207, %s208
      %p220 = scmp.eq.s32.totalorder %s30, 1
      %p221 = por %p219, %p220
      %p223 = scmp.ne.s32.totalorder %s208, %s222
      %p224 = scmp.eq.s32.totalorder %s30, 0
      %p225 = por %p223, %p224
      %s227 = sadd.s32 %s226, 1
      %p230 = scmp.eq.s32.totalorder %s24, 1
      %p231 = scmp.ne.s32.totalorder %s226, %s228
      %p232 = scmp.eq.s32.totalorder %s24, 0
      %p233 = por %p231, %p232
      %p234 = scmp.ne.s32.totalorder %s226, %s228
      %p235 = scmp.eq.s32.totalorder %s29, 1
      %p236 = por %p234, %p235
      %p237 = scmp.ne.s32.totalorder %s228, %s229
      %p238 = scmp.eq.s32.totalorder %s29, 0
      %p239 = por %p237, %p238
      %p240 = scmp.ne.s32.totalorder %s228, %s229
      %p241 = scmp.eq.s32.totalorder %s30, 1
      %p242 = por %p240, %p241
      %p244 = scmp.ne.s32.totalorder %s229, %s243
      %p245 = scmp.eq.s32.totalorder %s30, 0
      %p246 = por %p244, %p245
      %s247 = ssub.s32 %s24, %s31
      %p248 = scmp.eq.s32.totalorder %s247, 0
      %s250 = sadd.s32 %s249, 1
      %s251 = scalar_select %p248, %s249, %s250
      %p254 = pneg %p248
      %p255 = scmp.eq.s32.totalorder %s24, 1
      %p256 = por %p254, %p255
      %p257 = scmp.ne.s32.totalorder %s249, %s252
      %p258 = scmp.eq.s32.totalorder %s24, 0
      %p259 = por %p257, %p258
      %p260 = scmp.ne.s32.totalorder %s249, %s252
      %p261 = scmp.eq.s32.totalorder %s29, 1
      %p262 = por %p260, %p261
      %p263 = scmp.ne.s32.totalorder %s252, %s253
      %p264 = scmp.eq.s32.totalorder %s29, 0
      %p265 = por %p263, %p264
      %p266 = scmp.ne.s32.totalorder %s252, %s253
      %p267 = scmp.eq.s32.totalorder %s30, 1
      %p268 = por %p266, %p267
      %p270 = scmp.ne.s32.totalorder %s253, %s269
      %p271 = scmp.eq.s32.totalorder %s30, 0
      %p272 = por %p270, %p271
      %p273 = scmp.le.s32.totalorder 1, %s24
      %p274 = scmp.lt.s32.totalorder %s24, 3
      %p275 = pnand %p273, %p274
      %p276 = pneg %p275
      // Predicated region
      $region9: #{base_transformer.1} parent=5 // pred_check
        _
      $region10: #{base_transformer.1} parent=5 // pred_check_branch
        %278 = sbr.rel (%p275) target = $region12
      $region11: #{base_transformer.1} parent=5 // pred_region
        %s279 = ssub.s32 %s24, 1
        // Predicated region
        $region13: #{base_transformer.1} parent=11 // pred_check
          %p280 = pneg %p71
        $region14: #{base_transformer.1} parent=11 // pred_check_branch
          %282 = sbr.rel (%p280) target = $region16
        $region15: #{base_transformer.1} parent=11 // pred_region
          _
        $region16: #{base_transformer.1} parent=11 // pred_fallthru
          _
        // Predicated region
        $region17: #{base_transformer.1} parent=11 // pred_check
          %p283 = pneg %p92
        $region18: #{base_transformer.1} parent=11 // pred_check_branch
          %285 = sbr.rel (%p283) target = $region20
        $region19: #{base_transformer.1} parent=11 // pred_region
          %s287 = ssub.s32 32, 32
          %288 = vsyncadd [#allocation6], %s287
          %s289 = sshll.u32 [#allocation5], 4
          %s290 = int_to_ptr.vmem [resolvable:$true] %s289
          %295 = dma.hbm_to_vmem [thread:$0]  %s2, 32, %s290, [#allocation6], 16, 16, 1
        $region20: #{base_transformer.1} parent=11 // pred_fallthru
          _
        // Predicated region
        $region21: #{base_transformer.1} parent=11 // pred_check
          %p296 = pneg %p113
        $region22: #{base_transformer.1} parent=11 // pred_check_branch
          %298 = sbr.rel (%p296) target = $region24
        $region23: #{base_transformer.1} parent=11 // pred_region
          _
        $region24: #{base_transformer.1} parent=11 // pred_fallthru
          _
        // Predicated region
        $region25: #{base_transformer.1} parent=11 // pred_check
          %p299 = pneg %p134
        $region26: #{base_transformer.1} parent=11 // pred_check_branch
          %301 = sbr.rel (%p299) target = $region28
        $region27: #{base_transformer.1} parent=11 // pred_region
          _
        $region28: #{base_transformer.1} parent=11 // pred_fallthru
          _
        // Predicated region
        $region29: #{base_transformer.1} parent=11 // pred_check
          %p302 = pneg %p155
        $region30: #{base_transformer.1} parent=11 // pred_check_branch
          %304 = sbr.rel (%p302) target = $region32
        $region31: #{base_transformer.1} parent=11 // pred_region
          _
        $region32: #{base_transformer.1} parent=11 // pred_fallthru
          _
        // Predicated region
        $region33: #{base_transformer.1} parent=11 // pred_check
          %p305 = pneg %p176
        $region34: #{base_transformer.1} parent=11 // pred_check_branch
          %307 = sbr.rel (%p305) target = $region36
        $region35: #{base_transformer.1} parent=11 // pred_region
          _
        $region36: #{base_transformer.1} parent=11 // pred_fallthru
          _
        // Predicated region
        $region37: #{base_transformer.1} parent=11 // pred_check
          %p308 = pneg %p197
        $region38: #{base_transformer.1} parent=11 // pred_check_branch
          %310 = sbr.rel (%p308) target = $region40
        $region39: #{base_transformer.1} parent=11 // pred_region
          %s312 = ssub.s32 128, 128
          %313 = vsyncadd [#allocation6], %s312
          %s315 = sshll.u32 [#allocation7], 4
          %s316 = int_to_ptr.vmem [resolvable:$true] %s315
          %318 = dma.hbm_to_vmem [thread:$0]  %s7, 128, %s316, [#allocation6]
        $region40: #{base_transformer.1} parent=11 // pred_fallthru
          _
        // Predicated region
        $region41: #{base_transformer.1} parent=11 // pred_check
          %p319 = pneg %p218
        $region42: #{base_transformer.1} parent=11 // pred_check_branch
          %321 = sbr.rel (%p319) target = $region44
        $region43: #{base_transformer.1} parent=11 // pred_region
          %s323 = ssub.s32 128, 128
          %324 = vsyncadd [#allocation9], %s323
          %s326 = sshll.u32 [#allocation8], 4
          %s327 = int_to_ptr.vmem [resolvable:$true] %s326
          %329 = dma.hbm_to_vmem [thread:$0]  %s8, 128, %s327, [#allocation9]
        $region44: #{base_transformer.1} parent=11 // pred_fallthru
          _
        // Predicated region
        $region45: #{base_transformer.1} parent=11 // pred_check
          %p330 = pneg %p239
        $region46: #{base_transformer.1} parent=11 // pred_check_branch
          %332 = sbr.rel (%p330) target = $region48
        $region47: #{base_transformer.1} parent=11 // pred_region
          _
        $region48: #{base_transformer.1} parent=11 // pred_fallthru
          _
      $region12: #{base_transformer.1} parent=5 // pred_fallthru
        _
      %p333 = scmp.lt.s32.totalorder %s24, 2
      // Predicated region
      $region49: #{base_transformer.1} parent=5 // pred_check
        %p334 = pneg %p333
      $region50: #{base_transformer.1} parent=5 // pred_check_branch
        %336 = sbr.rel (%p334) target = $region52
      $region51: #{base_transformer.1} parent=5 // pred_region
        // Predicated region
        $region53: #{base_transformer.1} parent=51 // pred_check
          %p337 = pneg %p44
        $region54: #{base_transformer.1} parent=51 // pred_check_branch
          %339 = sbr.rel (%p337) target = $region56
        $region55: #{base_transformer.1} parent=51 // pred_region
          %s340 = sand.u32 %s34, 1
          %s341 = scalar_lea.sflag [#allocation3], %s340
          %s342 = sand.u32 %s34, 1
          %s343 = smul.addr %s342, 8
          %s344 = scalar_lea.vmem [#allocation2], %s343
          %s346 = ssub.s32 128, 128
          %347 = vsyncadd %s341, %s346
          %s348 = smul.addr %s24, 128
          %s349 = scalar_lea.hbm %s0, %s348
          %s351 = sshll.u32 %s344, 4
          %s352 = int_to_ptr.vmem [resolvable:$true] %s351
          %354 = dma.hbm_to_vmem [thread:$0]  %s349, 128, %s352, %s341
        $region56: #{base_transformer.1} parent=51 // pred_fallthru
          _
      $region52: #{base_transformer.1} parent=5 // pred_fallthru
        _
      %p355 = scmp.le.s32.totalorder 1, %s24
      %p356 = scmp.lt.s32.totalorder %s24, 3
      %p357 = pnand %p355, %p356
      %p358 = pneg %p357
      // Predicated region
      $region57: #{base_transformer.1} parent=5 // pred_check
        _
      $region58: #{base_transformer.1} parent=5 // pred_check_branch
        %360 = sbr.rel (%p357) target = $region60
      $region59: #{base_transformer.1} parent=5 // pred_region
        %s361 = ssub.s32 %s24, 1
        %s362 = sand.u32 %s37, 1
        %s363 = scalar_lea.sflag [#allocation3], %s362
        %s364 = sand.u32 %s37, 1
        %s365 = smul.addr %s364, 8
        %s366 = scalar_lea.vmem [#allocation2], %s365
        // Predicated region
        $region61: #{base_transformer.1} parent=59 // pred_check
          %p367 = pneg %p50
        $region62: #{base_transformer.1} parent=59 // pred_check_branch
          %369 = sbr.rel (%p367) target = $region64
        $region63: #{base_transformer.1} parent=59 // pred_region
          %370 = dma.done %s363, 128
        $region64: #{base_transformer.1} parent=59 // pred_fallthru
          _
        // Predicated region
        $region65: #{base_transformer.1} parent=59 // pred_check
          %p371 = pneg %p92
        $region66: #{base_transformer.1} parent=59 // pred_check_branch
          %373 = sbr.rel (%p371) target = $region68
        $region67: #{base_transformer.1} parent=59 // pred_region
          %374 = dma.done [#allocation6], 32
        $region68: #{base_transformer.1} parent=59 // pred_fallthru
          _
        // Predicated region
        $region69: #{base_transformer.1} parent=59 // pred_check
          %p375 = pneg %p197
        $region70: #{base_transformer.1} parent=59 // pred_check_branch
          %377 = sbr.rel (%p375) target = $region72
        $region71: #{base_transformer.1} parent=59 // pred_region
          %378 = dma.done [#allocation6], 128
        $region72: #{base_transformer.1} parent=59 // pred_fallthru
          _
        // Predicated region
        $region73: #{base_transformer.1} parent=59 // pred_check
          %p379 = pneg %p218
        $region74: #{base_transformer.1} parent=59 // pred_check_branch
          %381 = sbr.rel (%p379) target = $region76
        $region75: #{base_transformer.1} parent=59 // pred_region
          %382 = dma.done [#allocation9], 128
        $region76: #{base_transformer.1} parent=59 // pred_fallthru
          _
        %s383 = sand.u32 %s37, 1
        %s384 = scalar_lea.sflag [#allocation3], %s383
        %s385 = sand.u32 %s37, 1
        %s386 = smul.addr %s385, 8
        %s387 = scalar_lea.vmem [#allocation2], %s386
        %p388 = pneg %p50
        %p389 = pneg %p47
        %p390 = pneg %p71
        %p391 = pneg %p68
        %p392 = pneg %p92
        %p393 = pneg %p89
        %p394 = pneg %p113
        %p395 = pneg %p110
        %p396 = pneg %p134
        %p397 = pneg %p131
        %p398 = pneg %p155
        %p399 = pneg %p152
        %p400 = pneg %p176
        %p401 = pneg %p173
        %p402 = pneg %p197
        %p403 = pneg %p194
        %p404 = pneg %p218
        %p405 = pneg %p215
        %p406 = pneg %p239
        %p407 = pneg %p236
        %p408 = pneg %p265
        %p409 = pneg %p262
        %s410 = sand.u32 %s252, 1
        %s411 = scalar_lea.sflag [#allocation4], %s410
        %s412 = sand.u32 %s252, 1
        %s413 = smul.addr %s412, 8
        %s414 = scalar_lea.vmem [#allocation10], %s413
        %v415 = vld [vmem:[%s366] sm:$0xff]
        %v416 = vld [vmem:[#allocation7] sm:$0xff]
        %v417 = vld [vmem:[#allocation8] sm:$0xff]
        %v418 = vld [vmem:[%s9] sm:$0xff]
        %v419 = vld [vmem:[%s9 + $0x8] sm:$0xff]
        %v420 = vld [vmem:[%s9 + $0x10] sm:$0xff]
        %v421 = vld [vmem:[%s9 + $0x18] sm:$0xff]
        %v422 = vld [vmem:[%s1] sm:$0x1]
        %v423 = vld [vmem:[#allocation5] sm:$0x1]
        %v424 = vld [vmem:[%s3] sm:$0xff]
        %v425 = vld [vmem:[%s3 + $0x8] sm:$0xff]
        %v426 = vld [vmem:[%s3 + $0x10] sm:$0xff]
        %v427 = vld [vmem:[%s3 + $0x18] sm:$0xff]
        %v428 = vld [vmem:[%s4] sm:$0xff]
        %v429 = vld [vmem:[%s4 + $0x8] sm:$0xff]
        %v430 = vld [vmem:[%s4 + $0x10] sm:$0xff]
        %v431 = vld [vmem:[%s4 + $0x18] sm:$0xff]
        %v432 = vld [vmem:[%s5] sm:$0xff]
        %v433 = vld [vmem:[%s5 + $0x8] sm:$0xff]
        %v434 = vld [vmem:[%s5 + $0x10] sm:$0xff]
        %v435 = vld [vmem:[%s5 + $0x18] sm:$0xff]
        %v436 = vld [vmem:[%s5 + $0x20] sm:$0xff]
        %v437 = vld [vmem:[%s5 + $0x28] sm:$0xff]
        %v438 = vld [vmem:[%s5 + $0x30] sm:$0xff]
        %v439 = vld [vmem:[%s5 + $0x38] sm:$0xff]
        %v440 = vld [vmem:[%s6] sm:$0xff]
        %v441 = vld [vmem:[%s6 + $0x8] sm:$0xff]
        %v442 = vld [vmem:[%s6 + $0x10] sm:$0xff]
        %v443 = vld [vmem:[%s6 + $0x18] sm:$0xff]
        %v444 = vld [vmem:[%s6 + $0x20] sm:$0xff]
        %v445 = vld [vmem:[%s6 + $0x28] sm:$0xff]
        %v446 = vld [vmem:[%s6 + $0x30] sm:$0xff]
        %v447 = vld [vmem:[%s6 + $0x38] sm:$0xff]
        %v448 = vld [vmem:[%s6 + $0x40] sm:$0xff]
        %v449 = vld [vmem:[%s6 + $0x48] sm:$0xff]
        %v450 = vld [vmem:[%s6 + $0x50] sm:$0xff]
        %v451 = vld [vmem:[%s6 + $0x58] sm:$0xff]
        %v452 = vmul.f32 %v415, %v415
        %vm453 = vcmask 261120
        %v454 = vsel %vm453, %v452, 0.0
        %455 = vadd.xlane.f32.xlu0 %v454
        %v456 = vpop.xlane.xlu0 %455
        %v457 = vrcp.pop 32.0
        %v458 = vmul.f32 %v456, %v457
        %v459 = vadd.f32 %v458, 1e-06
        %v460 = vrsqrt.pop %v459
        %v461 = vmul.f32 %v415, %v460
        %v463 = vlaneseq
        %v464 = vshrl.u32 %v463, 7
        %v465 = vsub.s32 0, %v464
        %v466 = vrot.slane %v422, %v465
        %v468 = vmul.f32 %v461, %v466
        %v470 = vsel %vm453, %v468, 0
        %472 = vmatprep.subr.mxu0 0.0
        %473 = vmatpush1.msra.mxu0 %v424
        %474 = vmatprep.subr.mxu0 0.0
        %475 = vmatpush1.msra.mxu0 %v425
        %476 = vmatprep.subr.mxu0 0.0
        %477 = vmatpush1.msra.mxu0 %v426
        %478 = vmatprep.subr.mxu0 0.0
        %479 = vmatpush1.msra.mxu0 %v427
        %480 = vmatprep.subr.mxu0 0.0
        %481 = vmatpush1.msra.mxu0 0.0
        %482 = vmatprep.subr.mxu0 0.0
        %483 = vmatpush1.msra.mxu0 0.0
        %484 = vmatprep.subr.mxu0 0.0
        %485 = vmatpush1.msra.mxu0 0.0
        %486 = vmatprep.subr.mxu0 0.0
        %487 = vmatpush1.msra.mxu0 0.0
        %488 = vmatprep.subr.mxu0 0.0
        %489 = vmatpush1.msra.mxu0 0.0
        %490 = vmatprep.subr.mxu0 0.0
        %491 = vmatpush1.msra.mxu0 0.0
        %492 = vmatprep.subr.mxu0 0.0
        %493 = vmatpush1.msra.mxu0 0.0
        %494 = vmatprep.subr.mxu0 0.0
        %495 = vmatpush1.msra.mxu0 0.0
        %496 = vmatprep.subr.mxu0 0.0
        %497 = vmatpush1.msra.mxu0 0.0
        %498 = vmatprep.subr.mxu0 0.0
        %499 = vmatpush1.msra.mxu0 0.0
        %500 = vmatprep.subr.mxu0 0.0
        %501 = vmatpush1.msra.mxu0 0.0
        %502 = vmatprep.subr.mxu0 0.0
        %503 = vmatpush1.msra.mxu0 0.0
        %504 = vmatprep.subr.mxu0 0.0
        %505 = vmatpush1.msra.mxu0 0.0
        %506 = vmatprep.subr.mxu0 0.0
        %507 = vmatpush1.msra.mxu0 0.0
        %508 = vmatprep.subr.mxu0 0.0
        %509 = vmatpush1.msra.mxu0 0.0
        %510 = vmatprep.subr.mxu0 0.0
        %511 = vmatpush1.msra.mxu0 0.0
        %512 = vmatprep.subr.mxu0 0.0
        %513 = vmatpush1.msra.mxu0 0.0
        %514 = vmatprep.subr.mxu0 0.0
        %515 = vmatpush1.msra.mxu0 0.0
        %516 = vmatprep.subr.mxu0 0.0
        %517 = vmatpush1.msra.mxu0 0.0
        %518 = vmatprep.subr.mxu0 0.0
        %519 = vmatpush1.msra.mxu0 0.0
        %520 = vmatprep.subr.mxu0 0.0
        %521 = vmatpush1.msra.mxu0 0.0
        %522 = vmatprep.subr.mxu0 0.0
        %523 = vmatpush1.msra.mxu0 0.0
        %524 = vmatprep.subr.mxu0 0.0
        %525 = vmatpush1.msra.mxu0 0.0
        %526 = vmatprep.subr.mxu0 0.0
        %527 = vmatpush1.msra.mxu0 0.0
        %528 = vmatprep.subr.mxu0 0.0
        %529 = vmatpush1.msra.mxu0 0.0
        %530 = vmatprep.subr.mxu0 0.0
        %531 = vmatpush1.msra.mxu0 0.0
        %532 = vmatprep.subr.mxu0 0.0
        %533 = vmatpush1.msra.mxu0 0.0
        %534 = vmatprep.subr.mxu0 0.0
        %535 = vmatpush1.msra.mxu0 0.0
        %536 = vmatprep.mubr.f32.mxu0 0.0
        %537 = vmatmul.mubr.f32.gmra.mrb[0].mxu0 %v470
        %v538 = vpop.f32.mrb[0].mxu0
        %v539 = vadd.f32 0.0, %v538
        %v540 = vpop.f32.mrb[0].mxu0
        %541 = vdwg.mxu0
        %v542 = vmul.f32 %v539, %v416
        %v544 = vsel %vm453, %v539, 0
        %546 = vmatprep.subr.mxu0 0.0
        %547 = vmatpush1.msra.mxu0 %v418
        %548 = vmatprep.subr.mxu0 0.0
        %549 = vmatpush1.msra.mxu0 %v419
        %550 = vmatprep.subr.mxu0 0.0
        %551 = vmatpush1.msra.mxu0 %v420
        %552 = vmatprep.subr.mxu0 0.0
        %553 = vmatpush1.msra.mxu0 %v421
        %554 = vmatprep.subr.mxu0 0.0
        %555 = vmatpush1.msra.mxu0 0.0
        %556 = vmatprep.subr.mxu0 0.0
        %557 = vmatpush1.msra.mxu0 0.0
        %558 = vmatprep.subr.mxu0 0.0
        %559 = vmatpush1.msra.mxu0 0.0
        %560 = vmatprep.subr.mxu0 0.0
        %561 = vmatpush1.msra.mxu0 0.0
        %562 = vmatprep.subr.mxu0 0.0
        %563 = vmatpush1.msra.mxu0 0.0
        %564 = vmatprep.subr.mxu0 0.0
        %565 = vmatpush1.msra.mxu0 0.0
        %566 = vmatprep.subr.mxu0 0.0
        %567 = vmatpush1.msra.mxu0 0.0
        %568 = vmatprep.subr.mxu0 0.0
        %569 = vmatpush1.msra.mxu0 0.0
        %570 = vmatprep.subr.mxu0 0.0
        %571 = vmatpush1.msra.mxu0 0.0
        %572 = vmatprep.subr.mxu0 0.0
        %573 = vmatpush1.msra.mxu0 0.0
        %574 = vmatprep.subr.mxu0 0.0
        %575 = vmatpush1.msra.mxu0 0.0
        %576 = vmatprep.subr.mxu0 0.0
        %577 = vmatpush1.msra.mxu0 0.0
        %578 = vmatprep.subr.mxu0 0.0
        %579 = vmatpush1.msra.mxu0 0.0
        %580 = vmatprep.subr.mxu0 0.0
        %581 = vmatpush1.msra.mxu0 0.0
        %582 = vmatprep.subr.mxu0 0.0
        %583 = vmatpush1.msra.mxu0 0.0
        %584 = vmatprep.subr.mxu0 0.0
        %585 = vmatpush1.msra.mxu0 0.0
        %586 = vmatprep.subr.mxu0 0.0
        %587 = vmatpush1.msra.mxu0 0.0
        %588 = vmatprep.subr.mxu0 0.0
        %589 = vmatpush1.msra.mxu0 0.0
        %590 = vmatprep.subr.mxu0 0.0
        %591 = vmatpush1.msra.mxu0 0.0
        %592 = vmatprep.subr.mxu0 0.0
        %593 = vmatpush1.msra.mxu0 0.0
        %594 = vmatprep.subr.mxu0 0.0
        %595 = vmatpush1.msra.mxu0 0.0
        %596 = vmatprep.subr.mxu0 0.0
        %597 = vmatpush1.msra.mxu0 0.0
        %598 = vmatprep.subr.mxu0 0.0
        %599 = vmatpush1.msra.mxu0 0.0
        %600 = vmatprep.subr.mxu0 0.0
        %601 = vmatpush1.msra.mxu0 0.0
        %602 = vmatprep.subr.mxu0 0.0
        %603 = vmatpush1.msra.mxu0 0.0
        %604 = vmatprep.subr.mxu0 0.0
        %605 = vmatpush1.msra.mxu0 0.0
        %606 = vmatprep.subr.mxu0 0.0
        %607 = vmatpush1.msra.mxu0 0.0
        %608 = vmatprep.subr.mxu0 0.0
        %609 = vmatpush1.msra.mxu0 0.0
        %610 = vmatprep.mubr.f32.mxu0 0.0
        %611 = vmatmul.mubr.f32.gmra.mrb[0].mxu0 %v544
        %v612 = vpop.f32.mrb[0].mxu0
        %v613 = vadd.f32 0.0, %v612
        %v614 = vpop.f32.mrb[0].mxu0
        %615 = vdwg.mxu0
        %v616 = vmul.f32 %v613, %v417
        %v617 = vadd.f32 %v542, %v616
        %619 = vrot.lane.b32.xlu0 %v416, 32
        %v620 = vpop.permute.xlu0 %619
        %v622 = vmul.f32 %v539, %v620
        %623 = vrot.lane.b32.xlu0 %v539, 96
        %v624 = vpop.permute.xlu0 %623
        %v625 = vsel %vm453, %v624, 0
        %627 = vmatprep.subr.mxu0 0.0
        %628 = vmatpush1.msra.mxu0 %v418
        %629 = vmatprep.subr.mxu0 0.0
        %630 = vmatpush1.msra.mxu0 %v419
        %631 = vmatprep.subr.mxu0 0.0
        %632 = vmatpush1.msra.mxu0 %v420
        %633 = vmatprep.subr.mxu0 0.0
        %634 = vmatpush1.msra.mxu0 %v421
        %635 = vmatprep.subr.mxu0 0.0
        %636 = vmatpush1.msra.mxu0 0.0
        %637 = vmatprep.subr.mxu0 0.0
        %638 = vmatpush1.msra.mxu0 0.0
        %639 = vmatprep.subr.mxu0 0.0
        %640 = vmatpush1.msra.mxu0 0.0
        %641 = vmatprep.subr.mxu0 0.0
        %642 = vmatpush1.msra.mxu0 0.0
        %643 = vmatprep.subr.mxu0 0.0
        %644 = vmatpush1.msra.mxu0 0.0
        %645 = vmatprep.subr.mxu0 0.0
        %646 = vmatpush1.msra.mxu0 0.0
        %647 = vmatprep.subr.mxu0 0.0
        %648 = vmatpush1.msra.mxu0 0.0
        %649 = vmatprep.subr.mxu0 0.0
        %650 = vmatpush1.msra.mxu0 0.0
        %651 = vmatprep.subr.mxu0 0.0
        %652 = vmatpush1.msra.mxu0 0.0
        %653 = vmatprep.subr.mxu0 0.0
        %654 = vmatpush1.msra.mxu0 0.0
        %655 = vmatprep.subr.mxu0 0.0
        %656 = vmatpush1.msra.mxu0 0.0
        %657 = vmatprep.subr.mxu0 0.0
        %658 = vmatpush1.msra.mxu0 0.0
        %659 = vmatprep.subr.mxu0 0.0
        %660 = vmatpush1.msra.mxu0 0.0
        %661 = vmatprep.subr.mxu0 0.0
        %662 = vmatpush1.msra.mxu0 0.0
        %663 = vmatprep.subr.mxu0 0.0
        %664 = vmatpush1.msra.mxu0 0.0
        %665 = vmatprep.subr.mxu0 0.0
        %666 = vmatpush1.msra.mxu0 0.0
        %667 = vmatprep.subr.mxu0 0.0
        %668 = vmatpush1.msra.mxu0 0.0
        %669 = vmatprep.subr.mxu0 0.0
        %670 = vmatpush1.msra.mxu0 0.0
        %671 = vmatprep.subr.mxu0 0.0
        %672 = vmatpush1.msra.mxu0 0.0
        %673 = vmatprep.subr.mxu0 0.0
        %674 = vmatpush1.msra.mxu0 0.0
        %675 = vmatprep.subr.mxu0 0.0
        %676 = vmatpush1.msra.mxu0 0.0
        %677 = vmatprep.subr.mxu0 0.0
        %678 = vmatpush1.msra.mxu0 0.0
        %679 = vmatprep.subr.mxu0 0.0
        %680 = vmatpush1.msra.mxu0 0.0
        %681 = vmatprep.subr.mxu0 0.0
        %682 = vmatpush1.msra.mxu0 0.0
        %683 = vmatprep.subr.mxu0 0.0
        %684 = vmatpush1.msra.mxu0 0.0
        %685 = vmatprep.subr.mxu0 0.0
        %686 = vmatpush1.msra.mxu0 0.0
        %687 = vmatprep.subr.mxu0 0.0
        %688 = vmatpush1.msra.mxu0 0.0
        %689 = vmatprep.subr.mxu0 0.0
        %690 = vmatpush1.msra.mxu0 0.0
        %691 = vmatprep.mubr.f32.mxu0 0.0
        %692 = vmatmul.mubr.f32.gmra.mrb[0].mxu0 %v625
        %v693 = vpop.f32.mrb[0].mxu0
        %v694 = vadd.f32 0.0, %v693
        %v695 = vpop.f32.mrb[0].mxu0
        %696 = vdwg.mxu0
        %v697 = vmul.f32 %v694, %v417
        %699 = vrot.lane.b32.xlu0 %v697, 32
        %v700 = vpop.permute.xlu0 %699
        %v702 = vadd.f32 %v622, %v700
        %704 = vrot.lane.b32.xlu0 %v702, 96
        %v705 = vpop.permute.xlu0 %704
        %vm706 = vcmask 64512
        %v708 = vsel %vm706, %v617, 0
        %v710 = vsel %vm706, %v705, 0
        %712 = vmatprep.subr.mxu0 0.0
        %713 = vmatpush1.xpose.msra.mxu0 %v710
        %714 = vmatprep.subr.mxu0 0.0
        %715 = vmatpush1.xpose.msra.mxu0 0.0
        %716 = vmatprep.subr.mxu0 0.0
        %717 = vmatpush1.xpose.msra.mxu0 0.0
        %718 = vmatprep.subr.mxu0 0.0
        %719 = vmatpush1.xpose.msra.mxu0 0.0
        %720 = vmatprep.subr.mxu0 0.0
        %721 = vmatpush1.xpose.msra.mxu0 0.0
        %722 = vmatprep.subr.mxu0 0.0
        %723 = vmatpush1.xpose.msra.mxu0 0.0
        %724 = vmatprep.subr.mxu0 0.0
        %725 = vmatpush1.xpose.msra.mxu0 0.0
        %726 = vmatprep.subr.mxu0 0.0
        %727 = vmatpush1.xpose.msra.mxu0 0.0
        %728 = vmatprep.subr.mxu0 0.0
        %729 = vmatpush1.xpose.msra.mxu0 0.0
        %730 = vmatprep.subr.mxu0 0.0
        %731 = vmatpush1.xpose.msra.mxu0 0.0
        %732 = vmatprep.subr.mxu0 0.0
        %733 = vmatpush1.xpose.msra.mxu0 0.0
        %734 = vmatprep.subr.mxu0 0.0
        %735 = vmatpush1.xpose.msra.mxu0 0.0
        %736 = vmatprep.subr.mxu0 0.0
        %737 = vmatpush1.xpose.msra.mxu0 0.0
        %738 = vmatprep.subr.mxu0 0.0
        %739 = vmatpush1.xpose.msra.mxu0 0.0
        %740 = vmatprep.subr.mxu0 0.0
        %741 = vmatpush1.xpose.msra.mxu0 0.0
        %742 = vmatprep.subr.mxu0 0.0
        %743 = vmatpush1.xpose.msra.mxu0 0.0
        %744 = vmatprep.subr.mxu0 0.0
        %745 = vmatpush1.xpose.msra.mxu0 0.0
        %746 = vmatprep.subr.mxu0 0.0
        %747 = vmatpush1.xpose.msra.mxu0 0.0
        %748 = vmatprep.subr.mxu0 0.0
        %749 = vmatpush1.xpose.msra.mxu0 0.0
        %750 = vmatprep.subr.mxu0 0.0
        %751 = vmatpush1.xpose.msra.mxu0 0.0
        %752 = vmatprep.subr.mxu0 0.0
        %753 = vmatpush1.xpose.msra.mxu0 0.0
        %754 = vmatprep.subr.mxu0 0.0
        %755 = vmatpush1.xpose.msra.mxu0 0.0
        %756 = vmatprep.subr.mxu0 0.0
        %757 = vmatpush1.xpose.msra.mxu0 0.0
        %758 = vmatprep.subr.mxu0 0.0
        %759 = vmatpush1.xpose.msra.mxu0 0.0
        %760 = vmatprep.subr.mxu0 0.0
        %761 = vmatpush1.xpose.msra.mxu0 0.0
        %762 = vmatprep.subr.mxu0 0.0
        %763 = vmatpush1.xpose.msra.mxu0 0.0
        %764 = vmatprep.subr.mxu0 0.0
        %765 = vmatpush1.xpose.msra.mxu0 0.0
        %766 = vmatprep.subr.mxu0 0.0
        %767 = vmatpush1.xpose.msra.mxu0 0.0
        %768 = vmatprep.subr.mxu0 0.0
        %769 = vmatpush1.xpose.msra.mxu0 0.0
        %770 = vmatprep.subr.mxu0 0.0
        %771 = vmatpush1.xpose.msra.mxu0 0.0
        %772 = vmatprep.subr.mxu0 0.0
        %773 = vmatpush1.xpose.msra.mxu0 0.0
        %774 = vmatprep.subr.mxu0 0.0
        %775 = vmatpush1.xpose.msra.mxu0 0.0
        %776 = vmatprep.mubr.f32.mxu0 0.0
        %777 = vmatmul.mubr.f32.gmra.mrb[0].mxu0 %v708
        %v778 = vpop.f32.mrb[0].mxu0
        %v779 = vadd.f32 0.0, %v778
        %v780 = vpop.f32.mrb[0].mxu0
        %781 = vdwg.mxu0
        %v782 = vmul.f32 %v779, 0.35355338
        %v783 = vsel %vm706, %v782, -inf
        %784 = vmax.xlane.f32.xlu0 %v783
        %v785 = vpop.xlane.xlu0 %784
        %v786 = vsub.f32 %v782, %v785
        %v787 = vmul.f32 %v786, 1.442695
        %v788 = vpow.pop %v787
        %v789 = vsel %vm706, %v788, 0.0
        %790 = vadd.xlane.f32.xlu0 %v789
        %v791 = vpop.xlane.xlu0 %790
        %v792 = vrcp.pop %v791
        %v793 = vmul.f32 %v788, %v792
        %794 = vrot.lane.b32.xlu0 %v539, 64
        %v795 = vpop.permute.xlu0 %794
        %v798 = vsel %vm706, %v793, 0
        %800 = vmatprep.subr.mxu0 0.0
        %801 = vmatpush1.msra.mxu0 %v795
        %802 = vmatprep.subr.mxu0 0.0
        %803 = vmatpush1.msra.mxu0 0.0
        %804 = vmatprep.subr.mxu0 0.0
        %805 = vmatpush1.msra.mxu0 0.0
        %806 = vmatprep.subr.mxu0 0.0
        %807 = vmatpush1.msra.mxu0 0.0
        %808 = vmatprep.subr.mxu0 0.0
        %809 = vmatpush1.msra.mxu0 0.0
        %810 = vmatprep.subr.mxu0 0.0
        %811 = vmatpush1.msra.mxu0 0.0
        %812 = vmatprep.subr.mxu0 0.0
        %813 = vmatpush1.msra.mxu0 0.0
        %814 = vmatprep.subr.mxu0 0.0
        %815 = vmatpush1.msra.mxu0 0.0
        %816 = vmatprep.subr.mxu0 0.0
        %817 = vmatpush1.msra.mxu0 0.0
        %818 = vmatprep.subr.mxu0 0.0
        %819 = vmatpush1.msra.mxu0 0.0
        %820 = vmatprep.subr.mxu0 0.0
        %821 = vmatpush1.msra.mxu0 0.0
        %822 = vmatprep.subr.mxu0 0.0
        %823 = vmatpush1.msra.mxu0 0.0
        %824 = vmatprep.subr.mxu0 0.0
        %825 = vmatpush1.msra.mxu0 0.0
        %826 = vmatprep.subr.mxu0 0.0
        %827 = vmatpush1.msra.mxu0 0.0
        %828 = vmatprep.subr.mxu0 0.0
        %829 = vmatpush1.msra.mxu0 0.0
        %830 = vmatprep.subr.mxu0 0.0
        %831 = vmatpush1.msra.mxu0 0.0
        %832 = vmatprep.subr.mxu0 0.0
        %833 = vmatpush1.msra.mxu0 0.0
        %834 = vmatprep.subr.mxu0 0.0
        %835 = vmatpush1.msra.mxu0 0.0
        %836 = vmatprep.subr.mxu0 0.0
        %837 = vmatpush1.msra.mxu0 0.0
        %838 = vmatprep.subr.mxu0 0.0
        %839 = vmatpush1.msra.mxu0 0.0
        %840 = vmatprep.subr.mxu0 0.0
        %841 = vmatpush1.msra.mxu0 0.0
        %842 = vmatprep.subr.mxu0 0.0
        %843 = vmatpush1.msra.mxu0 0.0
        %844 = vmatprep.subr.mxu0 0.0
        %845 = vmatpush1.msra.mxu0 0.0
        %846 = vmatprep.subr.mxu0 0.0
        %847 = vmatpush1.msra.mxu0 0.0
        %848 = vmatprep.subr.mxu0 0.0
        %849 = vmatpush1.msra.mxu0 0.0
        %850 = vmatprep.subr.mxu0 0.0
        %851 = vmatpush1.msra.mxu0 0.0
        %852 = vmatprep.subr.mxu0 0.0
        %853 = vmatpush1.msra.mxu0 0.0
        %854 = vmatprep.subr.mxu0 0.0
        %855 = vmatpush1.msra.mxu0 0.0
        %856 = vmatprep.subr.mxu0 0.0
        %857 = vmatpush1.msra.mxu0 0.0
        %858 = vmatprep.subr.mxu0 0.0
        %859 = vmatpush1.msra.mxu0 0.0
        %860 = vmatprep.subr.mxu0 0.0
        %861 = vmatpush1.msra.mxu0 0.0
        %862 = vmatprep.subr.mxu0 0.0
        %863 = vmatpush1.msra.mxu0 0.0
        %864 = vmatprep.mubr.f32.mxu0 0.0
        %865 = vmatmul.mubr.f32.gmra.mrb[0].mxu0 %v798
        %v866 = vpop.f32.mrb[0].mxu0
        %v867 = vadd.f32 0.0, %v866
        %v868 = vpop.f32.mrb[0].mxu0
        %869 = vdwg.mxu0
        %870 = vrot.lane.b32.xlu0 %v617, 120
        %v871 = vpop.permute.xlu0 %870
        %872 = vrot.lane.b32.xlu0 %v702, 88
        %v873 = vpop.permute.xlu0 %872
        %v874 = vsel %vm706, %v871, 0
        %v876 = vsel %vm706, %v873, 0
        %878 = vmatprep.subr.mxu0 0.0
        %879 = vmatpush1.xpose.msra.mxu0 %v876
        %880 = vmatprep.subr.mxu0 0.0
        %881 = vmatpush1.xpose.msra.mxu0 0.0
        %882 = vmatprep.subr.mxu0 0.0
        %883 = vmatpush1.xpose.msra.mxu0 0.0
        %884 = vmatprep.subr.mxu0 0.0
        %885 = vmatpush1.xpose.msra.mxu0 0.0
        %886 = vmatprep.subr.mxu0 0.0
        %887 = vmatpush1.xpose.msra.mxu0 0.0
        %888 = vmatprep.subr.mxu0 0.0
        %889 = vmatpush1.xpose.msra.mxu0 0.0
        %890 = vmatprep.subr.mxu0 0.0
        %891 = vmatpush1.xpose.msra.mxu0 0.0
        %892 = vmatprep.subr.mxu0 0.0
        %893 = vmatpush1.xpose.msra.mxu0 0.0
        %894 = vmatprep.subr.mxu0 0.0
        %895 = vmatpush1.xpose.msra.mxu0 0.0
        %896 = vmatprep.subr.mxu0 0.0
        %897 = vmatpush1.xpose.msra.mxu0 0.0
        %898 = vmatprep.subr.mxu0 0.0
        %899 = vmatpush1.xpose.msra.mxu0 0.0
        %900 = vmatprep.subr.mxu0 0.0
        %901 = vmatpush1.xpose.msra.mxu0 0.0
        %902 = vmatprep.subr.mxu0 0.0
        %903 = vmatpush1.xpose.msra.mxu0 0.0
        %904 = vmatprep.subr.mxu0 0.0
        %905 = vmatpush1.xpose.msra.mxu0 0.0
        %906 = vmatprep.subr.mxu0 0.0
        %907 = vmatpush1.xpose.msra.mxu0 0.0
        %908 = vmatprep.subr.mxu0 0.0
        %909 = vmatpush1.xpose.msra.mxu0 0.0
        %910 = vmatprep.subr.mxu0 0.0
        %911 = vmatpush1.xpose.msra.mxu0 0.0
        %912 = vmatprep.subr.mxu0 0.0
        %913 = vmatpush1.xpose.msra.mxu0 0.0
        %914 = vmatprep.subr.mxu0 0.0
        %915 = vmatpush1.xpose.msra.mxu0 0.0
        %916 = vmatprep.subr.mxu0 0.0
        %917 = vmatpush1.xpose.msra.mxu0 0.0
        %918 = vmatprep.subr.mxu0 0.0
        %919 = vmatpush1.xpose.msra.mxu0 0.0
        %920 = vmatprep.subr.mxu0 0.0
        %921 = vmatpush1.xpose.msra.mxu0 0.0
        %922 = vmatprep.subr.mxu0 0.0
        %923 = vmatpush1.xpose.msra.mxu0 0.0
        %924 = vmatprep.subr.mxu0 0.0
        %925 = vmatpush1.xpose.msra.mxu0 0.0
        %926 = vmatprep.subr.mxu0 0.0
        %927 = vmatpush1.xpose.msra.mxu0 0.0
        %928 = vmatprep.subr.mxu0 0.0
        %929 = vmatpush1.xpose.msra.mxu0 0.0
        %930 = vmatprep.subr.mxu0 0.0
        %931 = vmatpush1.xpose.msra.mxu0 0.0
        %932 = vmatprep.subr.mxu0 0.0
        %933 = vmatpush1.xpose.msra.mxu0 0.0
        %934 = vmatprep.subr.mxu0 0.0
        %935 = vmatpush1.xpose.msra.mxu0 0.0
        %936 = vmatprep.subr.mxu0 0.0
        %937 = vmatpush1.xpose.msra.mxu0 0.0
        %938 = vmatprep.subr.mxu0 0.0
        %939 = vmatpush1.xpose.msra.mxu0 0.0
        %940 = vmatprep.subr.mxu0 0.0
        %941 = vmatpush1.xpose.msra.mxu0 0.0
        %942 = vmatprep.mubr.f32.mxu0 0.0
        %943 = vmatmul.mubr.f32.gmra.mrb[0].mxu0 %v874
        %v944 = vpop.f32.mrb[0].mxu0
        %v945 = vadd.f32 0.0, %v944
        %v946 = vpop.f32.mrb[0].mxu0
        %947 = vdwg.mxu0
        %v948 = vmul.f32 %v945, 0.35355338
        %v949 = vsel %vm706, %v948, -inf
        %950 = vmax.xlane.f32.xlu0 %v949
        %v951 = vpop.xlane.xlu0 %950
        %v952 = vsub.f32 %v948, %v951
        %v953 = vmul.f32 %v952, 1.442695
        %v954 = vpow.pop %v953
        %v955 = vsel %vm706, %v954, 0.0
        %956 = vadd.xlane.f32.xlu0 %v955
        %v957 = vpop.xlane.xlu0 %956
        %v958 = vrcp.pop %v957
        %v959 = vmul.f32 %v954, %v958
        %960 = vrot.lane.b32.xlu0 %v539, 56
        %v961 = vpop.permute.xlu0 %960
        %v964 = vsel %vm706, %v959, 0
        %966 = vmatprep.subr.mxu0 0.0
        %967 = vmatpush1.msra.mxu0 %v961
        %968 = vmatprep.subr.mxu0 0.0
        %969 = vmatpush1.msra.mxu0 0.0
        %970 = vmatprep.subr.mxu0 0.0
        %971 = vmatpush1.msra.mxu0 0.0
        %972 = vmatprep.subr.mxu0 0.0
        %973 = vmatpush1.msra.mxu0 0.0
        %974 = vmatprep.subr.mxu0 0.0
        %975 = vmatpush1.msra.mxu0 0.0
        %976 = vmatprep.subr.mxu0 0.0
        %977 = vmatpush1.msra.mxu0 0.0
        %978 = vmatprep.subr.mxu0 0.0
        %979 = vmatpush1.msra.mxu0 0.0
        %980 = vmatprep.subr.mxu0 0.0
        %981 = vmatpush1.msra.mxu0 0.0
        %982 = vmatprep.subr.mxu0 0.0
        %983 = vmatpush1.msra.mxu0 0.0
        %984 = vmatprep.subr.mxu0 0.0
        %985 = vmatpush1.msra.mxu0 0.0
        %986 = vmatprep.subr.mxu0 0.0
        %987 = vmatpush1.msra.mxu0 0.0
        %988 = vmatprep.subr.mxu0 0.0
        %989 = vmatpush1.msra.mxu0 0.0
        %990 = vmatprep.subr.mxu0 0.0
        %991 = vmatpush1.msra.mxu0 0.0
        %992 = vmatprep.subr.mxu0 0.0
        %993 = vmatpush1.msra.mxu0 0.0
        %994 = vmatprep.subr.mxu0 0.0
        %995 = vmatpush1.msra.mxu0 0.0
        %996 = vmatprep.subr.mxu0 0.0
        %997 = vmatpush1.msra.mxu0 0.0
        %998 = vmatprep.subr.mxu0 0.0
        %999 = vmatpush1.msra.mxu0 0.0
        %1000 = vmatprep.subr.mxu0 0.0
        %1001 = vmatpush1.msra.mxu0 0.0
        %1002 = vmatprep.subr.mxu0 0.0
        %1003 = vmatpush1.msra.mxu0 0.0
        %1004 = vmatprep.subr.mxu0 0.0
        %1005 = vmatpush1.msra.mxu0 0.0
        %1006 = vmatprep.subr.mxu0 0.0
        %1007 = vmatpush1.msra.mxu0 0.0
        %1008 = vmatprep.subr.mxu0 0.0
        %1009 = vmatpush1.msra.mxu0 0.0
        %1010 = vmatprep.subr.mxu0 0.0
        %1011 = vmatpush1.msra.mxu0 0.0
        %1012 = vmatprep.subr.mxu0 0.0
        %1013 = vmatpush1.msra.mxu0 0.0
        %1014 = vmatprep.subr.mxu0 0.0
        %1015 = vmatpush1.msra.mxu0 0.0
        %1016 = vmatprep.subr.mxu0 0.0
        %1017 = vmatpush1.msra.mxu0 0.0
        %1018 = vmatprep.subr.mxu0 0.0
        %1019 = vmatpush1.msra.mxu0 0.0
        %1020 = vmatprep.subr.mxu0 0.0
        %1021 = vmatpush1.msra.mxu0 0.0
        %1022 = vmatprep.subr.mxu0 0.0
        %1023 = vmatpush1.msra.mxu0 0.0
        %1024 = vmatprep.subr.mxu0 0.0
        %1025 = vmatpush1.msra.mxu0 0.0
        %1026 = vmatprep.subr.mxu0 0.0
        %1027 = vmatpush1.msra.mxu0 0.0
        %1028 = vmatprep.subr.mxu0 0.0
        %1029 = vmatpush1.msra.mxu0 0.0
        %1030 = vmatprep.mubr.f32.mxu0 0.0
        %1031 = vmatmul.mubr.f32.gmra.mrb[0].mxu0 %v964
        %v1032 = vpop.f32.mrb[0].mxu0
        %v1033 = vadd.f32 0.0, %v1032
        %v1034 = vpop.f32.mrb[0].mxu0
        %1035 = vdwg.mxu0
        %v1037 = vsel %vm706, %v1033, 0
        %1039 = vmatprep.subr.mxu0 0.0
        %1040 = vmatpush1.msra.mxu0 %v429
        %1041 = vmatprep.subr.mxu0 0.0
        %1042 = vmatpush1.msra.mxu0 0.0
        %1043 = vmatprep.subr.mxu0 0.0
        %1044 = vmatpush1.msra.mxu0 0.0
        %1045 = vmatprep.subr.mxu0 0.0
        %1046 = vmatpush1.msra.mxu0 0.0
        %1047 = vmatprep.subr.mxu0 0.0
        %1048 = vmatpush1.msra.mxu0 0.0
        %1049 = vmatprep.subr.mxu0 0.0
        %1050 = vmatpush1.msra.mxu0 0.0
        %1051 = vmatprep.subr.mxu0 0.0
        %1052 = vmatpush1.msra.mxu0 0.0
        %1053 = vmatprep.subr.mxu0 0.0
        %1054 = vmatpush1.msra.mxu0 0.0
        %1055 = vmatprep.subr.mxu0 0.0
        %1056 = vmatpush1.msra.mxu0 0.0
        %1057 = vmatprep.subr.mxu0 0.0
        %1058 = vmatpush1.msra.mxu0 0.0
        %1059 = vmatprep.subr.mxu0 0.0
        %1060 = vmatpush1.msra.mxu0 0.0
        %1061 = vmatprep.subr.mxu0 0.0
        %1062 = vmatpush1.msra.mxu0 0.0
        %1063 = vmatprep.subr.mxu0 0.0
        %1064 = vmatpush1.msra.mxu0 0.0
        %1065 = vmatprep.subr.mxu0 0.0
        %1066 = vmatpush1.msra.mxu0 0.0
        %1067 = vmatprep.subr.mxu0 0.0
        %1068 = vmatpush1.msra.mxu0 0.0
        %1069 = vmatprep.subr.mxu0 0.0
        %1070 = vmatpush1.msra.mxu0 0.0
        %1071 = vmatprep.subr.mxu0 0.0
        %1072 = vmatpush1.msra.mxu0 0.0
        %1073 = vmatprep.subr.mxu0 0.0
        %1074 = vmatpush1.msra.mxu0 0.0
        %1075 = vmatprep.subr.mxu0 0.0
        %1076 = vmatpush1.msra.mxu0 0.0
        %1077 = vmatprep.subr.mxu0 0.0
        %1078 = vmatpush1.msra.mxu0 0.0
        %1079 = vmatprep.subr.mxu0 0.0
        %1080 = vmatpush1.msra.mxu0 0.0
        %1081 = vmatprep.subr.mxu0 0.0
        %1082 = vmatpush1.msra.mxu0 0.0
        %1083 = vmatprep.subr.mxu0 0.0
        %1084 = vmatpush1.msra.mxu0 0.0
        %1085 = vmatprep.subr.mxu0 0.0
        %1086 = vmatpush1.msra.mxu0 0.0
        %1087 = vmatprep.subr.mxu0 0.0
        %1088 = vmatpush1.msra.mxu0 0.0
        %1089 = vmatprep.subr.mxu0 0.0
        %1090 = vmatpush1.msra.mxu0 0.0
        %1091 = vmatprep.subr.mxu0 0.0
        %1092 = vmatpush1.msra.mxu0 0.0
        %1093 = vmatprep.subr.mxu0 0.0
        %1094 = vmatpush1.msra.mxu0 0.0
        %1095 = vmatprep.subr.mxu0 0.0
        %1096 = vmatpush1.msra.mxu0 0.0
        %1097 = vmatprep.subr.mxu0 0.0
        %1098 = vmatpush1.msra.mxu0 0.0
        %1099 = vmatprep.subr.mxu0 0.0
        %1100 = vmatpush1.msra.mxu0 0.0
        %1101 = vmatprep.subr.mxu0 0.0
        %1102 = vmatpush1.msra.mxu0 0.0
        %1103 = vmatprep.mubr.f32.mxu0 0.0
        %1104 = vmatmul.mubr.f32.gmra.mrb[0].mxu0 %v1037
        %v1105 = vpop.f32.mrb[0].mxu0
        %v1106 = vadd.f32 0.0, %v1105
        %v1107 = vpop.f32.mrb[0].mxu0
        %1108 = vdwg.mxu0
        %v1110 = vsel %vm706, %v867, 0
        %1112 = vmatprep.subr.mxu0 0.0
        %1113 = vmatpush1.msra.mxu0 %v428
        %1114 = vmatprep.subr.mxu0 0.0
        %1115 = vmatpush1.msra.mxu0 0.0
        %1116 = vmatprep.subr.mxu0 0.0
        %1117 = vmatpush1.msra.mxu0 0.0
        %1118 = vmatprep.subr.mxu0 0.0
        %1119 = vmatpush1.msra.mxu0 0.0
        %1120 = vmatprep.subr.mxu0 0.0
        %1121 = vmatpush1.msra.mxu0 0.0
        %1122 = vmatprep.subr.mxu0 0.0
        %1123 = vmatpush1.msra.mxu0 0.0
        %1124 = vmatprep.subr.mxu0 0.0
        %1125 = vmatpush1.msra.mxu0 0.0
        %1126 = vmatprep.subr.mxu0 0.0
        %1127 = vmatpush1.msra.mxu0 0.0
        %1128 = vmatprep.subr.mxu0 0.0
        %1129 = vmatpush1.msra.mxu0 0.0
        %1130 = vmatprep.subr.mxu0 0.0
        %1131 = vmatpush1.msra.mxu0 0.0
        %1132 = vmatprep.subr.mxu0 0.0
        %1133 = vmatpush1.msra.mxu0 0.0
        %1134 = vmatprep.subr.mxu0 0.0
        %1135 = vmatpush1.msra.mxu0 0.0
        %1136 = vmatprep.subr.mxu0 0.0
        %1137 = vmatpush1.msra.mxu0 0.0
        %1138 = vmatprep.subr.mxu0 0.0
        %1139 = vmatpush1.msra.mxu0 0.0
        %1140 = vmatprep.subr.mxu0 0.0
        %1141 = vmatpush1.msra.mxu0 0.0
        %1142 = vmatprep.subr.mxu0 0.0
        %1143 = vmatpush1.msra.mxu0 0.0
        %1144 = vmatprep.subr.mxu0 0.0
        %1145 = vmatpush1.msra.mxu0 0.0
        %1146 = vmatprep.subr.mxu0 0.0
        %1147 = vmatpush1.msra.mxu0 0.0
        %1148 = vmatprep.subr.mxu0 0.0
        %1149 = vmatpush1.msra.mxu0 0.0
        %1150 = vmatprep.subr.mxu0 0.0
        %1151 = vmatpush1.msra.mxu0 0.0
        %1152 = vmatprep.subr.mxu0 0.0
        %1153 = vmatpush1.msra.mxu0 0.0
        %1154 = vmatprep.subr.mxu0 0.0
        %1155 = vmatpush1.msra.mxu0 0.0
        %1156 = vmatprep.subr.mxu0 0.0
        %1157 = vmatpush1.msra.mxu0 0.0
        %1158 = vmatprep.subr.mxu0 0.0
        %1159 = vmatpush1.msra.mxu0 0.0
        %1160 = vmatprep.subr.mxu0 0.0
        %1161 = vmatpush1.msra.mxu0 0.0
        %1162 = vmatprep.subr.mxu0 0.0
        %1163 = vmatpush1.msra.mxu0 0.0
        %1164 = vmatprep.subr.mxu0 0.0
        %1165 = vmatpush1.msra.mxu0 0.0
        %1166 = vmatprep.subr.mxu0 0.0
        %1167 = vmatpush1.msra.mxu0 0.0
        %1168 = vmatprep.subr.mxu0 0.0
        %1169 = vmatpush1.msra.mxu0 0.0
        %1170 = vmatprep.subr.mxu0 0.0
        %1171 = vmatpush1.msra.mxu0 0.0
        %1172 = vmatprep.subr.mxu0 0.0
        %1173 = vmatpush1.msra.mxu0 0.0
        %1174 = vmatprep.subr.mxu0 0.0
        %1175 = vmatpush1.msra.mxu0 0.0
        %1176 = vmatprep.mubr.f32.mxu0 0.0
        %1177 = vmatmul.mubr.f32.gmra.mrb[0].mxu0 %v1110
        %v1178 = vpop.f32.mrb[0].mxu0
        %v1179 = vadd.f32 %v1106, %v1178
        %v1180 = vpop.f32.mrb[0].mxu0
        %1181 = vdwg.mxu0
        %1182 = vrot.lane.b32.xlu0 %v617, 112
        %v1183 = vpop.permute.xlu0 %1182
        %1184 = vrot.lane.b32.xlu0 %v702, 80
        %v1185 = vpop.permute.xlu0 %1184
        %v1186 = vsel %vm706, %v1183, 0
        %v1188 = vsel %vm706, %v1185, 0
        %1190 = vmatprep.subr.mxu0 0.0
        %1191 = vmatpush1.xpose.msra.mxu0 %v1188
        %1192 = vmatprep.subr.mxu0 0.0
        %1193 = vmatpush1.xpose.msra.mxu0 0.0
        %1194 = vmatprep.subr.mxu0 0.0
        %1195 = vmatpush1.xpose.msra.mxu0 0.0
        %1196 = vmatprep.subr.mxu0 0.0
        %1197 = vmatpush1.xpose.msra.mxu0 0.0
        %1198 = vmatprep.subr.mxu0 0.0
        %1199 = vmatpush1.xpose.msra.mxu0 0.0
        %1200 = vmatprep.subr.mxu0 0.0
        %1201 = vmatpush1.xpose.msra.mxu0 0.0
        %1202 = vmatprep.subr.mxu0 0.0
        %1203 = vmatpush1.xpose.msra.mxu0 0.0
        %1204 = vmatprep.subr.mxu0 0.0
        %1205 = vmatpush1.xpose.msra.mxu0 0.0
        %1206 = vmatprep.subr.mxu0 0.0
        %1207 = vmatpush1.xpose.msra.mxu0 0.0
        %1208 = vmatprep.subr.mxu0 0.0
        %1209 = vmatpush1.xpose.msra.mxu0 0.0
        %1210 = vmatprep.subr.mxu0 0.0
        %1211 = vmatpush1.xpose.msra.mxu0 0.0
        %1212 = vmatprep.subr.mxu0 0.0
        %1213 = vmatpush1.xpose.msra.mxu0 0.0
        %1214 = vmatprep.subr.mxu0 0.0
        %1215 = vmatpush1.xpose.msra.mxu0 0.0
        %1216 = vmatprep.subr.mxu0 0.0
        %1217 = vmatpush1.xpose.msra.mxu0 0.0
        %1218 = vmatprep.subr.mxu0 0.0
        %1219 = vmatpush1.xpose.msra.mxu0 0.0
        %1220 = vmatprep.subr.mxu0 0.0
        %1221 = vmatpush1.xpose.msra.mxu0 0.0
        %1222 = vmatprep.subr.mxu0 0.0
        %1223 = vmatpush1.xpose.msra.mxu0 0.0
        %1224 = vmatprep.subr.mxu0 0.0
        %1225 = vmatpush1.xpose.msra.mxu0 0.0
        %1226 = vmatprep.subr.mxu0 0.0
        %1227 = vmatpush1.xpose.msra.mxu0 0.0
        %1228 = vmatprep.subr.mxu0 0.0
        %1229 = vmatpush1.xpose.msra.mxu0 0.0
        %1230 = vmatprep.subr.mxu0 0.0
        %1231 = vmatpush1.xpose.msra.mxu0 0.0
        %1232 = vmatprep.subr.mxu0 0.0
        %1233 = vmatpush1.xpose.msra.mxu0 0.0
        %1234 = vmatprep.subr.mxu0 0.0
        %1235 = vmatpush1.xpose.msra.mxu0 0.0
        %1236 = vmatprep.subr.mxu0 0.0
        %1237 = vmatpush1.xpose.msra.mxu0 0.0
        %1238 = vmatprep.subr.mxu0 0.0
        %1239 = vmatpush1.xpose.msra.mxu0 0.0
        %1240 = vmatprep.subr.mxu0 0.0
        %1241 = vmatpush1.xpose.msra.mxu0 0.0
        %1242 = vmatprep.subr.mxu0 0.0
        %1243 = vmatpush1.xpose.msra.mxu0 0.0
        %1244 = vmatprep.subr.mxu0 0.0
        %1245 = vmatpush1.xpose.msra.mxu0 0.0
        %1246 = vmatprep.subr.mxu0 0.0
        %1247 = vmatpush1.xpose.msra.mxu0 0.0
        %1248 = vmatprep.subr.mxu0 0.0
        %1249 = vmatpush1.xpose.msra.mxu0 0.0
        %1250 = vmatprep.subr.mxu0 0.0
        %1251 = vmatpush1.xpose.msra.mxu0 0.0
        %1252 = vmatprep.subr.mxu0 0.0
        %1253 = vmatpush1.xpose.msra.mxu0 0.0
        %1254 = vmatprep.mubr.f32.mxu0 0.0
        %1255 = vmatmul.mubr.f32.gmra.mrb[0].mxu0 %v1186
        %v1256 = vpop.f32.mrb[0].mxu0
        %v1257 = vadd.f32 0.0, %v1256
        %v1258 = vpop.f32.mrb[0].mxu0
        %1259 = vdwg.mxu0
        %v1260 = vmul.f32 %v1257, 0.35355338
        %v1261 = vsel %vm706, %v1260, -inf
        %1262 = vmax.xlane.f32.xlu0 %v1261
        %v1263 = vpop.xlane.xlu0 %1262
        %v1264 = vsub.f32 %v1260, %v1263
        %v1265 = vmul.f32 %v1264, 1.442695
        %v1266 = vpow.pop %v1265
        %v1267 = vsel %vm706, %v1266, 0.0
        %1268 = vadd.xlane.f32.xlu0 %v1267
        %v1269 = vpop.xlane.xlu0 %1268
        %v1270 = vrcp.pop %v1269
        %v1271 = vmul.f32 %v1266, %v1270
        %1272 = vrot.lane.b32.xlu0 %v539, 48
        %v1273 = vpop.permute.xlu0 %1272
        %v1276 = vsel %vm706, %v1271, 0
        %1278 = vmatprep.subr.mxu0 0.0
        %1279 = vmatpush1.msra.mxu0 %v1273
        %1280 = vmatprep.subr.mxu0 0.0
        %1281 = vmatpush1.msra.mxu0 0.0
        %1282 = vmatprep.subr.mxu0 0.0
        %1283 = vmatpush1.msra.mxu0 0.0
        %1284 = vmatprep.subr.mxu0 0.0
        %1285 = vmatpush1.msra.mxu0 0.0
        %1286 = vmatprep.subr.mxu0 0.0
        %1287 = vmatpush1.msra.mxu0 0.0
        %1288 = vmatprep.subr.mxu0 0.0
        %1289 = vmatpush1.msra.mxu0 0.0
        %1290 = vmatprep.subr.mxu0 0.0
        %1291 = vmatpush1.msra.mxu0 0.0
        %1292 = vmatprep.subr.mxu0 0.0
        %1293 = vmatpush1.msra.mxu0 0.0
        %1294 = vmatprep.subr.mxu0 0.0
        %1295 = vmatpush1.msra.mxu0 0.0
        %1296 = vmatprep.subr.mxu0 0.0
        %1297 = vmatpush1.msra.mxu0 0.0
        %1298 = vmatprep.subr.mxu0 0.0
        %1299 = vmatpush1.msra.mxu0 0.0
        %1300 = vmatprep.subr.mxu0 0.0
        %1301 = vmatpush1.msra.mxu0 0.0
        %1302 = vmatprep.subr.mxu0 0.0
        %1303 = vmatpush1.msra.mxu0 0.0
        %1304 = vmatprep.subr.mxu0 0.0
        %1305 = vmatpush1.msra.mxu0 0.0
        %1306 = vmatprep.subr.mxu0 0.0
        %1307 = vmatpush1.msra.mxu0 0.0
        %1308 = vmatprep.subr.mxu0 0.0
        %1309 = vmatpush1.msra.mxu0 0.0
        %1310 = vmatprep.subr.mxu0 0.0
        %1311 = vmatpush1.msra.mxu0 0.0
        %1312 = vmatprep.subr.mxu0 0.0
        %1313 = vmatpush1.msra.mxu0 0.0
        %1314 = vmatprep.subr.mxu0 0.0
        %1315 = vmatpush1.msra.mxu0 0.0
        %1316 = vmatprep.subr.mxu0 0.0
        %1317 = vmatpush1.msra.mxu0 0.0
        %1318 = vmatprep.subr.mxu0 0.0
        %1319 = vmatpush1.msra.mxu0 0.0
        %1320 = vmatprep.subr.mxu0 0.0
        %1321 = vmatpush1.msra.mxu0 0.0
        %1322 = vmatprep.subr.mxu0 0.0
        %1323 = vmatpush1.msra.mxu0 0.0
        %1324 = vmatprep.subr.mxu0 0.0
        %1325 = vmatpush1.msra.mxu0 0.0
        %1326 = vmatprep.subr.mxu0 0.0
        %1327 = vmatpush1.msra.mxu0 0.0
        %1328 = vmatprep.subr.mxu0 0.0
        %1329 = vmatpush1.msra.mxu0 0.0
        %1330 = vmatprep.subr.mxu0 0.0
        %1331 = vmatpush1.msra.mxu0 0.0
        %1332 = vmatprep.subr.mxu0 0.0
        %1333 = vmatpush1.msra.mxu0 0.0
        %1334 = vmatprep.subr.mxu0 0.0
        %1335 = vmatpush1.msra.mxu0 0.0
        %1336 = vmatprep.subr.mxu0 0.0
        %1337 = vmatpush1.msra.mxu0 0.0
        %1338 = vmatprep.subr.mxu0 0.0
        %1339 = vmatpush1.msra.mxu0 0.0
        %1340 = vmatprep.subr.mxu0 0.0
        %1341 = vmatpush1.msra.mxu0 0.0
        %1342 = vmatprep.mubr.f32.mxu0 0.0
        %1343 = vmatmul.mubr.f32.gmra.mrb[0].mxu0 %v1276
        %v1344 = vpop.f32.mrb[0].mxu0
        %v1345 = vadd.f32 0.0, %v1344
        %v1346 = vpop.f32.mrb[0].mxu0
        %1347 = vdwg.mxu0
        %v1349 = vsel %vm706, %v1345, 0
        %1351 = vmatprep.subr.mxu0 0.0
        %1352 = vmatpush1.msra.mxu0 %v430
        %1353 = vmatprep.subr.mxu0 0.0
        %1354 = vmatpush1.msra.mxu0 0.0
        %1355 = vmatprep.subr.mxu0 0.0
        %1356 = vmatpush1.msra.mxu0 0.0
        %1357 = vmatprep.subr.mxu0 0.0
        %1358 = vmatpush1.msra.mxu0 0.0
        %1359 = vmatprep.subr.mxu0 0.0
        %1360 = vmatpush1.msra.mxu0 0.0
        %1361 = vmatprep.subr.mxu0 0.0
        %1362 = vmatpush1.msra.mxu0 0.0
        %1363 = vmatprep.subr.mxu0 0.0
        %1364 = vmatpush1.msra.mxu0 0.0
        %1365 = vmatprep.subr.mxu0 0.0
        %1366 = vmatpush1.msra.mxu0 0.0
        %1367 = vmatprep.subr.mxu0 0.0
        %1368 = vmatpush1.msra.mxu0 0.0
        %1369 = vmatprep.subr.mxu0 0.0
        %1370 = vmatpush1.msra.mxu0 0.0
        %1371 = vmatprep.subr.mxu0 0.0
        %1372 = vmatpush1.msra.mxu0 0.0
        %1373 = vmatprep.subr.mxu0 0.0
        %1374 = vmatpush1.msra.mxu0 0.0
        %1375 = vmatprep.subr.mxu0 0.0
        %1376 = vmatpush1.msra.mxu0 0.0
        %1377 = vmatprep.subr.mxu0 0.0
        %1378 = vmatpush1.msra.mxu0 0.0
        %1379 = vmatprep.subr.mxu0 0.0
        %1380 = vmatpush1.msra.mxu0 0.0
        %1381 = vmatprep.subr.mxu0 0.0
        %1382 = vmatpush1.msra.mxu0 0.0
        %1383 = vmatprep.subr.mxu0 0.0
        %1384 = vmatpush1.msra.mxu0 0.0
        %1385 = vmatprep.subr.mxu0 0.0
        %1386 = vmatpush1.msra.mxu0 0.0
        %1387 = vmatprep.subr.mxu0 0.0
        %1388 = vmatpush1.msra.mxu0 0.0
        %1389 = vmatprep.subr.mxu0 0.0
        %1390 = vmatpush1.msra.mxu0 0.0
        %1391 = vmatprep.subr.mxu0 0.0
        %1392 = vmatpush1.msra.mxu0 0.0
        %1393 = vmatprep.subr.mxu0 0.0
        %1394 = vmatpush1.msra.mxu0 0.0
        %1395 = vmatprep.subr.mxu0 0.0
        %1396 = vmatpush1.msra.mxu0 0.0
        %1397 = vmatprep.subr.mxu0 0.0
        %1398 = vmatpush1.msra.mxu0 0.0
        %1399 = vmatprep.subr.mxu0 0.0
        %1400 = vmatpush1.msra.mxu0 0.0
        %1401 = vmatprep.subr.mxu0 0.0
        %1402 = vmatpush1.msra.mxu0 0.0
        %1403 = vmatprep.subr.mxu0 0.0
        %1404 = vmatpush1.msra.mxu0 0.0
        %1405 = vmatprep.subr.mxu0 0.0
        %1406 = vmatpush1.msra.mxu0 0.0
        %1407 = vmatprep.subr.mxu0 0.0
        %1408 = vmatpush1.msra.mxu0 0.0
        %1409 = vmatprep.subr.mxu0 0.0
        %1410 = vmatpush1.msra.mxu0 0.0
        %1411 = vmatprep.subr.mxu0 0.0
        %1412 = vmatpush1.msra.mxu0 0.0
        %1413 = vmatprep.subr.mxu0 0.0
        %1414 = vmatpush1.msra.mxu0 0.0
        %1415 = vmatprep.mubr.f32.mxu0 0.0
        %1416 = vmatmul.mubr.f32.gmra.mrb[0].mxu0 %v1349
        %v1417 = vpop.f32.mrb[0].mxu0
        %v1418 = vadd.f32 0.0, %v1417
        %v1419 = vpop.f32.mrb[0].mxu0
        %1420 = vdwg.mxu0
        %v1421 = vadd.f32 %v1179, %v1418
        %1422 = vrot.lane.b32.xlu0 %v617, 104
        %v1423 = vpop.permute.xlu0 %1422
        %1424 = vrot.lane.b32.xlu0 %v702, 72
        %v1425 = vpop.permute.xlu0 %1424
        %v1426 = vsel %vm706, %v1423, 0
        %v1428 = vsel %vm706, %v1425, 0
        %1430 = vmatprep.subr.mxu0 0.0
        %1431 = vmatpush1.xpose.msra.mxu0 %v1428
        %1432 = vmatprep.subr.mxu0 0.0
        %1433 = vmatpush1.xpose.msra.mxu0 0.0
        %1434 = vmatprep.subr.mxu0 0.0
        %1435 = vmatpush1.xpose.msra.mxu0 0.0
        %1436 = vmatprep.subr.mxu0 0.0
        %1437 = vmatpush1.xpose.msra.mxu0 0.0
        %1438 = vmatprep.subr.mxu0 0.0
        %1439 = vmatpush1.xpose.msra.mxu0 0.0
        %1440 = vmatprep.subr.mxu0 0.0
        %1441 = vmatpush1.xpose.msra.mxu0 0.0
        %1442 = vmatprep.subr.mxu0 0.0
        %1443 = vmatpush1.xpose.msra.mxu0 0.0
        %1444 = vmatprep.subr.mxu0 0.0
        %1445 = vmatpush1.xpose.msra.mxu0 0.0
        %1446 = vmatprep.subr.mxu0 0.0
        %1447 = vmatpush1.xpose.msra.mxu0 0.0
        %1448 = vmatprep.subr.mxu0 0.0
        %1449 = vmatpush1.xpose.msra.mxu0 0.0
        %1450 = vmatprep.subr.mxu0 0.0
        %1451 = vmatpush1.xpose.msra.mxu0 0.0
        %1452 = vmatprep.subr.mxu0 0.0
        %1453 = vmatpush1.xpose.msra.mxu0 0.0
        %1454 = vmatprep.subr.mxu0 0.0
        %1455 = vmatpush1.xpose.msra.mxu0 0.0
        %1456 = vmatprep.subr.mxu0 0.0
        %1457 = vmatpush1.xpose.msra.mxu0 0.0
        %1458 = vmatprep.subr.mxu0 0.0
        %1459 = vmatpush1.xpose.msra.mxu0 0.0
        %1460 = vmatprep.subr.mxu0 0.0
        %1461 = vmatpush1.xpose.msra.mxu0 0.0
        %1462 = vmatprep.subr.mxu0 0.0
        %1463 = vmatpush1.xpose.msra.mxu0 0.0
        %1464 = vmatprep.subr.mxu0 0.0
        %1465 = vmatpush1.xpose.msra.mxu0 0.0
        %1466 = vmatprep.subr.mxu0 0.0
        %1467 = vmatpush1.xpose.msra.mxu0 0.0
        %1468 = vmatprep.subr.mxu0 0.0
        %1469 = vmatpush1.xpose.msra.mxu0 0.0
        %1470 = vmatprep.subr.mxu0 0.0
        %1471 = vmatpush1.xpose.msra.mxu0 0.0
        %1472 = vmatprep.subr.mxu0 0.0
        %1473 = vmatpush1.xpose.msra.mxu0 0.0
        %1474 = vmatprep.subr.mxu0 0.0
        %1475 = vmatpush1.xpose.msra.mxu0 0.0
        %1476 = vmatprep.subr.mxu0 0.0
        %1477 = vmatpush1.xpose.msra.mxu0 0.0
        %1478 = vmatprep.subr.mxu0 0.0
        %1479 = vmatpush1.xpose.msra.mxu0 0.0
        %1480 = vmatprep.subr.mxu0 0.0
        %1481 = vmatpush1.xpose.msra.mxu0 0.0
        %1482 = vmatprep.subr.mxu0 0.0
        %1483 = vmatpush1.xpose.msra.mxu0 0.0
        %1484 = vmatprep.subr.mxu0 0.0
        %1485 = vmatpush1.xpose.msra.mxu0 0.0
        %1486 = vmatprep.subr.mxu0 0.0
        %1487 = vmatpush1.xpose.msra.mxu0 0.0
        %1488 = vmatprep.subr.mxu0 0.0
        %1489 = vmatpush1.xpose.msra.mxu0 0.0
        %1490 = vmatprep.subr.mxu0 0.0
        %1491 = vmatpush1.xpose.msra.mxu0 0.0
        %1492 = vmatprep.subr.mxu0 0.0
        %1493 = vmatpush1.xpose.msra.mxu0 0.0
        %1494 = vmatprep.mubr.f32.mxu0 0.0
        %1495 = vmatmul.mubr.f32.gmra.mrb[0].mxu0 %v1426
        %v1496 = vpop.f32.mrb[0].mxu0
        %v1497 = vadd.f32 0.0, %v1496
        %v1498 = vpop.f32.mrb[0].mxu0
        %1499 = vdwg.mxu0
        %v1500 = vmul.f32 %v1497, 0.35355338
        %v1501 = vsel %vm706, %v1500, -inf
        %1502 = vmax.xlane.f32.xlu0 %v1501
        %v1503 = vpop.xlane.xlu0 %1502
        %v1504 = vsub.f32 %v1500, %v1503
        %v1505 = vmul.f32 %v1504, 1.442695
        %v1506 = vpow.pop %v1505
        %v1507 = vsel %vm706, %v1506, 0.0
        %1508 = vadd.xlane.f32.xlu0 %v1507
        %v1509 = vpop.xlane.xlu0 %1508
        %v1510 = vrcp.pop %v1509
        %v1511 = vmul.f32 %v1506, %v1510
        %1512 = vrot.lane.b32.xlu0 %v539, 40
        %v1513 = vpop.permute.xlu0 %1512
        %v1516 = vsel %vm706, %v1511, 0
        %1518 = vmatprep.subr.mxu0 0.0
        %1519 = vmatpush1.msra.mxu0 %v1513
        %1520 = vmatprep.subr.mxu0 0.0
        %1521 = vmatpush1.msra.mxu0 0.0
        %1522 = vmatprep.subr.mxu0 0.0
        %1523 = vmatpush1.msra.mxu0 0.0
        %1524 = vmatprep.subr.mxu0 0.0
        %1525 = vmatpush1.msra.mxu0 0.0
        %1526 = vmatprep.subr.mxu0 0.0
        %1527 = vmatpush1.msra.mxu0 0.0
        %1528 = vmatprep.subr.mxu0 0.0
        %1529 = vmatpush1.msra.mxu0 0.0
        %1530 = vmatprep.subr.mxu0 0.0
        %1531 = vmatpush1.msra.mxu0 0.0
        %1532 = vmatprep.subr.mxu0 0.0
        %1533 = vmatpush1.msra.mxu0 0.0
        %1534 = vmatprep.subr.mxu0 0.0
        %1535 = vmatpush1.msra.mxu0 0.0
        %1536 = vmatprep.subr.mxu0 0.0
        %1537 = vmatpush1.msra.mxu0 0.0
        %1538 = vmatprep.subr.mxu0 0.0
        %1539 = vmatpush1.msra.mxu0 0.0
        %1540 = vmatprep.subr.mxu0 0.0
        %1541 = vmatpush1.msra.mxu0 0.0
        %1542 = vmatprep.subr.mxu0 0.0
        %1543 = vmatpush1.msra.mxu0 0.0
        %1544 = vmatprep.subr.mxu0 0.0
        %1545 = vmatpush1.msra.mxu0 0.0
        %1546 = vmatprep.subr.mxu0 0.0
        %1547 = vmatpush1.msra.mxu0 0.0
        %1548 = vmatprep.subr.mxu0 0.0
        %1549 = vmatpush1.msra.mxu0 0.0
        %1550 = vmatprep.subr.mxu0 0.0
        %1551 = vmatpush1.msra.mxu0 0.0
        %1552 = vmatprep.subr.mxu0 0.0
        %1553 = vmatpush1.msra.mxu0 0.0
        %1554 = vmatprep.subr.mxu0 0.0
        %1555 = vmatpush1.msra.mxu0 0.0
        %1556 = vmatprep.subr.mxu0 0.0
        %1557 = vmatpush1.msra.mxu0 0.0
        %1558 = vmatprep.subr.mxu0 0.0
        %1559 = vmatpush1.msra.mxu0 0.0
        %1560 = vmatprep.subr.mxu0 0.0
        %1561 = vmatpush1.msra.mxu0 0.0
        %1562 = vmatprep.subr.mxu0 0.0
        %1563 = vmatpush1.msra.mxu0 0.0
        %1564 = vmatprep.subr.mxu0 0.0
        %1565 = vmatpush1.msra.mxu0 0.0
        %1566 = vmatprep.subr.mxu0 0.0
        %1567 = vmatpush1.msra.mxu0 0.0
        %1568 = vmatprep.subr.mxu0 0.0
        %1569 = vmatpush1.msra.mxu0 0.0
        %1570 = vmatprep.subr.mxu0 0.0
        %1571 = vmatpush1.msra.mxu0 0.0
        %1572 = vmatprep.subr.mxu0 0.0
        %1573 = vmatpush1.msra.mxu0 0.0
        %1574 = vmatprep.subr.mxu0 0.0
        %1575 = vmatpush1.msra.mxu0 0.0
        %1576 = vmatprep.subr.mxu0 0.0
        %1577 = vmatpush1.msra.mxu0 0.0
        %1578 = vmatprep.subr.mxu0 0.0
        %1579 = vmatpush1.msra.mxu0 0.0
        %1580 = vmatprep.subr.mxu0 0.0
        %1581 = vmatpush1.msra.mxu0 0.0
        %1582 = vmatprep.mubr.f32.mxu0 0.0
        %1583 = vmatmul.mubr.f32.gmra.mrb[0].mxu0 %v1516
        %v1584 = vpop.f32.mrb[0].mxu0
        %v1585 = vadd.f32 0.0, %v1584
        %v1586 = vpop.f32.mrb[0].mxu0
        %1587 = vdwg.mxu0
        %v1589 = vsel %vm706, %v1585, 0
        %1591 = vmatprep.subr.mxu0 0.0
        %1592 = vmatpush1.msra.mxu0 %v431
        %1593 = vmatprep.subr.mxu0 0.0
        %1594 = vmatpush1.msra.mxu0 0.0
        %1595 = vmatprep.subr.mxu0 0.0
        %1596 = vmatpush1.msra.mxu0 0.0
        %1597 = vmatprep.subr.mxu0 0.0
        %1598 = vmatpush1.msra.mxu0 0.0
        %1599 = vmatprep.subr.mxu0 0.0
        %1600 = vmatpush1.msra.mxu0 0.0
        %1601 = vmatprep.subr.mxu0 0.0
        %1602 = vmatpush1.msra.mxu0 0.0
        %1603 = vmatprep.subr.mxu0 0.0
        %1604 = vmatpush1.msra.mxu0 0.0
        %1605 = vmatprep.subr.mxu0 0.0
        %1606 = vmatpush1.msra.mxu0 0.0
        %1607 = vmatprep.subr.mxu0 0.0
        %1608 = vmatpush1.msra.mxu0 0.0
        %1609 = vmatprep.subr.mxu0 0.0
        %1610 = vmatpush1.msra.mxu0 0.0
        %1611 = vmatprep.subr.mxu0 0.0
        %1612 = vmatpush1.msra.mxu0 0.0
        %1613 = vmatprep.subr.mxu0 0.0
        %1614 = vmatpush1.msra.mxu0 0.0
        %1615 = vmatprep.subr.mxu0 0.0
        %1616 = vmatpush1.msra.mxu0 0.0
        %1617 = vmatprep.subr.mxu0 0.0
        %1618 = vmatpush1.msra.mxu0 0.0
        %1619 = vmatprep.subr.mxu0 0.0
        %1620 = vmatpush1.msra.mxu0 0.0
        %1621 = vmatprep.subr.mxu0 0.0
        %1622 = vmatpush1.msra.mxu0 0.0
        %1623 = vmatprep.subr.mxu0 0.0
        %1624 = vmatpush1.msra.mxu0 0.0
        %1625 = vmatprep.subr.mxu0 0.0
        %1626 = vmatpush1.msra.mxu0 0.0
        %1627 = vmatprep.subr.mxu0 0.0
        %1628 = vmatpush1.msra.mxu0 0.0
        %1629 = vmatprep.subr.mxu0 0.0
        %1630 = vmatpush1.msra.mxu0 0.0
        %1631 = vmatprep.subr.mxu0 0.0
        %1632 = vmatpush1.msra.mxu0 0.0
        %1633 = vmatprep.subr.mxu0 0.0
        %1634 = vmatpush1.msra.mxu0 0.0
        %1635 = vmatprep.subr.mxu0 0.0
        %1636 = vmatpush1.msra.mxu0 0.0
        %1637 = vmatprep.subr.mxu0 0.0
        %1638 = vmatpush1.msra.mxu0 0.0
        %1639 = vmatprep.subr.mxu0 0.0
        %1640 = vmatpush1.msra.mxu0 0.0
        %1641 = vmatprep.subr.mxu0 0.0
        %1642 = vmatpush1.msra.mxu0 0.0
        %1643 = vmatprep.subr.mxu0 0.0
        %1644 = vmatpush1.msra.mxu0 0.0
        %1645 = vmatprep.subr.mxu0 0.0
        %1646 = vmatpush1.msra.mxu0 0.0
        %1647 = vmatprep.subr.mxu0 0.0
        %1648 = vmatpush1.msra.mxu0 0.0
        %1649 = vmatprep.subr.mxu0 0.0
        %1650 = vmatpush1.msra.mxu0 0.0
        %1651 = vmatprep.subr.mxu0 0.0
        %1652 = vmatpush1.msra.mxu0 0.0
        %1653 = vmatprep.subr.mxu0 0.0
        %1654 = vmatpush1.msra.mxu0 0.0
        %1655 = vmatprep.mubr.f32.mxu0 0.0
        %1656 = vmatmul.mubr.f32.gmra.mrb[0].mxu0 %v1589
        %v1657 = vpop.f32.mrb[0].mxu0
        %v1658 = vadd.f32 0.0, %v1657
        %v1659 = vpop.f32.mrb[0].mxu0
        %1660 = vdwg.mxu0
        %v1661 = vadd.f32 %v1421, %v1658
        %v1662 = vadd.f32 %v415, %v1661
        %v1663 = vmul.f32 %v1662, %v1662
        %v1664 = vsel %vm453, %v1663, 0.0
        %1665 = vadd.xlane.f32.xlu0 %v1664
        %v1666 = vpop.xlane.xlu0 %1665
        %v1667 = vmul.f32 %v1666, %v457
        %v1668 = vadd.f32 %v1667, 1e-06
        %v1669 = vrsqrt.pop %v1668
        %v1670 = vmul.f32 %v1662, %v1669
        %v1672 = vlaneseq
        %v1673 = vshrl.u32 %v1672, 7
        %v1674 = vsub.s32 0, %v1673
        %v1675 = vrot.slane %v423, %v1674
        %v1677 = vmul.f32 %v1670, %v1675
        %v1679 = vsel %vm453, %v1677, 0
        %1681 = vmatprep.subr.mxu0 %v433
        %1682 = vmatpush1.msra.mxu0 %v432
        %1683 = vmatprep.subr.mxu0 %v435
        %1684 = vmatpush1.msra.mxu0 %v434
        %1685 = vmatprep.subr.mxu0 %v437
        %1686 = vmatpush1.msra.mxu0 %v436
        %1687 = vmatprep.subr.mxu0 %v439
        %1688 = vmatpush1.msra.mxu0 %v438
        %1689 = vmatprep.subr.mxu0 0.0
        %1690 = vmatpush1.msra.mxu0 0.0
        %1691 = vmatprep.subr.mxu0 0.0
        %1692 = vmatpush1.msra.mxu0 0.0
        %1693 = vmatprep.subr.mxu0 0.0
        %1694 = vmatpush1.msra.mxu0 0.0
        %1695 = vmatprep.subr.mxu0 0.0
        %1696 = vmatpush1.msra.mxu0 0.0
        %1697 = vmatprep.subr.mxu0 0.0
        %1698 = vmatpush1.msra.mxu0 0.0
        %1699 = vmatprep.subr.mxu0 0.0
        %1700 = vmatpush1.msra.mxu0 0.0
        %1701 = vmatprep.subr.mxu0 0.0
        %1702 = vmatpush1.msra.mxu0 0.0
        %1703 = vmatprep.subr.mxu0 0.0
        %1704 = vmatpush1.msra.mxu0 0.0
        %1705 = vmatprep.subr.mxu0 0.0
        %1706 = vmatpush1.msra.mxu0 0.0
        %1707 = vmatprep.subr.mxu0 0.0
        %1708 = vmatpush1.msra.mxu0 0.0
        %1709 = vmatprep.subr.mxu0 0.0
        %1710 = vmatpush1.msra.mxu0 0.0
        %1711 = vmatprep.subr.mxu0 0.0
        %1712 = vmatpush1.msra.mxu0 0.0
        %1713 = vmatprep.subr.mxu0 0.0
        %1714 = vmatpush1.msra.mxu0 0.0
        %1715 = vmatprep.subr.mxu0 0.0
        %1716 = vmatpush1.msra.mxu0 0.0
        %1717 = vmatprep.subr.mxu0 0.0
        %1718 = vmatpush1.msra.mxu0 0.0
        %1719 = vmatprep.subr.mxu0 0.0
        %1720 = vmatpush1.msra.mxu0 0.0
        %1721 = vmatprep.subr.mxu0 0.0
        %1722 = vmatpush1.msra.mxu0 0.0
        %1723 = vmatprep.subr.mxu0 0.0
        %1724 = vmatpush1.msra.mxu0 0.0
        %1725 = vmatprep.subr.mxu0 0.0
        %1726 = vmatpush1.msra.mxu0 0.0
        %1727 = vmatprep.subr.mxu0 0.0
        %1728 = vmatpush1.msra.mxu0 0.0
        %1729 = vmatprep.subr.mxu0 0.0
        %1730 = vmatpush1.msra.mxu0 0.0
        %1731 = vmatprep.subr.mxu0 0.0
        %1732 = vmatpush1.msra.mxu0 0.0
        %1733 = vmatprep.subr.mxu0 0.0
        %1734 = vmatpush1.msra.mxu0 0.0
        %1735 = vmatprep.subr.mxu0 0.0
        %1736 = vmatpush1.msra.mxu0 0.0
        %1737 = vmatprep.subr.mxu0 0.0
        %1738 = vmatpush1.msra.mxu0 0.0
        %1739 = vmatprep.subr.mxu0 0.0
        %1740 = vmatpush1.msra.mxu0 0.0
        %1741 = vmatprep.subr.mxu0 0.0
        %1742 = vmatpush1.msra.mxu0 0.0
        %1743 = vmatprep.subr.mxu0 0.0
        %1744 = vmatpush1.msra.mxu0 0.0
        %1745 = vmatprep.mubr.f32.mxu0 0.0
        %1746 = vmatmul.mubr.f32.gmra.mrb[0].mxu0 %v1679
        %v1747 = vpop.f32.mrb[0].mxu0
        %v1748 = vadd.f32 0.0, %v1747
        %v1749 = vpop.f32.mrb[0].mxu0
        %v1750 = vadd.f32 0.0, %v1749
        %1751 = vdwg.mxu0
        %v1752 = vxor.u32 %v1748, 2147483648
        %v1753 = vmul.f32 %v1752, 1.442695
        %v1754 = vpow.pop %v1753
        %v1755 = vadd.f32 %v1754, 1.0
        %v1756 = vrcp.pop %v1755
        %v1757 = vmul.f32 1.0, %v1756
        %v1758 = vmul.f32 %v1748, %v1757
        %1761 = vrot.lane.b32.xlu0 %v1748, 32
        %v1762 = vpop.permute.xlu0 %1761
        %1763 = vrot.lane.b32.xlu0 %v1750, 32
        %v1764 = vpop.permute.xlu0 %1763
        %v1765 = vsel %vm453, %v1762, %v1764
        %v1767 = vmul.f32 %v1758, %v1765
        %vm1768 = vcmask 785408
        %v1770 = vsel %vm1768, %v1767, 0
        %1772 = vmatprep.subr.mxu0 0.0
        %1773 = vmatpush1.msra.mxu0 %v440
        %1774 = vmatprep.subr.mxu0 0.0
        %1775 = vmatpush1.msra.mxu0 %v441
        %1776 = vmatprep.subr.mxu0 0.0
        %1777 = vmatpush1.msra.mxu0 %v442
        %1778 = vmatprep.subr.mxu0 0.0
        %1779 = vmatpush1.msra.mxu0 %v443
        %1780 = vmatprep.subr.mxu0 0.0
        %1781 = vmatpush1.msra.mxu0 %v444
        %1782 = vmatprep.subr.mxu0 0.0
        %1783 = vmatpush1.msra.mxu0 %v445
        %1784 = vmatprep.subr.mxu0 0.0
        %1785 = vmatpush1.msra.mxu0 %v446
        %1786 = vmatprep.subr.mxu0 0.0
        %1787 = vmatpush1.msra.mxu0 %v447
        %1788 = vmatprep.subr.mxu0 0.0
        %1789 = vmatpush1.msra.mxu0 %v448
        %1790 = vmatprep.subr.mxu0 0.0
        %1791 = vmatpush1.msra.mxu0 %v449
        %1792 = vmatprep.subr.mxu0 0.0
        %1793 = vmatpush1.msra.mxu0 %v450
        %1794 = vmatprep.subr.mxu0 0.0
        %1795 = vmatpush1.msra.mxu0 %v451
        %1796 = vmatprep.subr.mxu0 0.0
        %1797 = vmatpush1.msra.mxu0 0.0
        %1798 = vmatprep.subr.mxu0 0.0
        %1799 = vmatpush1.msra.mxu0 0.0
        %1800 = vmatprep.subr.mxu0 0.0
        %1801 = vmatpush1.msra.mxu0 0.0
        %1802 = vmatprep.subr.mxu0 0.0
        %1803 = vmatpush1.msra.mxu0 0.0
        %1804 = vmatprep.subr.mxu0 0.0
        %1805 = vmatpush1.msra.mxu0 0.0
        %1806 = vmatprep.subr.mxu0 0.0
        %1807 = vmatpush1.msra.mxu0 0.0
        %1808 = vmatprep.subr.mxu0 0.0
        %1809 = vmatpush1.msra.mxu0 0.0
        %1810 = vmatprep.subr.mxu0 0.0
        %1811 = vmatpush1.msra.mxu0 0.0
        %1812 = vmatprep.subr.mxu0 0.0
        %1813 = vmatpush1.msra.mxu0 0.0
        %1814 = vmatprep.subr.mxu0 0.0
        %1815 = vmatpush1.msra.mxu0 0.0
        %1816 = vmatprep.subr.mxu0 0.0
        %1817 = vmatpush1.msra.mxu0 0.0
        %1818 = vmatprep.subr.mxu0 0.0
        %1819 = vmatpush1.msra.mxu0 0.0
        %1820 = vmatprep.subr.mxu0 0.0
        %1821 = vmatpush1.msra.mxu0 0.0
        %1822 = vmatprep.subr.mxu0 0.0
        %1823 = vmatpush1.msra.mxu0 0.0
        %1824 = vmatprep.subr.mxu0 0.0
        %1825 = vmatpush1.msra.mxu0 0.0
        %1826 = vmatprep.subr.mxu0 0.0
        %1827 = vmatpush1.msra.mxu0 0.0
        %1828 = vmatprep.subr.mxu0 0.0
        %1829 = vmatpush1.msra.mxu0 0.0
        %1830 = vmatprep.subr.mxu0 0.0
        %1831 = vmatpush1.msra.mxu0 0.0
        %1832 = vmatprep.subr.mxu0 0.0
        %1833 = vmatpush1.msra.mxu0 0.0
        %1834 = vmatprep.subr.mxu0 0.0
        %1835 = vmatpush1.msra.mxu0 0.0
        %1836 = vmatprep.mubr.f32.mxu0 0.0
        %1837 = vmatmul.mubr.f32.gmra.mrb[0].mxu0 %v1770
        %v1838 = vpop.f32.mrb[0].mxu0
        %v1839 = vadd.f32 0.0, %v1838
        %v1840 = vpop.f32.mrb[0].mxu0
        %1841 = vdwg.mxu0
        %v1842 = vadd.f32 %v1662, %v1839
        %s1843 = scalar_lea.vmem %s1, 1
        %v1844 = vld [vmem:[%s1843] sm:$0x1]
        %s1845 = scalar_lea.vmem [#allocation5], 1
        %v1846 = vld [vmem:[%s1845] sm:$0x1]
        %s1847 = scalar_lea.vmem %s3, 32
        %v1848 = vld [vmem:[%s1847] sm:$0xff]
        %v1849 = vld [vmem:[%s1847 + $0x8] sm:$0xff]
        %v1850 = vld [vmem:[%s1847 + $0x10] sm:$0xff]
        %v1851 = vld [vmem:[%s1847 + $0x18] sm:$0xff]
        %s1852 = scalar_lea.vmem %s4, 32
        %v1853 = vld [vmem:[%s1852] sm:$0xff]
        %v1854 = vld [vmem:[%s1852 + $0x8] sm:$0xff]
        %v1855 = vld [vmem:[%s1852 + $0x10] sm:$0xff]
        %v1856 = vld [vmem:[%s1852 + $0x18] sm:$0xff]
        %s1857 = scalar_lea.vmem %s5, 64
        %v1858 = vld [vmem:[%s1857] sm:$0xff]
        %v1859 = vld [vmem:[%s1857 + $0x8] sm:$0xff]
        %v1860 = vld [vmem:[%s1857 + $0x10] sm:$0xff]
        %v1861 = vld [vmem:[%s1857 + $0x18] sm:$0xff]
        %v1862 = vld [vmem:[%s1857 + $0x20] sm:$0xff]
        %v1863 = vld [vmem:[%s1857 + $0x28] sm:$0xff]
        %v1864 = vld [vmem:[%s1857 + $0x30] sm:$0xff]
        %v1865 = vld [vmem:[%s1857 + $0x38] sm:$0xff]
        %s1866 = scalar_lea.vmem %s6, 96
        %v1867 = vld [vmem:[%s1866] sm:$0xff]
        %v1868 = vld [vmem:[%s1866 + $0x8] sm:$0xff]
        %v1869 = vld [vmem:[%s1866 + $0x10] sm:$0xff]
        %v1870 = vld [vmem:[%s1866 + $0x18] sm:$0xff]
        %v1871 = vld [vmem:[%s1866 + $0x20] sm:$0xff]
        %v1872 = vld [vmem:[%s1866 + $0x28] sm:$0xff]
        %v1873 = vld [vmem:[%s1866 + $0x30] sm:$0xff]
        %v1874 = vld [vmem:[%s1866 + $0x38] sm:$0xff]
        %v1875 = vld [vmem:[%s1866 + $0x40] sm:$0xff]
        %v1876 = vld [vmem:[%s1866 + $0x48] sm:$0xff]
        %v1877 = vld [vmem:[%s1866 + $0x50] sm:$0xff]
        %v1878 = vld [vmem:[%s1866 + $0x58] sm:$0xff]
        %v1879 = vmul.f32 %v1842, %v1842
        %v1880 = vsel %vm453, %v1879, 0.0
        %1881 = vadd.xlane.f32.xlu0 %v1880
        %v1882 = vpop.xlane.xlu0 %1881
        %v1883 = vmul.f32 %v1882, %v457
        %v1884 = vadd.f32 %v1883, 1e-06
        %v1885 = vrsqrt.pop %v1884
        %v1886 = vmul.f32 %v1842, %v1885
        %v1888 = vlaneseq
        %v1889 = vshrl.u32 %v1888, 7
        %v1890 = vsub.s32 0, %v1889
        %v1891 = vrot.slane %v1844, %v1890
        %v1893 = vmul.f32 %v1886, %v1891
        %v1895 = vsel %vm453, %v1893, 0
        %1897 = vmatprep.subr.mxu0 0.0
        %1898 = vmatpush1.msra.mxu0 %v1848
        %1899 = vmatprep.subr.mxu0 0.0
        %1900 = vmatpush1.msra.mxu0 %v1849
        %1901 = vmatprep.subr.mxu0 0.0
        %1902 = vmatpush1.msra.mxu0 %v1850
        %1903 = vmatprep.subr.mxu0 0.0
        %1904 = vmatpush1.msra.mxu0 %v1851
        %1905 = vmatprep.subr.mxu0 0.0
        %1906 = vmatpush1.msra.mxu0 0.0
        %1907 = vmatprep.subr.mxu0 0.0
        %1908 = vmatpush1.msra.mxu0 0.0
        %1909 = vmatprep.subr.mxu0 0.0
        %1910 = vmatpush1.msra.mxu0 0.0
        %1911 = vmatprep.subr.mxu0 0.0
        %1912 = vmatpush1.msra.mxu0 0.0
        %1913 = vmatprep.subr.mxu0 0.0
        %1914 = vmatpush1.msra.mxu0 0.0
        %1915 = vmatprep.subr.mxu0 0.0
        %1916 = vmatpush1.msra.mxu0 0.0
        %1917 = vmatprep.subr.mxu0 0.0
        %1918 = vmatpush1.msra.mxu0 0.0
        %1919 = vmatprep.subr.mxu0 0.0
        %1920 = vmatpush1.msra.mxu0 0.0
        %1921 = vmatprep.subr.mxu0 0.0
        %1922 = vmatpush1.msra.mxu0 0.0
        %1923 = vmatprep.subr.mxu0 0.0
        %1924 = vmatpush1.msra.mxu0 0.0
        %1925 = vmatprep.subr.mxu0 0.0
        %1926 = vmatpush1.msra.mxu0 0.0
        %1927 = vmatprep.subr.mxu0 0.0
        %1928 = vmatpush1.msra.mxu0 0.0
        %1929 = vmatprep.subr.mxu0 0.0
        %1930 = vmatpush1.msra.mxu0 0.0
        %1931 = vmatprep.subr.mxu0 0.0
        %1932 = vmatpush1.msra.mxu0 0.0
        %1933 = vmatprep.subr.mxu0 0.0
        %1934 = vmatpush1.msra.mxu0 0.0
        %1935 = vmatprep.subr.mxu0 0.0
        %1936 = vmatpush1.msra.mxu0 0.0
        %1937 = vmatprep.subr.mxu0 0.0
        %1938 = vmatpush1.msra.mxu0 0.0
        %1939 = vmatprep.subr.mxu0 0.0
        %1940 = vmatpush1.msra.mxu0 0.0
        %1941 = vmatprep.subr.mxu0 0.0
        %1942 = vmatpush1.msra.mxu0 0.0
        %1943 = vmatprep.subr.mxu0 0.0
        %1944 = vmatpush1.msra.mxu0 0.0
        %1945 = vmatprep.subr.mxu0 0.0
        %1946 = vmatpush1.msra.mxu0 0.0
        %1947 = vmatprep.subr.mxu0 0.0
        %1948 = vmatpush1.msra.mxu0 0.0
        %1949 = vmatprep.subr.mxu0 0.0
        %1950 = vmatpush1.msra.mxu0 0.0
        %1951 = vmatprep.subr.mxu0 0.0
        %1952 = vmatpush1.msra.mxu0 0.0
        %1953 = vmatprep.subr.mxu0 0.0
        %1954 = vmatpush1.msra.mxu0 0.0
        %1955 = vmatprep.subr.mxu0 0.0
        %1956 = vmatpush1.msra.mxu0 0.0
        %1957 = vmatprep.subr.mxu0 0.0
        %1958 = vmatpush1.msra.mxu0 0.0
        %1959 = vmatprep.subr.mxu0 0.0
        %1960 = vmatpush1.msra.mxu0 0.0
        %1961 = vmatprep.mubr.f32.mxu0 0.0
        %1962 = vmatmul.mubr.f32.gmra.mrb[0].mxu0 %v1895
        %v1963 = vpop.f32.mrb[0].mxu0
        %v1964 = vadd.f32 0.0, %v1963
        %v1965 = vpop.f32.mrb[0].mxu0
        %1966 = vdwg.mxu0
        %v1967 = vmul.f32 %v1964, %v416
        %v1969 = vsel %vm453, %v1964, 0
        %1971 = vmatprep.subr.mxu0 0.0
        %1972 = vmatpush1.msra.mxu0 %v418
        %1973 = vmatprep.subr.mxu0 0.0
        %1974 = vmatpush1.msra.mxu0 %v419
        %1975 = vmatprep.subr.mxu0 0.0
        %1976 = vmatpush1.msra.mxu0 %v420
        %1977 = vmatprep.subr.mxu0 0.0
        %1978 = vmatpush1.msra.mxu0 %v421
        %1979 = vmatprep.subr.mxu0 0.0
        %1980 = vmatpush1.msra.mxu0 0.0
        %1981 = vmatprep.subr.mxu0 0.0
        %1982 = vmatpush1.msra.mxu0 0.0
        %1983 = vmatprep.subr.mxu0 0.0
        %1984 = vmatpush1.msra.mxu0 0.0
        %1985 = vmatprep.subr.mxu0 0.0
        %1986 = vmatpush1.msra.mxu0 0.0
        %1987 = vmatprep.subr.mxu0 0.0
        %1988 = vmatpush1.msra.mxu0 0.0
        %1989 = vmatprep.subr.mxu0 0.0
        %1990 = vmatpush1.msra.mxu0 0.0
        %1991 = vmatprep.subr.mxu0 0.0
        %1992 = vmatpush1.msra.mxu0 0.0
        %1993 = vmatprep.subr.mxu0 0.0
        %1994 = vmatpush1.msra.mxu0 0.0
        %1995 = vmatprep.subr.mxu0 0.0
        %1996 = vmatpush1.msra.mxu0 0.0
        %1997 = vmatprep.subr.mxu0 0.0
        %1998 = vmatpush1.msra.mxu0 0.0
        %1999 = vmatprep.subr.mxu0 0.0
        %2000 = vmatpush1.msra.mxu0 0.0
        %2001 = vmatprep.subr.mxu0 0.0
        %2002 = vmatpush1.msra.mxu0 0.0
        %2003 = vmatprep.subr.mxu0 0.0
        %2004 = vmatpush1.msra.mxu0 0.0
        %2005 = vmatprep.subr.mxu0 0.0
        %2006 = vmatpush1.msra.mxu0 0.0
        %2007 = vmatprep.subr.mxu0 0.0
        %2008 = vmatpush1.msra.mxu0 0.0
        %2009 = vmatprep.subr.mxu0 0.0
        %2010 = vmatpush1.msra.mxu0 0.0
        %2011 = vmatprep.subr.mxu0 0.0
        %2012 = vmatpush1.msra.mxu0 0.0
        %2013 = vmatprep.subr.mxu0 0.0
        %2014 = vmatpush1.msra.mxu0 0.0
        %2015 = vmatprep.subr.mxu0 0.0
        %2016 = vmatpush1.msra.mxu0 0.0
        %2017 = vmatprep.subr.mxu0 0.0
        %2018 = vmatpush1.msra.mxu0 0.0
        %2019 = vmatprep.subr.mxu0 0.0
        %2020 = vmatpush1.msra.mxu0 0.0
        %2021 = vmatprep.subr.mxu0 0.0
        %2022 = vmatpush1.msra.mxu0 0.0
        %2023 = vmatprep.subr.mxu0 0.0
        %2024 = vmatpush1.msra.mxu0 0.0
        %2025 = vmatprep.subr.mxu0 0.0
        %2026 = vmatpush1.msra.mxu0 0.0
        %2027 = vmatprep.subr.mxu0 0.0
        %2028 = vmatpush1.msra.mxu0 0.0
        %2029 = vmatprep.subr.mxu0 0.0
        %2030 = vmatpush1.msra.mxu0 0.0
        %2031 = vmatprep.subr.mxu0 0.0
        %2032 = vmatpush1.msra.mxu0 0.0
        %2033 = vmatprep.subr.mxu0 0.0
        %2034 = vmatpush1.msra.mxu0 0.0
        %2035 = vmatprep.mubr.f32.mxu0 0.0
        %2036 = vmatmul.mubr.f32.gmra.mrb[0].mxu0 %v1969
        %v2037 = vpop.f32.mrb[0].mxu0
        %v2038 = vadd.f32 0.0, %v2037
        %v2039 = vpop.f32.mrb[0].mxu0
        %2040 = vdwg.mxu0
        %v2041 = vmul.f32 %v2038, %v417
        %v2042 = vadd.f32 %v1967, %v2041
        %v2043 = vmul.f32 %v1964, %v620
        %2044 = vrot.lane.b32.xlu0 %v1964, 96
        %v2045 = vpop.permute.xlu0 %2044
        %v2046 = vsel %vm453, %v2045, 0
        %2048 = vmatprep.subr.mxu0 0.0
        %2049 = vmatpush1.msra.mxu0 %v418
        %2050 = vmatprep.subr.mxu0 0.0
        %2051 = vmatpush1.msra.mxu0 %v419
        %2052 = vmatprep.subr.mxu0 0.0
        %2053 = vmatpush1.msra.mxu0 %v420
        %2054 = vmatprep.subr.mxu0 0.0
        %2055 = vmatpush1.msra.mxu0 %v421
        %2056 = vmatprep.subr.mxu0 0.0
        %2057 = vmatpush1.msra.mxu0 0.0
        %2058 = vmatprep.subr.mxu0 0.0
        %2059 = vmatpush1.msra.mxu0 0.0
        %2060 = vmatprep.subr.mxu0 0.0
        %2061 = vmatpush1.msra.mxu0 0.0
        %2062 = vmatprep.subr.mxu0 0.0
        %2063 = vmatpush1.msra.mxu0 0.0
        %2064 = vmatprep.subr.mxu0 0.0
        %2065 = vmatpush1.msra.mxu0 0.0
        %2066 = vmatprep.subr.mxu0 0.0
        %2067 = vmatpush1.msra.mxu0 0.0
        %2068 = vmatprep.subr.mxu0 0.0
        %2069 = vmatpush1.msra.mxu0 0.0
        %2070 = vmatprep.subr.mxu0 0.0
        %2071 = vmatpush1.msra.mxu0 0.0
        %2072 = vmatprep.subr.mxu0 0.0
        %2073 = vmatpush1.msra.mxu0 0.0
        %2074 = vmatprep.subr.mxu0 0.0
        %2075 = vmatpush1.msra.mxu0 0.0
        %2076 = vmatprep.subr.mxu0 0.0
        %2077 = vmatpush1.msra.mxu0 0.0
        %2078 = vmatprep.subr.mxu0 0.0
        %2079 = vmatpush1.msra.mxu0 0.0
        %2080 = vmatprep.subr.mxu0 0.0
        %2081 = vmatpush1.msra.mxu0 0.0
        %2082 = vmatprep.subr.mxu0 0.0
        %2083 = vmatpush1.msra.mxu0 0.0
        %2084 = vmatprep.subr.mxu0 0.0
        %2085 = vmatpush1.msra.mxu0 0.0
        %2086 = vmatprep.subr.mxu0 0.0
        %2087 = vmatpush1.msra.mxu0 0.0
        %2088 = vmatprep.subr.mxu0 0.0
        %2089 = vmatpush1.msra.mxu0 0.0
        %2090 = vmatprep.subr.mxu0 0.0
        %2091 = vmatpush1.msra.mxu0 0.0
        %2092 = vmatprep.subr.mxu0 0.0
        %2093 = vmatpush1.msra.mxu0 0.0
        %2094 = vmatprep.subr.mxu0 0.0
        %2095 = vmatpush1.msra.mxu0 0.0
        %2096 = vmatprep.subr.mxu0 0.0
        %2097 = vmatpush1.msra.mxu0 0.0
        %2098 = vmatprep.subr.mxu0 0.0
        %2099 = vmatpush1.msra.mxu0 0.0
        %2100 = vmatprep.subr.mxu0 0.0
        %2101 = vmatpush1.msra.mxu0 0.0
        %2102 = vmatprep.subr.mxu0 0.0
        %2103 = vmatpush1.msra.mxu0 0.0
        %2104 = vmatprep.subr.mxu0 0.0
        %2105 = vmatpush1.msra.mxu0 0.0
        %2106 = vmatprep.subr.mxu0 0.0
        %2107 = vmatpush1.msra.mxu0 0.0
        %2108 = vmatprep.subr.mxu0 0.0
        %2109 = vmatpush1.msra.mxu0 0.0
        %2110 = vmatprep.subr.mxu0 0.0
        %2111 = vmatpush1.msra.mxu0 0.0
        %2112 = vmatprep.mubr.f32.mxu0 0.0
        %2113 = vmatmul.mubr.f32.gmra.mrb[0].mxu0 %v2046
        %v2114 = vpop.f32.mrb[0].mxu0
        %v2115 = vadd.f32 0.0, %v2114
        %v2116 = vpop.f32.mrb[0].mxu0
        %2117 = vdwg.mxu0
        %v2118 = vmul.f32 %v2115, %v417
        %2120 = vrot.lane.b32.xlu0 %v2118, 32
        %v2121 = vpop.permute.xlu0 %2120
        %v2123 = vadd.f32 %v2043, %v2121
        %2125 = vrot.lane.b32.xlu0 %v2123, 96
        %v2126 = vpop.permute.xlu0 %2125
        %v2128 = vsel %vm706, %v2042, 0
        %v2130 = vsel %vm706, %v2126, 0
        %2132 = vmatprep.subr.mxu0 0.0
        %2133 = vmatpush1.xpose.msra.mxu0 %v2130
        %2134 = vmatprep.subr.mxu0 0.0
        %2135 = vmatpush1.xpose.msra.mxu0 0.0
        %2136 = vmatprep.subr.mxu0 0.0
        %2137 = vmatpush1.xpose.msra.mxu0 0.0
        %2138 = vmatprep.subr.mxu0 0.0
        %2139 = vmatpush1.xpose.msra.mxu0 0.0
        %2140 = vmatprep.subr.mxu0 0.0
        %2141 = vmatpush1.xpose.msra.mxu0 0.0
        %2142 = vmatprep.subr.mxu0 0.0
        %2143 = vmatpush1.xpose.msra.mxu0 0.0
        %2144 = vmatprep.subr.mxu0 0.0
        %2145 = vmatpush1.xpose.msra.mxu0 0.0
        %2146 = vmatprep.subr.mxu0 0.0
        %2147 = vmatpush1.xpose.msra.mxu0 0.0
        %2148 = vmatprep.subr.mxu0 0.0
        %2149 = vmatpush1.xpose.msra.mxu0 0.0
        %2150 = vmatprep.subr.mxu0 0.0
        %2151 = vmatpush1.xpose.msra.mxu0 0.0
        %2152 = vmatprep.subr.mxu0 0.0
        %2153 = vmatpush1.xpose.msra.mxu0 0.0
        %2154 = vmatprep.subr.mxu0 0.0
        %2155 = vmatpush1.xpose.msra.mxu0 0.0
        %2156 = vmatprep.subr.mxu0 0.0
        %2157 = vmatpush1.xpose.msra.mxu0 0.0
        %2158 = vmatprep.subr.mxu0 0.0
        %2159 = vmatpush1.xpose.msra.mxu0 0.0
        %2160 = vmatprep.subr.mxu0 0.0
        %2161 = vmatpush1.xpose.msra.mxu0 0.0
        %2162 = vmatprep.subr.mxu0 0.0
        %2163 = vmatpush1.xpose.msra.mxu0 0.0
        %2164 = vmatprep.subr.mxu0 0.0
        %2165 = vmatpush1.xpose.msra.mxu0 0.0
        %2166 = vmatprep.subr.mxu0 0.0
        %2167 = vmatpush1.xpose.msra.mxu0 0.0
        %2168 = vmatprep.subr.mxu0 0.0
        %2169 = vmatpush1.xpose.msra.mxu0 0.0
        %2170 = vmatprep.subr.mxu0 0.0
        %2171 = vmatpush1.xpose.msra.mxu0 0.0
        %2172 = vmatprep.subr.mxu0 0.0
        %2173 = vmatpush1.xpose.msra.mxu0 0.0
        %2174 = vmatprep.subr.mxu0 0.0
        %2175 = vmatpush1.xpose.msra.mxu0 0.0
        %2176 = vmatprep.subr.mxu0 0.0
        %2177 = vmatpush1.xpose.msra.mxu0 0.0
        %2178 = vmatprep.subr.mxu0 0.0
        %2179 = vmatpush1.xpose.msra.mxu0 0.0
        %2180 = vmatprep.subr.mxu0 0.0
        %2181 = vmatpush1.xpose.msra.mxu0 0.0
        %2182 = vmatprep.subr.mxu0 0.0
        %2183 = vmatpush1.xpose.msra.mxu0 0.0
        %2184 = vmatprep.subr.mxu0 0.0
        %2185 = vmatpush1.xpose.msra.mxu0 0.0
        %2186 = vmatprep.subr.mxu0 0.0
        %2187 = vmatpush1.xpose.msra.mxu0 0.0
        %2188 = vmatprep.subr.mxu0 0.0
        %2189 = vmatpush1.xpose.msra.mxu0 0.0
        %2190 = vmatprep.subr.mxu0 0.0
        %2191 = vmatpush1.xpose.msra.mxu0 0.0
        %2192 = vmatprep.subr.mxu0 0.0
        %2193 = vmatpush1.xpose.msra.mxu0 0.0
        %2194 = vmatprep.subr.mxu0 0.0
        %2195 = vmatpush1.xpose.msra.mxu0 0.0
        %2196 = vmatprep.mubr.f32.mxu0 0.0
        %2197 = vmatmul.mubr.f32.gmra.mrb[0].mxu0 %v2128
        %v2198 = vpop.f32.mrb[0].mxu0
        %v2199 = vadd.f32 0.0, %v2198
        %v2200 = vpop.f32.mrb[0].mxu0
        %2201 = vdwg.mxu0
        %v2202 = vmul.f32 %v2199, 0.35355338
        %v2203 = vsel %vm706, %v2202, -inf
        %2204 = vmax.xlane.f32.xlu0 %v2203
        %v2205 = vpop.xlane.xlu0 %2204
        %v2206 = vsub.f32 %v2202, %v2205
        %v2207 = vmul.f32 %v2206, 1.442695
        %v2208 = vpow.pop %v2207
        %v2209 = vsel %vm706, %v2208, 0.0
        %2210 = vadd.xlane.f32.xlu0 %v2209
        %v2211 = vpop.xlane.xlu0 %2210
        %v2212 = vrcp.pop %v2211
        %v2213 = vmul.f32 %v2208, %v2212
        %2214 = vrot.lane.b32.xlu0 %v1964, 64
        %v2215 = vpop.permute.xlu0 %2214
        %v2218 = vsel %vm706, %v2213, 0
        %2220 = vmatprep.subr.mxu0 0.0
        %2221 = vmatpush1.msra.mxu0 %v2215
        %2222 = vmatprep.subr.mxu0 0.0
        %2223 = vmatpush1.msra.mxu0 0.0
        %2224 = vmatprep.subr.mxu0 0.0
        %2225 = vmatpush1.msra.mxu0 0.0
        %2226 = vmatprep.subr.mxu0 0.0
        %2227 = vmatpush1.msra.mxu0 0.0
        %2228 = vmatprep.subr.mxu0 0.0
        %2229 = vmatpush1.msra.mxu0 0.0
        %2230 = vmatprep.subr.mxu0 0.0
        %2231 = vmatpush1.msra.mxu0 0.0
        %2232 = vmatprep.subr.mxu0 0.0
        %2233 = vmatpush1.msra.mxu0 0.0
        %2234 = vmatprep.subr.mxu0 0.0
        %2235 = vmatpush1.msra.mxu0 0.0
        %2236 = vmatprep.subr.mxu0 0.0
        %2237 = vmatpush1.msra.mxu0 0.0
        %2238 = vmatprep.subr.mxu0 0.0
        %2239 = vmatpush1.msra.mxu0 0.0
        %2240 = vmatprep.subr.mxu0 0.0
        %2241 = vmatpush1.msra.mxu0 0.0
        %2242 = vmatprep.subr.mxu0 0.0
        %2243 = vmatpush1.msra.mxu0 0.0
        %2244 = vmatprep.subr.mxu0 0.0
        %2245 = vmatpush1.msra.mxu0 0.0
        %2246 = vmatprep.subr.mxu0 0.0
        %2247 = vmatpush1.msra.mxu0 0.0
        %2248 = vmatprep.subr.mxu0 0.0
        %2249 = vmatpush1.msra.mxu0 0.0
        %2250 = vmatprep.subr.mxu0 0.0
        %2251 = vmatpush1.msra.mxu0 0.0
        %2252 = vmatprep.subr.mxu0 0.0
        %2253 = vmatpush1.msra.mxu0 0.0
        %2254 = vmatprep.subr.mxu0 0.0
        %2255 = vmatpush1.msra.mxu0 0.0
        %2256 = vmatprep.subr.mxu0 0.0
        %2257 = vmatpush1.msra.mxu0 0.0
        %2258 = vmatprep.subr.mxu0 0.0
        %2259 = vmatpush1.msra.mxu0 0.0
        %2260 = vmatprep.subr.mxu0 0.0
        %2261 = vmatpush1.msra.mxu0 0.0
        %2262 = vmatprep.subr.mxu0 0.0
        %2263 = vmatpush1.msra.mxu0 0.0
        %2264 = vmatprep.subr.mxu0 0.0
        %2265 = vmatpush1.msra.mxu0 0.0
        %2266 = vmatprep.subr.mxu0 0.0
        %2267 = vmatpush1.msra.mxu0 0.0
        %2268 = vmatprep.subr.mxu0 0.0
        %2269 = vmatpush1.msra.mxu0 0.0
        %2270 = vmatprep.subr.mxu0 0.0
        %2271 = vmatpush1.msra.mxu0 0.0
        %2272 = vmatprep.subr.mxu0 0.0
        %2273 = vmatpush1.msra.mxu0 0.0
        %2274 = vmatprep.subr.mxu0 0.0
        %2275 = vmatpush1.msra.mxu0 0.0
        %2276 = vmatprep.subr.mxu0 0.0
        %2277 = vmatpush1.msra.mxu0 0.0
        %2278 = vmatprep.subr.mxu0 0.0
        %2279 = vmatpush1.msra.mxu0 0.0
        %2280 = vmatprep.subr.mxu0 0.0
        %2281 = vmatpush1.msra.mxu0 0.0
        %2282 = vmatprep.subr.mxu0 0.0
        %2283 = vmatpush1.msra.mxu0 0.0
        %2284 = vmatprep.mubr.f32.mxu0 0.0
        %2285 = vmatmul.mubr.f32.gmra.mrb[0].mxu0 %v2218
        %v2286 = vpop.f32.mrb[0].mxu0
        %v2287 = vadd.f32 0.0, %v2286
        %v2288 = vpop.f32.mrb[0].mxu0
        %2289 = vdwg.mxu0
        %2290 = vrot.lane.b32.xlu0 %v2042, 120
        %v2291 = vpop.permute.xlu0 %2290
        %2292 = vrot.lane.b32.xlu0 %v2123, 88
        %v2293 = vpop.permute.xlu0 %2292
        %v2294 = vsel %vm706, %v2291, 0
        %v2296 = vsel %vm706, %v2293, 0
        %2298 = vmatprep.subr.mxu0 0.0
        %2299 = vmatpush1.xpose.msra.mxu0 %v2296
        %2300 = vmatprep.subr.mxu0 0.0
        %2301 = vmatpush1.xpose.msra.mxu0 0.0
        %2302 = vmatprep.subr.mxu0 0.0
        %2303 = vmatpush1.xpose.msra.mxu0 0.0
        %2304 = vmatprep.subr.mxu0 0.0
        %2305 = vmatpush1.xpose.msra.mxu0 0.0
        %2306 = vmatprep.subr.mxu0 0.0
        %2307 = vmatpush1.xpose.msra.mxu0 0.0
        %2308 = vmatprep.subr.mxu0 0.0
        %2309 = vmatpush1.xpose.msra.mxu0 0.0
        %2310 = vmatprep.subr.mxu0 0.0
        %2311 = vmatpush1.xpose.msra.mxu0 0.0
        %2312 = vmatprep.subr.mxu0 0.0
        %2313 = vmatpush1.xpose.msra.mxu0 0.0
        %2314 = vmatprep.subr.mxu0 0.0
        %2315 = vmatpush1.xpose.msra.mxu0 0.0
        %2316 = vmatprep.subr.mxu0 0.0
        %2317 = vmatpush1.xpose.msra.mxu0 0.0
        %2318 = vmatprep.subr.mxu0 0.0
        %2319 = vmatpush1.xpose.msra.mxu0 0.0
        %2320 = vmatprep.subr.mxu0 0.0
        %2321 = vmatpush1.xpose.msra.mxu0 0.0
        %2322 = vmatprep.subr.mxu0 0.0
        %2323 = vmatpush1.xpose.msra.mxu0 0.0
        %2324 = vmatprep.subr.mxu0 0.0
        %2325 = vmatpush1.xpose.msra.mxu0 0.0
        %2326 = vmatprep.subr.mxu0 0.0
        %2327 = vmatpush1.xpose.msra.mxu0 0.0
        %2328 = vmatprep.subr.mxu0 0.0
        %2329 = vmatpush1.xpose.msra.mxu0 0.0
        %2330 = vmatprep.subr.mxu0 0.0
        %2331 = vmatpush1.xpose.msra.mxu0 0.0
        %2332 = vmatprep.subr.mxu0 0.0
        %2333 = vmatpush1.xpose.msra.mxu0 0.0
        %2334 = vmatprep.subr.mxu0 0.0
        %2335 = vmatpush1.xpose.msra.mxu0 0.0
        %2336 = vmatprep.subr.mxu0 0.0
        %2337 = vmatpush1.xpose.msra.mxu0 0.0
        %2338 = vmatprep.subr.mxu0 0.0
        %2339 = vmatpush1.xpose.msra.mxu0 0.0
        %2340 = vmatprep.subr.mxu0 0.0
        %2341 = vmatpush1.xpose.msra.mxu0 0.0
        %2342 = vmatprep.subr.mxu0 0.0
        %2343 = vmatpush1.xpose.msra.mxu0 0.0
        %2344 = vmatprep.subr.mxu0 0.0
        %2345 = vmatpush1.xpose.msra.mxu0 0.0
        %2346 = vmatprep.subr.mxu0 0.0
        %2347 = vmatpush1.xpose.msra.mxu0 0.0
        %2348 = vmatprep.subr.mxu0 0.0
        %2349 = vmatpush1.xpose.msra.mxu0 0.0
        %2350 = vmatprep.subr.mxu0 0.0
        %2351 = vmatpush1.xpose.msra.mxu0 0.0
        %2352 = vmatprep.subr.mxu0 0.0
        %2353 = vmatpush1.xpose.msra.mxu0 0.0
        %2354 = vmatprep.subr.mxu0 0.0
        %2355 = vmatpush1.xpose.msra.mxu0 0.0
        %2356 = vmatprep.subr.mxu0 0.0
        %2357 = vmatpush1.xpose.msra.mxu0 0.0
        %2358 = vmatprep.subr.mxu0 0.0
        %2359 = vmatpush1.xpose.msra.mxu0 0.0
        %2360 = vmatprep.subr.mxu0 0.0
        %2361 = vmatpush1.xpose.msra.mxu0 0.0
        %2362 = vmatprep.mubr.f32.mxu0 0.0
        %2363 = vmatmul.mubr.f32.gmra.mrb[0].mxu0 %v2294
        %v2364 = vpop.f32.mrb[0].mxu0
        %v2365 = vadd.f32 0.0, %v2364
        %v2366 = vpop.f32.mrb[0].mxu0
        %2367 = vdwg.mxu0
        %v2368 = vmul.f32 %v2365, 0.35355338
        %v2369 = vsel %vm706, %v2368, -inf
        %2370 = vmax.xlane.f32.xlu0 %v2369
        %v2371 = vpop.xlane.xlu0 %2370
        %v2372 = vsub.f32 %v2368, %v2371
        %v2373 = vmul.f32 %v2372, 1.442695
        %v2374 = vpow.pop %v2373
        %v2375 = vsel %vm706, %v2374, 0.0
        %2376 = vadd.xlane.f32.xlu0 %v2375
        %v2377 = vpop.xlane.xlu0 %2376
        %v2378 = vrcp.pop %v2377
        %v2379 = vmul.f32 %v2374, %v2378
        %2380 = vrot.lane.b32.xlu0 %v1964, 56
        %v2381 = vpop.permute.xlu0 %2380
        %v2384 = vsel %vm706, %v2379, 0
        %2386 = vmatprep.subr.mxu0 0.0
        %2387 = vmatpush1.msra.mxu0 %v2381
        %2388 = vmatprep.subr.mxu0 0.0
        %2389 = vmatpush1.msra.mxu0 0.0
        %2390 = vmatprep.subr.mxu0 0.0
        %2391 = vmatpush1.msra.mxu0 0.0
        %2392 = vmatprep.subr.mxu0 0.0
        %2393 = vmatpush1.msra.mxu0 0.0
        %2394 = vmatprep.subr.mxu0 0.0
        %2395 = vmatpush1.msra.mxu0 0.0
        %2396 = vmatprep.subr.mxu0 0.0
        %2397 = vmatpush1.msra.mxu0 0.0
        %2398 = vmatprep.subr.mxu0 0.0
        %2399 = vmatpush1.msra.mxu0 0.0
        %2400 = vmatprep.subr.mxu0 0.0
        %2401 = vmatpush1.msra.mxu0 0.0
        %2402 = vmatprep.subr.mxu0 0.0
        %2403 = vmatpush1.msra.mxu0 0.0
        %2404 = vmatprep.subr.mxu0 0.0
        %2405 = vmatpush1.msra.mxu0 0.0
        %2406 = vmatprep.subr.mxu0 0.0
        %2407 = vmatpush1.msra.mxu0 0.0
        %2408 = vmatprep.subr.mxu0 0.0
        %2409 = vmatpush1.msra.mxu0 0.0
        %2410 = vmatprep.subr.mxu0 0.0
        %2411 = vmatpush1.msra.mxu0 0.0
        %2412 = vmatprep.subr.mxu0 0.0
        %2413 = vmatpush1.msra.mxu0 0.0
        %2414 = vmatprep.subr.mxu0 0.0
        %2415 = vmatpush1.msra.mxu0 0.0
        %2416 = vmatprep.subr.mxu0 0.0
        %2417 = vmatpush1.msra.mxu0 0.0
        %2418 = vmatprep.subr.mxu0 0.0
        %2419 = vmatpush1.msra.mxu0 0.0
        %2420 = vmatprep.subr.mxu0 0.0
        %2421 = vmatpush1.msra.mxu0 0.0
        %2422 = vmatprep.subr.mxu0 0.0
        %2423 = vmatpush1.msra.mxu0 0.0
        %2424 = vmatprep.subr.mxu0 0.0
        %2425 = vmatpush1.msra.mxu0 0.0
        %2426 = vmatprep.subr.mxu0 0.0
        %2427 = vmatpush1.msra.mxu0 0.0
        %2428 = vmatprep.subr.mxu0 0.0
        %2429 = vmatpush1.msra.mxu0 0.0
        %2430 = vmatprep.subr.mxu0 0.0
        %2431 = vmatpush1.msra.mxu0 0.0
        %2432 = vmatprep.subr.mxu0 0.0
        %2433 = vmatpush1.msra.mxu0 0.0
        %2434 = vmatprep.subr.mxu0 0.0
        %2435 = vmatpush1.msra.mxu0 0.0
        %2436 = vmatprep.subr.mxu0 0.0
        %2437 = vmatpush1.msra.mxu0 0.0
        %2438 = vmatprep.subr.mxu0 0.0
        %2439 = vmatpush1.msra.mxu0 0.0
        %2440 = vmatprep.subr.mxu0 0.0
        %2441 = vmatpush1.msra.mxu0 0.0
        %2442 = vmatprep.subr.mxu0 0.0
        %2443 = vmatpush1.msra.mxu0 0.0
        %2444 = vmatprep.subr.mxu0 0.0
        %2445 = vmatpush1.msra.mxu0 0.0
        %2446 = vmatprep.subr.mxu0 0.0
        %2447 = vmatpush1.msra.mxu0 0.0
        %2448 = vmatprep.subr.mxu0 0.0
        %2449 = vmatpush1.msra.mxu0 0.0
        %2450 = vmatprep.mubr.f32.mxu0 0.0
        %2451 = vmatmul.mubr.f32.gmra.mrb[0].mxu0 %v2384
        %v2452 = vpop.f32.mrb[0].mxu0
        %v2453 = vadd.f32 0.0, %v2452
        %v2454 = vpop.f32.mrb[0].mxu0
        %2455 = vdwg.mxu0
        %v2457 = vsel %vm706, %v2453, 0
        %2459 = vmatprep.subr.mxu0 0.0
        %2460 = vmatpush1.msra.mxu0 %v1854
        %2461 = vmatprep.subr.mxu0 0.0
        %2462 = vmatpush1.msra.mxu0 0.0
        %2463 = vmatprep.subr.mxu0 0.0
        %2464 = vmatpush1.msra.mxu0 0.0
        %2465 = vmatprep.subr.mxu0 0.0
        %2466 = vmatpush1.msra.mxu0 0.0
        %2467 = vmatprep.subr.mxu0 0.0
        %2468 = vmatpush1.msra.mxu0 0.0
        %2469 = vmatprep.subr.mxu0 0.0
        %2470 = vmatpush1.msra.mxu0 0.0
        %2471 = vmatprep.subr.mxu0 0.0
        %2472 = vmatpush1.msra.mxu0 0.0
        %2473 = vmatprep.subr.mxu0 0.0
        %2474 = vmatpush1.msra.mxu0 0.0
        %2475 = vmatprep.subr.mxu0 0.0
        %2476 = vmatpush1.msra.mxu0 0.0
        %2477 = vmatprep.subr.mxu0 0.0
        %2478 = vmatpush1.msra.mxu0 0.0
        %2479 = vmatprep.subr.mxu0 0.0
        %2480 = vmatpush1.msra.mxu0 0.0
        %2481 = vmatprep.subr.mxu0 0.0
        %2482 = vmatpush1.msra.mxu0 0.0
        %2483 = vmatprep.subr.mxu0 0.0
        %2484 = vmatpush1.msra.mxu0 0.0
        %2485 = vmatprep.subr.mxu0 0.0
        %2486 = vmatpush1.msra.mxu0 0.0
        %2487 = vmatprep.subr.mxu0 0.0
        %2488 = vmatpush1.msra.mxu0 0.0
        %2489 = vmatprep.subr.mxu0 0.0
        %2490 = vmatpush1.msra.mxu0 0.0
        %2491 = vmatprep.subr.mxu0 0.0
        %2492 = vmatpush1.msra.mxu0 0.0
        %2493 = vmatprep.subr.mxu0 0.0
        %2494 = vmatpush1.msra.mxu0 0.0
        %2495 = vmatprep.subr.mxu0 0.0
        %2496 = vmatpush1.msra.mxu0 0.0
        %2497 = vmatprep.subr.mxu0 0.0
        %2498 = vmatpush1.msra.mxu0 0.0
        %2499 = vmatprep.subr.mxu0 0.0
        %2500 = vmatpush1.msra.mxu0 0.0
        %2501 = vmatprep.subr.mxu0 0.0
        %2502 = vmatpush1.msra.mxu0 0.0
        %2503 = vmatprep.subr.mxu0 0.0
        %2504 = vmatpush1.msra.mxu0 0.0
        %2505 = vmatprep.subr.mxu0 0.0
        %2506 = vmatpush1.msra.mxu0 0.0
        %2507 = vmatprep.subr.mxu0 0.0
        %2508 = vmatpush1.msra.mxu0 0.0
        %2509 = vmatprep.subr.mxu0 0.0
        %2510 = vmatpush1.msra.mxu0 0.0
        %2511 = vmatprep.subr.mxu0 0.0
        %2512 = vmatpush1.msra.mxu0 0.0
        %2513 = vmatprep.subr.mxu0 0.0
        %2514 = vmatpush1.msra.mxu0 0.0
        %2515 = vmatprep.subr.mxu0 0.0
        %2516 = vmatpush1.msra.mxu0 0.0
        %2517 = vmatprep.subr.mxu0 0.0
        %2518 = vmatpush1.msra.mxu0 0.0
        %2519 = vmatprep.subr.mxu0 0.0
        %2520 = vmatpush1.msra.mxu0 0.0
        %2521 = vmatprep.subr.mxu0 0.0
        %2522 = vmatpush1.msra.mxu0 0.0
        %2523 = vmatprep.mubr.f32.mxu0 0.0
        %2524 = vmatmul.mubr.f32.gmra.mrb[0].mxu0 %v2457
        %v2525 = vpop.f32.mrb[0].mxu0
        %v2526 = vadd.f32 0.0, %v2525
        %v2527 = vpop.f32.mrb[0].mxu0
        %2528 = vdwg.mxu0
        %v2530 = vsel %vm706, %v2287, 0
        %2532 = vmatprep.subr.mxu0 0.0
        %2533 = vmatpush1.msra.mxu0 %v1853
        %2534 = vmatprep.subr.mxu0 0.0
        %2535 = vmatpush1.msra.mxu0 0.0
        %2536 = vmatprep.subr.mxu0 0.0
        %2537 = vmatpush1.msra.mxu0 0.0
        %2538 = vmatprep.subr.mxu0 0.0
        %2539 = vmatpush1.msra.mxu0 0.0
        %2540 = vmatprep.subr.mxu0 0.0
        %2541 = vmatpush1.msra.mxu0 0.0
        %2542 = vmatprep.subr.mxu0 0.0
        %2543 = vmatpush1.msra.mxu0 0.0
        %2544 = vmatprep.subr.mxu0 0.0
        %2545 = vmatpush1.msra.mxu0 0.0
        %2546 = vmatprep.subr.mxu0 0.0
        %2547 = vmatpush1.msra.mxu0 0.0
        %2548 = vmatprep.subr.mxu0 0.0
        %2549 = vmatpush1.msra.mxu0 0.0
        %2550 = vmatprep.subr.mxu0 0.0
        %2551 = vmatpush1.msra.mxu0 0.0
        %2552 = vmatprep.subr.mxu0 0.0
        %2553 = vmatpush1.msra.mxu0 0.0
        %2554 = vmatprep.subr.mxu0 0.0
        %2555 = vmatpush1.msra.mxu0 0.0
        %2556 = vmatprep.subr.mxu0 0.0
        %2557 = vmatpush1.msra.mxu0 0.0
        %2558 = vmatprep.subr.mxu0 0.0
        %2559 = vmatpush1.msra.mxu0 0.0
        %2560 = vmatprep.subr.mxu0 0.0
        %2561 = vmatpush1.msra.mxu0 0.0
        %2562 = vmatprep.subr.mxu0 0.0
        %2563 = vmatpush1.msra.mxu0 0.0
        %2564 = vmatprep.subr.mxu0 0.0
        %2565 = vmatpush1.msra.mxu0 0.0
        %2566 = vmatprep.subr.mxu0 0.0
        %2567 = vmatpush1.msra.mxu0 0.0
        %2568 = vmatprep.subr.mxu0 0.0
        %2569 = vmatpush1.msra.mxu0 0.0
        %2570 = vmatprep.subr.mxu0 0.0
        %2571 = vmatpush1.msra.mxu0 0.0
        %2572 = vmatprep.subr.mxu0 0.0
        %2573 = vmatpush1.msra.mxu0 0.0
        %2574 = vmatprep.subr.mxu0 0.0
        %2575 = vmatpush1.msra.mxu0 0.0
        %2576 = vmatprep.subr.mxu0 0.0
        %2577 = vmatpush1.msra.mxu0 0.0
        %2578 = vmatprep.subr.mxu0 0.0
        %2579 = vmatpush1.msra.mxu0 0.0
        %2580 = vmatprep.subr.mxu0 0.0
        %2581 = vmatpush1.msra.mxu0 0.0
        %2582 = vmatprep.subr.mxu0 0.0
        %2583 = vmatpush1.msra.mxu0 0.0
        %2584 = vmatprep.subr.mxu0 0.0
        %2585 = vmatpush1.msra.mxu0 0.0
        %2586 = vmatprep.subr.mxu0 0.0
        %2587 = vmatpush1.msra.mxu0 0.0
        %2588 = vmatprep.subr.mxu0 0.0
        %2589 = vmatpush1.msra.mxu0 0.0
        %2590 = vmatprep.subr.mxu0 0.0
        %2591 = vmatpush1.msra.mxu0 0.0
        %2592 = vmatprep.subr.mxu0 0.0
        %2593 = vmatpush1.msra.mxu0 0.0
        %2594 = vmatprep.subr.mxu0 0.0
        %2595 = vmatpush1.msra.mxu0 0.0
        %2596 = vmatprep.mubr.f32.mxu0 0.0
        %2597 = vmatmul.mubr.f32.gmra.mrb[0].mxu0 %v2530
        %v2598 = vpop.f32.mrb[0].mxu0
        %v2599 = vadd.f32 %v2526, %v2598
        %v2600 = vpop.f32.mrb[0].mxu0
        %2601 = vdwg.mxu0
        %2602 = vrot.lane.b32.xlu0 %v2042, 112
        %v2603 = vpop.permute.xlu0 %2602
        %2604 = vrot.lane.b32.xlu0 %v2123, 80
        %v2605 = vpop.permute.xlu0 %2604
        %v2606 = vsel %vm706, %v2603, 0
        %v2608 = vsel %vm706, %v2605, 0
        %2610 = vmatprep.subr.mxu0 0.0
        %2611 = vmatpush1.xpose.msra.mxu0 %v2608
        %2612 = vmatprep.subr.mxu0 0.0
        %2613 = vmatpush1.xpose.msra.mxu0 0.0
        %2614 = vmatprep.subr.mxu0 0.0
        %2615 = vmatpush1.xpose.msra.mxu0 0.0
        %2616 = vmatprep.subr.mxu0 0.0
        %2617 = vmatpush1.xpose.msra.mxu0 0.0
        %2618 = vmatprep.subr.mxu0 0.0
        %2619 = vmatpush1.xpose.msra.mxu0 0.0
        %2620 = vmatprep.subr.mxu0 0.0
        %2621 = vmatpush1.xpose.msra.mxu0 0.0
        %2622 = vmatprep.subr.mxu0 0.0
        %2623 = vmatpush1.xpose.msra.mxu0 0.0
        %2624 = vmatprep.subr.mxu0 0.0
        %2625 = vmatpush1.xpose.msra.mxu0 0.0
        %2626 = vmatprep.subr.mxu0 0.0
        %2627 = vmatpush1.xpose.msra.mxu0 0.0
        %2628 = vmatprep.subr.mxu0 0.0
        %2629 = vmatpush1.xpose.msra.mxu0 0.0
        %2630 = vmatprep.subr.mxu0 0.0
        %2631 = vmatpush1.xpose.msra.mxu0 0.0
        %2632 = vmatprep.subr.mxu0 0.0
        %2633 = vmatpush1.xpose.msra.mxu0 0.0
        %2634 = vmatprep.subr.mxu0 0.0
        %2635 = vmatpush1.xpose.msra.mxu0 0.0
        %2636 = vmatprep.subr.mxu0 0.0
        %2637 = vmatpush1.xpose.msra.mxu0 0.0
        %2638 = vmatprep.subr.mxu0 0.0
        %2639 = vmatpush1.xpose.msra.mxu0 0.0
        %2640 = vmatprep.subr.mxu0 0.0
        %2641 = vmatpush1.xpose.msra.mxu0 0.0
        %2642 = vmatprep.subr.mxu0 0.0
        %2643 = vmatpush1.xpose.msra.mxu0 0.0
        %2644 = vmatprep.subr.mxu0 0.0
        %2645 = vmatpush1.xpose.msra.mxu0 0.0
        %2646 = vmatprep.subr.mxu0 0.0
        %2647 = vmatpush1.xpose.msra.mxu0 0.0
        %2648 = vmatprep.subr.mxu0 0.0
        %2649 = vmatpush1.xpose.msra.mxu0 0.0
        %2650 = vmatprep.subr.mxu0 0.0
        %2651 = vmatpush1.xpose.msra.mxu0 0.0
        %2652 = vmatprep.subr.mxu0 0.0
        %2653 = vmatpush1.xpose.msra.mxu0 0.0
        %2654 = vmatprep.subr.mxu0 0.0
        %2655 = vmatpush1.xpose.msra.mxu0 0.0
        %2656 = vmatprep.subr.mxu0 0.0
        %2657 = vmatpush1.xpose.msra.mxu0 0.0
        %2658 = vmatprep.subr.mxu0 0.0
        %2659 = vmatpush1.xpose.msra.mxu0 0.0
        %2660 = vmatprep.subr.mxu0 0.0
        %2661 = vmatpush1.xpose.msra.mxu0 0.0
        %2662 = vmatprep.subr.mxu0 0.0
        %2663 = vmatpush1.xpose.msra.mxu0 0.0
        %2664 = vmatprep.subr.mxu0 0.0
        %2665 = vmatpush1.xpose.msra.mxu0 0.0
        %2666 = vmatprep.subr.mxu0 0.0
        %2667 = vmatpush1.xpose.msra.mxu0 0.0
        %2668 = vmatprep.subr.mxu0 0.0
        %2669 = vmatpush1.xpose.msra.mxu0 0.0
        %2670 = vmatprep.subr.mxu0 0.0
        %2671 = vmatpush1.xpose.msra.mxu0 0.0
        %2672 = vmatprep.subr.mxu0 0.0
        %2673 = vmatpush1.xpose.msra.mxu0 0.0
        %2674 = vmatprep.mubr.f32.mxu0 0.0
        %2675 = vmatmul.mubr.f32.gmra.mrb[0].mxu0 %v2606
        %v2676 = vpop.f32.mrb[0].mxu0
        %v2677 = vadd.f32 0.0, %v2676
        %v2678 = vpop.f32.mrb[0].mxu0
        %2679 = vdwg.mxu0
        %v2680 = vmul.f32 %v2677, 0.35355338
        %v2681 = vsel %vm706, %v2680, -inf
        %2682 = vmax.xlane.f32.xlu0 %v2681
        %v2683 = vpop.xlane.xlu0 %2682
        %v2684 = vsub.f32 %v2680, %v2683
        %v2685 = vmul.f32 %v2684, 1.442695
        %v2686 = vpow.pop %v2685
        %v2687 = vsel %vm706, %v2686, 0.0
        %2688 = vadd.xlane.f32.xlu0 %v2687
        %v2689 = vpop.xlane.xlu0 %2688
        %v2690 = vrcp.pop %v2689
        %v2691 = vmul.f32 %v2686, %v2690
        %2692 = vrot.lane.b32.xlu0 %v1964, 48
        %v2693 = vpop.permute.xlu0 %2692
        %v2696 = vsel %vm706, %v2691, 0
        %2698 = vmatprep.subr.mxu0 0.0
        %2699 = vmatpush1.msra.mxu0 %v2693
        %2700 = vmatprep.subr.mxu0 0.0
        %2701 = vmatpush1.msra.mxu0 0.0
        %2702 = vmatprep.subr.mxu0 0.0
        %2703 = vmatpush1.msra.mxu0 0.0
        %2704 = vmatprep.subr.mxu0 0.0
        %2705 = vmatpush1.msra.mxu0 0.0
        %2706 = vmatprep.subr.mxu0 0.0
        %2707 = vmatpush1.msra.mxu0 0.0
        %2708 = vmatprep.subr.mxu0 0.0
        %2709 = vmatpush1.msra.mxu0 0.0
        %2710 = vmatprep.subr.mxu0 0.0
        %2711 = vmatpush1.msra.mxu0 0.0
        %2712 = vmatprep.subr.mxu0 0.0
        %2713 = vmatpush1.msra.mxu0 0.0
        %2714 = vmatprep.subr.mxu0 0.0
        %2715 = vmatpush1.msra.mxu0 0.0
        %2716 = vmatprep.subr.mxu0 0.0
        %2717 = vmatpush1.msra.mxu0 0.0
        %2718 = vmatprep.subr.mxu0 0.0
        %2719 = vmatpush1.msra.mxu0 0.0
        %2720 = vmatprep.subr.mxu0 0.0
        %2721 = vmatpush1.msra.mxu0 0.0
        %2722 = vmatprep.subr.mxu0 0.0
        %2723 = vmatpush1.msra.mxu0 0.0
        %2724 = vmatprep.subr.mxu0 0.0
        %2725 = vmatpush1.msra.mxu0 0.0
        %2726 = vmatprep.subr.mxu0 0.0
        %2727 = vmatpush1.msra.mxu0 0.0
        %2728 = vmatprep.subr.mxu0 0.0
        %2729 = vmatpush1.msra.mxu0 0.0
        %2730 = vmatprep.subr.mxu0 0.0
        %2731 = vmatpush1.msra.mxu0 0.0
        %2732 = vmatprep.subr.mxu0 0.0
        %2733 = vmatpush1.msra.mxu0 0.0
        %2734 = vmatprep.subr.mxu0 0.0
        %2735 = vmatpush1.msra.mxu0 0.0
        %2736 = vmatprep.subr.mxu0 0.0
        %2737 = vmatpush1.msra.mxu0 0.0
        %2738 = vmatprep.subr.mxu0 0.0
        %2739 = vmatpush1.msra.mxu0 0.0
        %2740 = vmatprep.subr.mxu0 0.0
        %2741 = vmatpush1.msra.mxu0 0.0
        %2742 = vmatprep.subr.mxu0 0.0
        %2743 = vmatpush1.msra.mxu0 0.0
        %2744 = vmatprep.subr.mxu0 0.0
        %2745 = vmatpush1.msra.mxu0 0.0
        %2746 = vmatprep.subr.mxu0 0.0
        %2747 = vmatpush1.msra.mxu0 0.0
        %2748 = vmatprep.subr.mxu0 0.0
        %2749 = vmatpush1.msra.mxu0 0.0
        %2750 = vmatprep.subr.mxu0 0.0
        %2751 = vmatpush1.msra.mxu0 0.0
        %2752 = vmatprep.subr.mxu0 0.0
        %2753 = vmatpush1.msra.mxu0 0.0
        %2754 = vmatprep.subr.mxu0 0.0
        %2755 = vmatpush1.msra.mxu0 0.0
        %2756 = vmatprep.subr.mxu0 0.0
        %2757 = vmatpush1.msra.mxu0 0.0
        %2758 = vmatprep.subr.mxu0 0.0
        %2759 = vmatpush1.msra.mxu0 0.0
        %2760 = vmatprep.subr.mxu0 0.0
        %2761 = vmatpush1.msra.mxu0 0.0
        %2762 = vmatprep.mubr.f32.mxu0 0.0
        %2763 = vmatmul.mubr.f32.gmra.mrb[0].mxu0 %v2696
        %v2764 = vpop.f32.mrb[0].mxu0
        %v2765 = vadd.f32 0.0, %v2764
        %v2766 = vpop.f32.mrb[0].mxu0
        %2767 = vdwg.mxu0
        %v2769 = vsel %vm706, %v2765, 0
        %2771 = vmatprep.subr.mxu0 0.0
        %2772 = vmatpush1.msra.mxu0 %v1855
        %2773 = vmatprep.subr.mxu0 0.0
        %2774 = vmatpush1.msra.mxu0 0.0
        %2775 = vmatprep.subr.mxu0 0.0
        %2776 = vmatpush1.msra.mxu0 0.0
        %2777 = vmatprep.subr.mxu0 0.0
        %2778 = vmatpush1.msra.mxu0 0.0
        %2779 = vmatprep.subr.mxu0 0.0
        %2780 = vmatpush1.msra.mxu0 0.0
        %2781 = vmatprep.subr.mxu0 0.0
        %2782 = vmatpush1.msra.mxu0 0.0
        %2783 = vmatprep.subr.mxu0 0.0
        %2784 = vmatpush1.msra.mxu0 0.0
        %2785 = vmatprep.subr.mxu0 0.0
        %2786 = vmatpush1.msra.mxu0 0.0
        %2787 = vmatprep.subr.mxu0 0.0
        %2788 = vmatpush1.msra.mxu0 0.0
        %2789 = vmatprep.subr.mxu0 0.0
        %2790 = vmatpush1.msra.mxu0 0.0
        %2791 = vmatprep.subr.mxu0 0.0
        %2792 = vmatpush1.msra.mxu0 0.0
        %2793 = vmatprep.subr.mxu0 0.0
        %2794 = vmatpush1.msra.mxu0 0.0
        %2795 = vmatprep.subr.mxu0 0.0
        %2796 = vmatpush1.msra.mxu0 0.0
        %2797 = vmatprep.subr.mxu0 0.0
        %2798 = vmatpush1.msra.mxu0 0.0
        %2799 = vmatprep.subr.mxu0 0.0
        %2800 = vmatpush1.msra.mxu0 0.0
        %2801 = vmatprep.subr.mxu0 0.0
        %2802 = vmatpush1.msra.mxu0 0.0
        %2803 = vmatprep.subr.mxu0 0.0
        %2804 = vmatpush1.msra.mxu0 0.0
        %2805 = vmatprep.subr.mxu0 0.0
        %2806 = vmatpush1.msra.mxu0 0.0
        %2807 = vmatprep.subr.mxu0 0.0
        %2808 = vmatpush1.msra.mxu0 0.0
        %2809 = vmatprep.subr.mxu0 0.0
        %2810 = vmatpush1.msra.mxu0 0.0
        %2811 = vmatprep.subr.mxu0 0.0
        %2812 = vmatpush1.msra.mxu0 0.0
        %2813 = vmatprep.subr.mxu0 0.0
        %2814 = vmatpush1.msra.mxu0 0.0
        %2815 = vmatprep.subr.mxu0 0.0
        %2816 = vmatpush1.msra.mxu0 0.0
        %2817 = vmatprep.subr.mxu0 0.0
        %2818 = vmatpush1.msra.mxu0 0.0
        %2819 = vmatprep.subr.mxu0 0.0
        %2820 = vmatpush1.msra.mxu0 0.0
        %2821 = vmatprep.subr.mxu0 0.0
        %2822 = vmatpush1.msra.mxu0 0.0
        %2823 = vmatprep.subr.mxu0 0.0
        %2824 = vmatpush1.msra.mxu0 0.0
        %2825 = vmatprep.subr.mxu0 0.0
        %2826 = vmatpush1.msra.mxu0 0.0
        %2827 = vmatprep.subr.mxu0 0.0
        %2828 = vmatpush1.msra.mxu0 0.0
        %2829 = vmatprep.subr.mxu0 0.0
        %2830 = vmatpush1.msra.mxu0 0.0
        %2831 = vmatprep.subr.mxu0 0.0
        %2832 = vmatpush1.msra.mxu0 0.0
        %2833 = vmatprep.subr.mxu0 0.0
        %2834 = vmatpush1.msra.mxu0 0.0
        %2835 = vmatprep.mubr.f32.mxu0 0.0
        %2836 = vmatmul.mubr.f32.gmra.mrb[0].mxu0 %v2769
        %v2837 = vpop.f32.mrb[0].mxu0
        %v2838 = vadd.f32 0.0, %v2837
        %v2839 = vpop.f32.mrb[0].mxu0
        %2840 = vdwg.mxu0
        %v2841 = vadd.f32 %v2599, %v2838
        %2842 = vrot.lane.b32.xlu0 %v2042, 104
        %v2843 = vpop.permute.xlu0 %2842
        %2844 = vrot.lane.b32.xlu0 %v2123, 72
        %v2845 = vpop.permute.xlu0 %2844
        %v2846 = vsel %vm706, %v2843, 0
        %v2848 = vsel %vm706, %v2845, 0
        %2850 = vmatprep.subr.mxu0 0.0
        %2851 = vmatpush1.xpose.msra.mxu0 %v2848
        %2852 = vmatprep.subr.mxu0 0.0
        %2853 = vmatpush1.xpose.msra.mxu0 0.0
        %2854 = vmatprep.subr.mxu0 0.0
        %2855 = vmatpush1.xpose.msra.mxu0 0.0
        %2856 = vmatprep.subr.mxu0 0.0
        %2857 = vmatpush1.xpose.msra.mxu0 0.0
        %2858 = vmatprep.subr.mxu0 0.0
        %2859 = vmatpush1.xpose.msra.mxu0 0.0
        %2860 = vmatprep.subr.mxu0 0.0
        %2861 = vmatpush1.xpose.msra.mxu0 0.0
        %2862 = vmatprep.subr.mxu0 0.0
        %2863 = vmatpush1.xpose.msra.mxu0 0.0
        %2864 = vmatprep.subr.mxu0 0.0
        %2865 = vmatpush1.xpose.msra.mxu0 0.0
        %2866 = vmatprep.subr.mxu0 0.0
        %2867 = vmatpush1.xpose.msra.mxu0 0.0
        %2868 = vmatprep.subr.mxu0 0.0
        %2869 = vmatpush1.xpose.msra.mxu0 0.0
        %2870 = vmatprep.subr.mxu0 0.0
        %2871 = vmatpush1.xpose.msra.mxu0 0.0
        %2872 = vmatprep.subr.mxu0 0.0
        %2873 = vmatpush1.xpose.msra.mxu0 0.0
        %2874 = vmatprep.subr.mxu0 0.0
        %2875 = vmatpush1.xpose.msra.mxu0 0.0
        %2876 = vmatprep.subr.mxu0 0.0
        %2877 = vmatpush1.xpose.msra.mxu0 0.0
        %2878 = vmatprep.subr.mxu0 0.0
        %2879 = vmatpush1.xpose.msra.mxu0 0.0
        %2880 = vmatprep.subr.mxu0 0.0
        %2881 = vmatpush1.xpose.msra.mxu0 0.0
        %2882 = vmatprep.subr.mxu0 0.0
        %2883 = vmatpush1.xpose.msra.mxu0 0.0
        %2884 = vmatprep.subr.mxu0 0.0
        %2885 = vmatpush1.xpose.msra.mxu0 0.0
        %2886 = vmatprep.subr.mxu0 0.0
        %2887 = vmatpush1.xpose.msra.mxu0 0.0
        %2888 = vmatprep.subr.mxu0 0.0
        %2889 = vmatpush1.xpose.msra.mxu0 0.0
        %2890 = vmatprep.subr.mxu0 0.0
        %2891 = vmatpush1.xpose.msra.mxu0 0.0
        %2892 = vmatprep.subr.mxu0 0.0
        %2893 = vmatpush1.xpose.msra.mxu0 0.0
        %2894 = vmatprep.subr.mxu0 0.0
        %2895 = vmatpush1.xpose.msra.mxu0 0.0
        %2896 = vmatprep.subr.mxu0 0.0
        %2897 = vmatpush1.xpose.msra.mxu0 0.0
        %2898 = vmatprep.subr.mxu0 0.0
        %2899 = vmatpush1.xpose.msra.mxu0 0.0
        %2900 = vmatprep.subr.mxu0 0.0
        %2901 = vmatpush1.xpose.msra.mxu0 0.0
        %2902 = vmatprep.subr.mxu0 0.0
        %2903 = vmatpush1.xpose.msra.mxu0 0.0
        %2904 = vmatprep.subr.mxu0 0.0
        %2905 = vmatpush1.xpose.msra.mxu0 0.0
        %2906 = vmatprep.subr.mxu0 0.0
        %2907 = vmatpush1.xpose.msra.mxu0 0.0
        %2908 = vmatprep.subr.mxu0 0.0
        %2909 = vmatpush1.xpose.msra.mxu0 0.0
        %2910 = vmatprep.subr.mxu0 0.0
        %2911 = vmatpush1.xpose.msra.mxu0 0.0
        %2912 = vmatprep.subr.mxu0 0.0
        %2913 = vmatpush1.xpose.msra.mxu0 0.0
        %2914 = vmatprep.mubr.f32.mxu0 0.0
        %2915 = vmatmul.mubr.f32.gmra.mrb[0].mxu0 %v2846
        %v2916 = vpop.f32.mrb[0].mxu0
        %v2917 = vadd.f32 0.0, %v2916
        %v2918 = vpop.f32.mrb[0].mxu0
        %2919 = vdwg.mxu0
        %v2920 = vmul.f32 %v2917, 0.35355338
        %v2921 = vsel %vm706, %v2920, -inf
        %2922 = vmax.xlane.f32.xlu0 %v2921
        %v2923 = vpop.xlane.xlu0 %2922
        %v2924 = vsub.f32 %v2920, %v2923
        %v2925 = vmul.f32 %v2924, 1.442695
        %v2926 = vpow.pop %v2925
        %v2927 = vsel %vm706, %v2926, 0.0
        %2928 = vadd.xlane.f32.xlu0 %v2927
        %v2929 = vpop.xlane.xlu0 %2928
        %v2930 = vrcp.pop %v2929
        %v2931 = vmul.f32 %v2926, %v2930
        %2932 = vrot.lane.b32.xlu0 %v1964, 40
        %v2933 = vpop.permute.xlu0 %2932
        %v2936 = vsel %vm706, %v2931, 0
        %2938 = vmatprep.subr.mxu0 0.0
        %2939 = vmatpush1.msra.mxu0 %v2933
        %2940 = vmatprep.subr.mxu0 0.0
        %2941 = vmatpush1.msra.mxu0 0.0
        %2942 = vmatprep.subr.mxu0 0.0
        %2943 = vmatpush1.msra.mxu0 0.0
        %2944 = vmatprep.subr.mxu0 0.0
        %2945 = vmatpush1.msra.mxu0 0.0
        %2946 = vmatprep.subr.mxu0 0.0
        %2947 = vmatpush1.msra.mxu0 0.0
        %2948 = vmatprep.subr.mxu0 0.0
        %2949 = vmatpush1.msra.mxu0 0.0
        %2950 = vmatprep.subr.mxu0 0.0
        %2951 = vmatpush1.msra.mxu0 0.0
        %2952 = vmatprep.subr.mxu0 0.0
        %2953 = vmatpush1.msra.mxu0 0.0
        %2954 = vmatprep.subr.mxu0 0.0
        %2955 = vmatpush1.msra.mxu0 0.0
        %2956 = vmatprep.subr.mxu0 0.0
        %2957 = vmatpush1.msra.mxu0 0.0
        %2958 = vmatprep.subr.mxu0 0.0
        %2959 = vmatpush1.msra.mxu0 0.0
        %2960 = vmatprep.subr.mxu0 0.0
        %2961 = vmatpush1.msra.mxu0 0.0
        %2962 = vmatprep.subr.mxu0 0.0
        %2963 = vmatpush1.msra.mxu0 0.0
        %2964 = vmatprep.subr.mxu0 0.0
        %2965 = vmatpush1.msra.mxu0 0.0
        %2966 = vmatprep.subr.mxu0 0.0
        %2967 = vmatpush1.msra.mxu0 0.0
        %2968 = vmatprep.subr.mxu0 0.0
        %2969 = vmatpush1.msra.mxu0 0.0
        %2970 = vmatprep.subr.mxu0 0.0
        %2971 = vmatpush1.msra.mxu0 0.0
        %2972 = vmatprep.subr.mxu0 0.0
        %2973 = vmatpush1.msra.mxu0 0.0
        %2974 = vmatprep.subr.mxu0 0.0
        %2975 = vmatpush1.msra.mxu0 0.0
        %2976 = vmatprep.subr.mxu0 0.0
        %2977 = vmatpush1.msra.mxu0 0.0
        %2978 = vmatprep.subr.mxu0 0.0
        %2979 = vmatpush1.msra.mxu0 0.0
        %2980 = vmatprep.subr.mxu0 0.0
        %2981 = vmatpush1.msra.mxu0 0.0
        %2982 = vmatprep.subr.mxu0 0.0
        %2983 = vmatpush1.msra.mxu0 0.0
        %2984 = vmatprep.subr.mxu0 0.0
        %2985 = vmatpush1.msra.mxu0 0.0
        %2986 = vmatprep.subr.mxu0 0.0
        %2987 = vmatpush1.msra.mxu0 0.0
        %2988 = vmatprep.subr.mxu0 0.0
        %2989 = vmatpush1.msra.mxu0 0.0
        %2990 = vmatprep.subr.mxu0 0.0
        %2991 = vmatpush1.msra.mxu0 0.0
        %2992 = vmatprep.subr.mxu0 0.0
        %2993 = vmatpush1.msra.mxu0 0.0
        %2994 = vmatprep.subr.mxu0 0.0
        %2995 = vmatpush1.msra.mxu0 0.0
        %2996 = vmatprep.subr.mxu0 0.0
        %2997 = vmatpush1.msra.mxu0 0.0
        %2998 = vmatprep.subr.mxu0 0.0
        %2999 = vmatpush1.msra.mxu0 0.0
        %3000 = vmatprep.subr.mxu0 0.0
        %3001 = vmatpush1.msra.mxu0 0.0
        %3002 = vmatprep.mubr.f32.mxu0 0.0
        %3003 = vmatmul.mubr.f32.gmra.mrb[0].mxu0 %v2936
        %v3004 = vpop.f32.mrb[0].mxu0
        %v3005 = vadd.f32 0.0, %v3004
        %v3006 = vpop.f32.mrb[0].mxu0
        %3007 = vdwg.mxu0
        %v3009 = vsel %vm706, %v3005, 0
        %3011 = vmatprep.subr.mxu0 0.0
        %3012 = vmatpush1.msra.mxu0 %v1856
        %3013 = vmatprep.subr.mxu0 0.0
        %3014 = vmatpush1.msra.mxu0 0.0
        %3015 = vmatprep.subr.mxu0 0.0
        %3016 = vmatpush1.msra.mxu0 0.0
        %3017 = vmatprep.subr.mxu0 0.0
        %3018 = vmatpush1.msra.mxu0 0.0
        %3019 = vmatprep.subr.mxu0 0.0
        %3020 = vmatpush1.msra.mxu0 0.0
        %3021 = vmatprep.subr.mxu0 0.0
        %3022 = vmatpush1.msra.mxu0 0.0
        %3023 = vmatprep.subr.mxu0 0.0
        %3024 = vmatpush1.msra.mxu0 0.0
        %3025 = vmatprep.subr.mxu0 0.0
        %3026 = vmatpush1.msra.mxu0 0.0
        %3027 = vmatprep.subr.mxu0 0.0
        %3028 = vmatpush1.msra.mxu0 0.0
        %3029 = vmatprep.subr.mxu0 0.0
        %3030 = vmatpush1.msra.mxu0 0.0
        %3031 = vmatprep.subr.mxu0 0.0
        %3032 = vmatpush1.msra.mxu0 0.0
        %3033 = vmatprep.subr.mxu0 0.0
        %3034 = vmatpush1.msra.mxu0 0.0
        %3035 = vmatprep.subr.mxu0 0.0
        %3036 = vmatpush1.msra.mxu0 0.0
        %3037 = vmatprep.subr.mxu0 0.0
        %3038 = vmatpush1.msra.mxu0 0.0
        %3039 = vmatprep.subr.mxu0 0.0
        %3040 = vmatpush1.msra.mxu0 0.0
        %3041 = vmatprep.subr.mxu0 0.0
        %3042 = vmatpush1.msra.mxu0 0.0
        %3043 = vmatprep.subr.mxu0 0.0
        %3044 = vmatpush1.msra.mxu0 0.0
        %3045 = vmatprep.subr.mxu0 0.0
        %3046 = vmatpush1.msra.mxu0 0.0
        %3047 = vmatprep.subr.mxu0 0.0
        %3048 = vmatpush1.msra.mxu0 0.0
        %3049 = vmatprep.subr.mxu0 0.0
        %3050 = vmatpush1.msra.mxu0 0.0
        %3051 = vmatprep.subr.mxu0 0.0
        %3052 = vmatpush1.msra.mxu0 0.0
        %3053 = vmatprep.subr.mxu0 0.0
        %3054 = vmatpush1.msra.mxu0 0.0
        %3055 = vmatprep.subr.mxu0 0.0
        %3056 = vmatpush1.msra.mxu0 0.0
        %3057 = vmatprep.subr.mxu0 0.0
        %3058 = vmatpush1.msra.mxu0 0.0
        %3059 = vmatprep.subr.mxu0 0.0
        %3060 = vmatpush1.msra.mxu0 0.0
        %3061 = vmatprep.subr.mxu0 0.0
        %3062 = vmatpush1.msra.mxu0 0.0
        %3063 = vmatprep.subr.mxu0 0.0
        %3064 = vmatpush1.msra.mxu0 0.0
        %3065 = vmatprep.subr.mxu0 0.0
        %3066 = vmatpush1.msra.mxu0 0.0
        %3067 = vmatprep.subr.mxu0 0.0
        %3068 = vmatpush1.msra.mxu0 0.0
        %3069 = vmatprep.subr.mxu0 0.0
        %3070 = vmatpush1.msra.mxu0 0.0
        %3071 = vmatprep.subr.mxu0 0.0
        %3072 = vmatpush1.msra.mxu0 0.0
        %3073 = vmatprep.subr.mxu0 0.0
        %3074 = vmatpush1.msra.mxu0 0.0
        %3075 = vmatprep.mubr.f32.mxu0 0.0
        %3076 = vmatmul.mubr.f32.gmra.mrb[0].mxu0 %v3009
        %v3077 = vpop.f32.mrb[0].mxu0
        %v3078 = vadd.f32 0.0, %v3077
        %v3079 = vpop.f32.mrb[0].mxu0
        %3080 = vdwg.mxu0
        %v3081 = vadd.f32 %v2841, %v3078
        %v3082 = vadd.f32 %v1842, %v3081
        %v3083 = vmul.f32 %v3082, %v3082
        %v3084 = vsel %vm453, %v3083, 0.0
        %3085 = vadd.xlane.f32.xlu0 %v3084
        %v3086 = vpop.xlane.xlu0 %3085
        %v3087 = vmul.f32 %v3086, %v457
        %v3088 = vadd.f32 %v3087, 1e-06
        %v3089 = vrsqrt.pop %v3088
        %v3090 = vmul.f32 %v3082, %v3089
        %v3092 = vlaneseq
        %v3093 = vshrl.u32 %v3092, 7
        %v3094 = vsub.s32 0, %v3093
        %v3095 = vrot.slane %v1846, %v3094
        %v3097 = vmul.f32 %v3090, %v3095
        %v3099 = vsel %vm453, %v3097, 0
        %3101 = vmatprep.subr.mxu0 %v1859
        %3102 = vmatpush1.msra.mxu0 %v1858
        %3103 = vmatprep.subr.mxu0 %v1861
        %3104 = vmatpush1.msra.mxu0 %v1860
        %3105 = vmatprep.subr.mxu0 %v1863
        %3106 = vmatpush1.msra.mxu0 %v1862
        %3107 = vmatprep.subr.mxu0 %v1865
        %3108 = vmatpush1.msra.mxu0 %v1864
        %3109 = vmatprep.subr.mxu0 0.0
        %3110 = vmatpush1.msra.mxu0 0.0
        %3111 = vmatprep.subr.mxu0 0.0
        %3112 = vmatpush1.msra.mxu0 0.0
        %3113 = vmatprep.subr.mxu0 0.0
        %3114 = vmatpush1.msra.mxu0 0.0
        %3115 = vmatprep.subr.mxu0 0.0
        %3116 = vmatpush1.msra.mxu0 0.0
        %3117 = vmatprep.subr.mxu0 0.0
        %3118 = vmatpush1.msra.mxu0 0.0
        %3119 = vmatprep.subr.mxu0 0.0
        %3120 = vmatpush1.msra.mxu0 0.0
        %3121 = vmatprep.subr.mxu0 0.0
        %3122 = vmatpush1.msra.mxu0 0.0
        %3123 = vmatprep.subr.mxu0 0.0
        %3124 = vmatpush1.msra.mxu0 0.0
        %3125 = vmatprep.subr.mxu0 0.0
        %3126 = vmatpush1.msra.mxu0 0.0
        %3127 = vmatprep.subr.mxu0 0.0
        %3128 = vmatpush1.msra.mxu0 0.0
        %3129 = vmatprep.subr.mxu0 0.0
        %3130 = vmatpush1.msra.mxu0 0.0
        %3131 = vmatprep.subr.mxu0 0.0
        %3132 = vmatpush1.msra.mxu0 0.0
        %3133 = vmatprep.subr.mxu0 0.0
        %3134 = vmatpush1.msra.mxu0 0.0
        %3135 = vmatprep.subr.mxu0 0.0
        %3136 = vmatpush1.msra.mxu0 0.0
        %3137 = vmatprep.subr.mxu0 0.0
        %3138 = vmatpush1.msra.mxu0 0.0
        %3139 = vmatprep.subr.mxu0 0.0
        %3140 = vmatpush1.msra.mxu0 0.0
        %3141 = vmatprep.subr.mxu0 0.0
        %3142 = vmatpush1.msra.mxu0 0.0
        %3143 = vmatprep.subr.mxu0 0.0
        %3144 = vmatpush1.msra.mxu0 0.0
        %3145 = vmatprep.subr.mxu0 0.0
        %3146 = vmatpush1.msra.mxu0 0.0
        %3147 = vmatprep.subr.mxu0 0.0
        %3148 = vmatpush1.msra.mxu0 0.0
        %3149 = vmatprep.subr.mxu0 0.0
        %3150 = vmatpush1.msra.mxu0 0.0
        %3151 = vmatprep.subr.mxu0 0.0
        %3152 = vmatpush1.msra.mxu0 0.0
        %3153 = vmatprep.subr.mxu0 0.0
        %3154 = vmatpush1.msra.mxu0 0.0
        %3155 = vmatprep.subr.mxu0 0.0
        %3156 = vmatpush1.msra.mxu0 0.0
        %3157 = vmatprep.subr.mxu0 0.0
        %3158 = vmatpush1.msra.mxu0 0.0
        %3159 = vmatprep.subr.mxu0 0.0
        %3160 = vmatpush1.msra.mxu0 0.0
        %3161 = vmatprep.subr.mxu0 0.0
        %3162 = vmatpush1.msra.mxu0 0.0
        %3163 = vmatprep.subr.mxu0 0.0
        %3164 = vmatpush1.msra.mxu0 0.0
        %3165 = vmatprep.mubr.f32.mxu0 0.0
        %3166 = vmatmul.mubr.f32.gmra.mrb[0].mxu0 %v3099
        %v3167 = vpop.f32.mrb[0].mxu0
        %v3168 = vadd.f32 0.0, %v3167
        %v3169 = vpop.f32.mrb[0].mxu0
        %v3170 = vadd.f32 0.0, %v3169
        %3171 = vdwg.mxu0
        %v3172 = vxor.u32 %v3168, 2147483648
        %v3173 = vmul.f32 %v3172, 1.442695
        %v3174 = vpow.pop %v3173
        %v3175 = vadd.f32 %v3174, 1.0
        %v3176 = vrcp.pop %v3175
        %v3177 = vmul.f32 1.0, %v3176
        %v3178 = vmul.f32 %v3168, %v3177
        %3181 = vrot.lane.b32.xlu0 %v3168, 32
        %v3182 = vpop.permute.xlu0 %3181
        %3183 = vrot.lane.b32.xlu0 %v3170, 32
        %v3184 = vpop.permute.xlu0 %3183
        %v3185 = vsel %vm453, %v3182, %v3184
        %v3187 = vmul.f32 %v3178, %v3185
        %v3189 = vsel %vm1768, %v3187, 0
        %3191 = vmatprep.subr.mxu0 0.0
        %3192 = vmatpush1.msra.mxu0 %v1867
        %3193 = vmatprep.subr.mxu0 0.0
        %3194 = vmatpush1.msra.mxu0 %v1868
        %3195 = vmatprep.subr.mxu0 0.0
        %3196 = vmatpush1.msra.mxu0 %v1869
        %3197 = vmatprep.subr.mxu0 0.0
        %3198 = vmatpush1.msra.mxu0 %v1870
        %3199 = vmatprep.subr.mxu0 0.0
        %3200 = vmatpush1.msra.mxu0 %v1871
        %3201 = vmatprep.subr.mxu0 0.0
        %3202 = vmatpush1.msra.mxu0 %v1872
        %3203 = vmatprep.subr.mxu0 0.0
        %3204 = vmatpush1.msra.mxu0 %v1873
        %3205 = vmatprep.subr.mxu0 0.0
        %3206 = vmatpush1.msra.mxu0 %v1874
        %3207 = vmatprep.subr.mxu0 0.0
        %3208 = vmatpush1.msra.mxu0 %v1875
        %3209 = vmatprep.subr.mxu0 0.0
        %3210 = vmatpush1.msra.mxu0 %v1876
        %3211 = vmatprep.subr.mxu0 0.0
        %3212 = vmatpush1.msra.mxu0 %v1877
        %3213 = vmatprep.subr.mxu0 0.0
        %3214 = vmatpush1.msra.mxu0 %v1878
        %3215 = vmatprep.subr.mxu0 0.0
        %3216 = vmatpush1.msra.mxu0 0.0
        %3217 = vmatprep.subr.mxu0 0.0
        %3218 = vmatpush1.msra.mxu0 0.0
        %3219 = vmatprep.subr.mxu0 0.0
        %3220 = vmatpush1.msra.mxu0 0.0
        %3221 = vmatprep.subr.mxu0 0.0
        %3222 = vmatpush1.msra.mxu0 0.0
        %3223 = vmatprep.subr.mxu0 0.0
        %3224 = vmatpush1.msra.mxu0 0.0
        %3225 = vmatprep.subr.mxu0 0.0
        %3226 = vmatpush1.msra.mxu0 0.0
        %3227 = vmatprep.subr.mxu0 0.0
        %3228 = vmatpush1.msra.mxu0 0.0
        %3229 = vmatprep.subr.mxu0 0.0
        %3230 = vmatpush1.msra.mxu0 0.0
        %3231 = vmatprep.subr.mxu0 0.0
        %3232 = vmatpush1.msra.mxu0 0.0
        %3233 = vmatprep.subr.mxu0 0.0
        %3234 = vmatpush1.msra.mxu0 0.0
        %3235 = vmatprep.subr.mxu0 0.0
        %3236 = vmatpush1.msra.mxu0 0.0
        %3237 = vmatprep.subr.mxu0 0.0
        %3238 = vmatpush1.msra.mxu0 0.0
        %3239 = vmatprep.subr.mxu0 0.0
        %3240 = vmatpush1.msra.mxu0 0.0
        %3241 = vmatprep.subr.mxu0 0.0
        %3242 = vmatpush1.msra.mxu0 0.0
        %3243 = vmatprep.subr.mxu0 0.0
        %3244 = vmatpush1.msra.mxu0 0.0
        %3245 = vmatprep.subr.mxu0 0.0
        %3246 = vmatpush1.msra.mxu0 0.0
        %3247 = vmatprep.subr.mxu0 0.0
        %3248 = vmatpush1.msra.mxu0 0.0
        %3249 = vmatprep.subr.mxu0 0.0
        %3250 = vmatpush1.msra.mxu0 0.0
        %3251 = vmatprep.subr.mxu0 0.0
        %3252 = vmatpush1.msra.mxu0 0.0
        %3253 = vmatprep.subr.mxu0 0.0
        %3254 = vmatpush1.msra.mxu0 0.0
        %3255 = vmatprep.mubr.f32.mxu0 0.0
        %3256 = vmatmul.mubr.f32.gmra.mrb[0].mxu0 %v3189
        %v3257 = vpop.f32.mrb[0].mxu0
        %v3258 = vadd.f32 0.0, %v3257
        %v3259 = vpop.f32.mrb[0].mxu0
        %3260 = vdwg.mxu0
        %v3261 = vadd.f32 %v3082, %v3258
        %3262 = vst.msk [vmem:[%s414] sm:$0xff] %vm453, %v3261
        %s3263 = sand.u32 %s252, 1
        %s3264 = scalar_lea.sflag [#allocation4], %s3263
        %s3265 = sand.u32 %s252, 1
        %s3266 = smul.addr %s3265, 8
        %s3267 = scalar_lea.vmem [#allocation10], %s3266
        // Predicated region
        $region77: #{base_transformer.1} parent=59 // pred_check
          %p3268 = pneg %p262
        $region78: #{base_transformer.1} parent=59 // pred_check_branch
          %3270 = sbr.rel (%p3268) target = $region80
        $region79: #{base_transformer.1} parent=59 // pred_region
          %s3272 = ssub.s32 128, 128
          %3273 = vsyncadd %s3264, %s3272
          %s3274 = smul.addr %s29, 128
          %s3275 = scalar_lea.hbm %s10, %s3274
          %s3277 = sshll.u32 %s3267, 4
          %s3278 = int_to_ptr.vmem [resolvable:$true] %s3277
          %3280 = dma.vmem_to_hbm [thread:$0]  %s3278, 128, %s3275, %s3264
        $region80: #{base_transformer.1} parent=59 // pred_fallthru
          _
      $region60: #{base_transformer.1} parent=5 // pred_fallthru
        _
      %p3281 = scmp.le.s32.totalorder 2, %s24
      // Predicated region
      $region81: #{base_transformer.1} parent=5 // pred_check
        %p3282 = pneg %p3281
      $region82: #{base_transformer.1} parent=5 // pred_check_branch
        %3284 = sbr.rel (%p3282) target = $region84
      $region83: #{base_transformer.1} parent=5 // pred_region
        %s3285 = ssub.s32 %s24, 2
        // Predicated region
        $region85: #{base_transformer.1} parent=83 // pred_check
          %p3286 = pneg %p268
        $region86: #{base_transformer.1} parent=83 // pred_check_branch
          %3288 = sbr.rel (%p3286) target = $region88
        $region87: #{base_transformer.1} parent=83 // pred_region
          %s3289 = sand.u32 %s253, 1
          %s3290 = scalar_lea.sflag [#allocation4], %s3289
          %s3291 = sand.u32 %s253, 1
          %s3292 = smul.addr %s3291, 8
          %s3293 = scalar_lea.vmem [#allocation10], %s3292
          %3294 = dma.done %s3290, 128
        $region88: #{base_transformer.1} parent=83 // pred_fallthru
          _
      $region84: #{base_transformer.1} parent=5 // pred_fallthru
        _
    $region6: #{base_transformer.1} parent=1 // loop_footer
      %s28 = sadd.s32 1, %s24
    $region7: #{base_transformer.1} parent=1 // loop_footer_branch
      %23 = sbr.rel target = $region3
    $region8: #{base_transformer.1} parent=1 // loop_exit
      _
    %3295 = vsyncpa [#allocation3], 1
    %s3296 = scalar_lea.sflag [#allocation3], 1
    %3297 = vsyncpa %s3296, 1
    %3298 = vsyncpa [#allocation6], 1
    %3299 = vsyncpa [#allocation9], 1
    %3300 = vsyncpa [#allocation4], 1
    %s3301 = scalar_lea.sflag [#allocation4], 1
    %3302 = vsyncpa %s3301, 1

</llo_original>
